<compile_context>
chip_gen: v7x
topology: tpu7x:2x2x1
jax: 0.10.0
libtpu: 0.0.40
codegen_flags: <defaults>
</compile_context>

<pallas_src>
import functools

import jax
import jax.numpy as jnp
from jax.experimental import pallas as pl
from jax.experimental.pallas import tpu as pltpu

_LANE = 128  # lane width; padded output-channel count of every conv GEMM


def _round_up(n, m):
    return ((n + m - 1) // m) * m


# ---------------------------------------------------------------------------
# Pallas kernels
# ---------------------------------------------------------------------------
def _conv_gemm_kernel(p_ref, w_ref, aff_ref, o_ref):
    # p_ref:   (tm, Kp)  bf16 im2col patches (zero padded rows/cols)
    # w_ref:   (Kp, Np)  bf16 reshaped conv weights (zero padded rows/cols)
    # aff_ref: (8,  Np)  f32  row0 = conv bias, row1 = BN scale, row2 = BN shift
    acc = jnp.dot(p_ref[...], w_ref[...], preferred_element_type=jnp.float32)
    acc = acc + aff_ref[0:1, :]                      # conv bias
    acc = jnp.maximum(acc, 0.2 * acc)                # LeakyReLU(0.2)
    acc = acc * aff_ref[1:2, :] + aff_ref[2:3, :]    # eval-mode BN affine (after LReLU)
    o_ref[...] = acc.astype(o_ref.dtype)


def _head_kernel(x_ref, w_ref, b_ref, o_ref):
    # x_ref: (Mp, F) bf16, w_ref: (F, 128) bf16 (col 0 valid), b_ref: (1, 128) f32
    z = jnp.dot(x_ref[...], w_ref[...], preferred_element_type=jnp.float32)
    z = z + b_ref[...]
    # numerically stable sigmoid (tanh runs on the EUP)
    o_ref[...] = 0.5 * (jnp.tanh(0.5 * z) + 1.0)


def _full_spec(shape):
    return pl.BlockSpec(shape, lambda: tuple(0 for _ in shape))


# ---------------------------------------------------------------------------
# pallas_call wrappers (no per-kernel jit: the whole forward is jitted once)
# ---------------------------------------------------------------------------
def _conv_gemm(patches, w_kn, aff, tm):
    Mp, Kp = patches.shape
    Np = w_kn.shape[1]
    grid = (Mp // tm,)  # Mp is padded to a multiple of tm -> no partial blocks
    flops = 2 * Mp * Kp * Np
    bytes_accessed = Mp * Kp * 2 + Kp * Np * 2 + Mp * Np * 2 + 8 * Np * 4
    return pl.pallas_call(
        _conv_gemm_kernel,
        out_shape=jax.ShapeDtypeStruct((Mp, Np), jnp.bfloat16),
        grid=grid,
        in_specs=[
            pl.BlockSpec((tm, Kp), lambda i: (i, 0)),
            pl.BlockSpec((Kp, Np), lambda i: (0, 0)),
            pl.BlockSpec((8, Np), lambda i: (0, 0)),
        ],
        out_specs=pl.BlockSpec((tm, Np), lambda i: (i, 0)),
        compiler_params=pltpu.CompilerParams(
            dimension_semantics=("parallel",),
            vmem_limit_bytes=32 * 1024 * 1024,
        ),
        cost_estimate=pl.CostEstimate(
            flops=flops, transcendentals=0, bytes_accessed=bytes_accessed),
    )(patches, w_kn, aff)


def _head(x, w, b):
    Mp, F = x.shape
    return pl.pallas_call(
        _head_kernel,
        out_shape=jax.ShapeDtypeStruct((Mp, _LANE), jnp.float32),
        in_specs=[
            _full_spec((Mp, F)),
            _full_spec((F, _LANE)),
            _full_spec((1, _LANE)),
        ],
        out_specs=_full_spec((Mp, _LANE)),
        cost_estimate=pl.CostEstimate(
            flops=2 * Mp * F * _LANE,
            transcendentals=Mp * _LANE,
            bytes_accessed=Mp * F * 2 + F * _LANE * 2 + _LANE * 4 + Mp * _LANE * 4),
    )(x, w, b)


# ---------------------------------------------------------------------------
# im2col for Conv3d(kernel=3, stride=2, padding=1), channels-last (NDHWC)
# ---------------------------------------------------------------------------
def _im2col_ndhwc(x, k=3, s=2, p=1):
    B, D, H, W, C = x.shape
    xp = jnp.pad(x, ((0, 0), (p, p), (p, p), (p, p), (0, 0)))
    Do = (D + 2 * p - k) // s + 1
    Ho = (H + 2 * p - k) // s + 1
    Wo = (W + 2 * p - k) // s + 1
    cols = []
    for kd in range(k):
        for kh in range(k):
            for kw in range(k):
                cols.append(
                    xp[:,
                       kd:kd + s * (Do - 1) + 1:s,
                       kh:kh + s * (Ho - 1) + 1:s,
                       kw:kw + s * (Wo - 1) + 1:s,
                       :]
                )
    # (B, Do, Ho, Wo, 27, C): K index = ((kd*3+kh)*3+kw)*C + c (matches weight prep)
    patches = jnp.stack(cols, axis=4)
    patches = patches.reshape(B * Do * Ho * Wo, k * k * k * C)
    return patches, (B, Do, Ho, Wo)


def _conv_block(x, w_kn, aff, cout):
    """Conv3d(3,2,1) -> LeakyReLU(0.2) -> [Dropout id] -> BN affine.

    x: (B, D, H, W, Cin) bf16 channels-last with the TRUE input channel count.
    Returns (B, Do, Ho, Wo, cout) bf16 (true output channel count).
    """
    patches, (B, Do, Ho, Wo) = _im2col_ndhwc(x)
    M, K = patches.shape
    Kp, Np = w_kn.shape
    M8 = _round_up(M, 8)
    tm = min(512, M8)
    Mp = _round_up(M, tm)
    patches = jnp.pad(patches, ((0, Mp - M), (0, Kp - K)))
    out = _conv_gemm(patches, w_kn, aff, tm)          # (Mp, Np) bf16, lane-dense
    out = out[:M, :cout].reshape(B, Do, Ho, Wo, cout)  # cheap XLA slice, fused downstream
    return out


# ---------------------------------------------------------------------------
# Parameter construction (deterministic, synthetic, PyTorch-shaped)
# ---------------------------------------------------------------------------
def init_params(key, img_shape):
    eps = 0.8  # nn.BatchNorm3d(C, 0.8) -> eps=0.8
    channels = [(1, 16, False), (16, 32, True), (32, 64, True), (64, 128, True)]
    params = {"convs": []}
    for cin, cout, bn in channels:
        key, kw, kb, kg, kbeta, km, kv = jax.random.split(key, 7)
        w = 0.02 * jax.random.normal(kw, (cout, cin, 3, 3, 3), jnp.float32)
        b = 0.02 * jax.random.normal(kb, (cout,), jnp.float32)
        if bn:
            gamma = 1.0 + 0.1 * jax.random.normal(kg, (cout,), jnp.float32)
            beta = 0.1 * jax.random.normal(kbeta, (cout,), jnp.float32)
            r_mean = 0.1 * jax.random.normal(km, (cout,), jnp.float32)
            r_var = jax.random.uniform(kv, (cout,), jnp.float32, 0.5, 1.5)
            scale = gamma / jnp.sqrt(r_var + eps)
            shift = beta - r_mean * scale
        else:
            scale = jnp.ones((cout,), jnp.float32)
            shift = jnp.zeros((cout,), jnp.float32)
        params["convs"].append((w, b, scale, shift))

    ds_size = img_shape[1] // 2 ** 4
    feat = 128 * ds_size ** 3
    key, kw, kb = jax.random.split(key, 3)
    params["adv_w"] = 0.02 * jax.random.normal(kw, (1, feat), jnp.float32)
    params["adv_b"] = 0.02 * jax.random.normal(kb, (1,), jnp.float32)
    return params


def prepare_params(raw, img_shape):
    """One-time prep: GEMM-ready, lane-padded, bf16 weights (outside the hot path)."""
    prepped = {"convs": []}
    couts = []
    for (w, b, scale, shift) in raw["convs"]:
        cout, cin = w.shape[0], w.shape[1]
        # (Cout, Cin, kd, kh, kw) -> (kd, kh, kw, Cin, Cout) to match im2col K order
        w5 = jnp.transpose(w, (2, 3, 4, 1, 0))
        w_kn = w5.reshape(27 * cin, cout)
        Kp = _round_up(27 * cin, _LANE)
        Np = _round_up(cout, _LANE)
        w_kn = jnp.pad(w_kn, ((0, Kp - 27 * cin), (0, Np - cout))).astype(jnp.bfloat16)
        # Packed epilogue params: row0 bias, row1 scale, row2 shift (padded cols benign,
        # they are sliced away after the GEMM).
        aff = jnp.zeros((8, Np), jnp.float32)
        aff = aff.at[0, :cout].set(b)
        aff = aff.at[1, :].set(jnp.pad(scale, (0, Np - cout), constant_values=1.0))
        aff = aff.at[2, :cout].set(shift)
        prepped["convs"].append((w_kn, aff))
        couts.append(cout)

    # Head: PyTorch flattens (B, C, d, h, w) in (c,d,h,w) order; our activations are
    # channels-last so permute the Linear weight once to (d,h,w,c) order instead.
    ds = img_shape[1] // 2 ** 4
    cout_last = raw["convs"][-1][0].shape[0]          # 128
    wv = raw["adv_w"].reshape(cout_last, ds, ds, ds).transpose(1, 2, 3, 0)
    wv = wv.reshape(-1, 1)                            # (F, 1)
    prepped["head_w"] = jnp.pad(wv, ((0, 0), (0, _LANE - 1))).astype(jnp.bfloat16)
    prepped["head_b"] = jnp.pad(raw["adv_b"].reshape(1, 1),
                                ((0, 0), (0, _LANE - 1))).astype(jnp.float32)
    return prepped, tuple(couts)


# ---------------------------------------------------------------------------
# Forward pass (single jit for the whole network; couts is static)
# ---------------------------------------------------------------------------
@functools.partial(jax.jit, static_argnums=(2,))
def discriminator_forward(params, img, couts):
    # img: (B, 1, S, S, S) float32, NCDHW -> channels-last bf16
    x = jnp.transpose(img, (0, 2, 3, 4, 1)).astype(jnp.bfloat16)
    for (w_kn, aff), cout in zip(params["convs"], couts):
        x = _conv_block(x, w_kn, aff, cout)
    B = x.shape[0]
    flat = x.reshape(B, -1)                            # (d,h,w,c) order, matches head_w
    Mp = _round_up(B, 8)
    if Mp > B:
        flat = jnp.pad(flat, ((0, Mp - B), (0, 0)))
    validity = _head(flat, params["head_w"], params["head_b"])
    return validity[:B, :1]                            # (B, 1)


if __name__ == "__main__":
    key = jax.random.PRNGKey(0)
    key, kx = jax.random.split(key)

    img_shape = (1, 16, 16)  # (channels, spatial, spatial); cube depth == img_shape[1]
    B, S = 2, img_shape[1]
    img = jax.random.normal(kx, (B, 1, S, S, S), jnp.float32)

    raw_params = init_params(key, img_shape)
    params, couts = prepare_params(raw_params, img_shape)

    validity = discriminator_forward(params, img, couts)
    validity = jax.block_until_ready(validity)

    assert validity.shape == (B, 1), validity.shape
    assert bool(jnp.all((validity >= 0.0) & (validity <= 1.0)))
    print("KERNEL_OK")
</pallas_src>

<mosaic_0001>
module attributes {stable_mosaic.version = 11 : i64} {
  func.func @_conv_gemm_kernel(%arg0: i32, %arg1: memref<512x128xbf16, #tpu.memory_space<vmem>>, %arg2: memref<128x128xbf16, #tpu.memory_space<vmem>>, %arg3: memref<8x128xf32, #tpu.memory_space<vmem>>, %arg4: memref<512x128xbf16, #tpu.memory_space<vmem>>) attributes {dimension_semantics = [#tpu.dimension_semantics<parallel>], iteration_bounds = array<i64: 2>, scalar_prefetch = 0 : i64, scratch_operands = 0 : i64, tpu.core_type = #tpu.core_type<tc>, window_params = [{transform_indices = @transform_0, window_bounds = array<i64: 512, 128>}, {pipeline_mode = #tpu.pipeline_mode<synchronous>, transform_indices = @transform_1, window_bounds = array<i64: 128, 128>}, {pipeline_mode = #tpu.pipeline_mode<synchronous>, transform_indices = @transform_2, window_bounds = array<i64: 8, 128>}, {transform_indices = @transform_3, window_bounds = array<i64: 512, 128>}]} {
    %c0 = arith.constant 0 : index
    %c0_0 = arith.constant 0 : index
    %0 = vector.load %arg1[%c0, %c0_0] : memref<512x128xbf16, #tpu.memory_space<vmem>>, vector<512x128xbf16>
    %c0_1 = arith.constant 0 : index
    %c0_2 = arith.constant 0 : index
    %1 = vector.load %arg2[%c0_1, %c0_2] : memref<128x128xbf16, #tpu.memory_space<vmem>>, vector<128x128xbf16>
    %cst = arith.constant dense<0.000000e+00> : vector<512x128xf32>
    %2 = tpu.matmul %0, %1, %cst {dimension_numbers = #tpu.dot_dimension_numbers<[1], [0], [0], [1], [0, 0, 1, 1], [], []>} : vector<512x128xbf16>, vector<128x128xbf16>, vector<512x128xf32> -> vector<512x128xf32>
    %c0_3 = arith.constant 0 : index
    %c0_4 = arith.constant 0 : index
    %3 = vector.load %arg3[%c0_3, %c0_4] : memref<8x128xf32, #tpu.memory_space<vmem>>, vector<1x128xf32>
    %4 = vector.broadcast %3 : vector<1x128xf32> to vector<512x128xf32>
    %5 = arith.addf %2, %4 : vector<512x128xf32>
    %cst_5 = arith.constant 2.000000e-01 : f32
    %6 = vector.broadcast %cst_5 : f32 to vector<512x128xf32>
    %7 = arith.mulf %6, %5 : vector<512x128xf32>
    %8 = arith.maximumf %5, %7 : vector<512x128xf32>
    %c1 = arith.constant 1 : index
    %c0_6 = arith.constant 0 : index
    %9 = vector.load %arg3[%c1, %c0_6] : memref<8x128xf32, #tpu.memory_space<vmem>>, vector<1x128xf32>
    %10 = vector.broadcast %9 : vector<1x128xf32> to vector<512x128xf32>
    %11 = arith.mulf %8, %10 : vector<512x128xf32>
    %c2 = arith.constant 2 : index
    %c0_7 = arith.constant 0 : index
    %12 = vector.load %arg3[%c2, %c0_7] : memref<8x128xf32, #tpu.memory_space<vmem>>, vector<1x128xf32>
    %13 = vector.broadcast %12 : vector<1x128xf32> to vector<512x128xf32>
    %14 = arith.addf %11, %13 : vector<512x128xf32>
    %15 = arith.truncf %14 : vector<512x128xf32> to vector<512x128xbf16>
    %c0_8 = arith.constant 0 : index
    %c0_9 = arith.constant 0 : index
    %16 = vector.load %arg4[%c0_8, %c0_9] : memref<512x128xbf16, #tpu.memory_space<vmem>>, vector<512x128xbf16>
    tpu.vector_store %arg4[%c0_8, %c0_9], %15 {strides = array<i32>} : memref<512x128xbf16, #tpu.memory_space<vmem>>, vector<512x128xbf16>,
    return
  }
  func.func @transform_0(%arg0: i32) -> (i32, i32) {
    %c0_i32 = arith.constant 0 : i32
    %c0_i32_0 = arith.constant 0 : i32
    return %arg0, %c0_i32 : i32, i32
  }
  func.func @transform_1(%arg0: i32) -> (i32, i32) {
    %c0_i32 = arith.constant 0 : i32
    %c0_i32_0 = arith.constant 0 : i32
    %c0_i32_1 = arith.constant 0 : i32
    return %c0_i32, %c0_i32_0 : i32, i32
  }
  func.func @transform_2(%arg0: i32) -> (i32, i32) {
    %c0_i32 = arith.constant 0 : i32
    %c0_i32_0 = arith.constant 0 : i32
    %c0_i32_1 = arith.constant 0 : i32
    return %c0_i32, %c0_i32_0 : i32, i32
  }
  func.func @transform_3(%arg0: i32) -> (i32, i32) {
    %c0_i32 = arith.constant 0 : i32
    %c0_i32_0 = arith.constant 0 : i32
    return %arg0, %c0_i32 : i32, i32
  }
}

module attributes {stable_mosaic.version = 11 : i64} {
  func.func @_conv_gemm_kernel(%arg0: i32, %arg1: memref<128x512xbf16, #tpu.memory_space<vmem>>, %arg2: memref<512x128xbf16, #tpu.memory_space<vmem>>, %arg3: memref<8x128xf32, #tpu.memory_space<vmem>>, %arg4: memref<128x128xbf16, #tpu.memory_space<vmem>>) attributes {dimension_semantics = [#tpu.dimension_semantics<parallel>], iteration_bounds = array<i64: 1>, scalar_prefetch = 0 : i64, scratch_operands = 0 : i64, tpu.core_type = #tpu.core_type<tc>, window_params = [{transform_indices = @transform_0, window_bounds = array<i64: 128, 512>}, {pipeline_mode = #tpu.pipeline_mode<synchronous>, transform_indices = @transform_1, window_bounds = array<i64: 512, 128>}, {pipeline_mode = #tpu.pipeline_mode<synchronous>, transform_indices = @transform_2, window_bounds = array<i64: 8, 128>}, {transform_indices = @transform_3, window_bounds = array<i64: 128, 128>}]} {
    %c0 = arith.constant 0 : index
    %c0_0 = arith.constant 0 : index
    %0 = vector.load %arg1[%c0, %c0_0] : memref<128x512xbf16, #tpu.memory_space<vmem>>, vector<128x512xbf16>
    %c0_1 = arith.constant 0 : index
    %c0_2 = arith.constant 0 : index
    %1 = vector.load %arg2[%c0_1, %c0_2] : memref<512x128xbf16, #tpu.memory_space<vmem>>, vector<512x128xbf16>
    %cst = arith.constant dense<0.000000e+00> : vector<128x128xf32>
    %2 = tpu.matmul %0, %1, %cst {dimension_numbers = #tpu.dot_dimension_numbers<[1], [0], [0], [1], [0, 0, 1, 1], [], []>} : vector<128x512xbf16>, vector<512x128xbf16>, vector<128x128xf32> -> vector<128x128xf32>
    %c0_3 = arith.constant 0 : index
    %c0_4 = arith.constant 0 : index
    %3 = vector.load %arg3[%c0_3, %c0_4] : memref<8x128xf32, #tpu.memory_space<vmem>>, vector<1x128xf32>
    %4 = vector.broadcast %3 : vector<1x128xf32> to vector<128x128xf32>
    %5 = arith.addf %2, %4 : vector<128x128xf32>
    %cst_5 = arith.constant 2.000000e-01 : f32
    %6 = vector.broadcast %cst_5 : f32 to vector<128x128xf32>
    %7 = arith.mulf %6, %5 : vector<128x128xf32>
    %8 = arith.maximumf %5, %7 : vector<128x128xf32>
    %c1 = arith.constant 1 : index
    %c0_6 = arith.constant 0 : index
    %9 = vector.load %arg3[%c1, %c0_6] : memref<8x128xf32, #tpu.memory_space<vmem>>, vector<1x128xf32>
    %10 = vector.broadcast %9 : vector<1x128xf32> to vector<128x128xf32>
    %11 = arith.mulf %8, %10 : vector<128x128xf32>
    %c2 = arith.constant 2 : index
    %c0_7 = arith.constant 0 : index
    %12 = vector.load %arg3[%c2, %c0_7] : memref<8x128xf32, #tpu.memory_space<vmem>>, vector<1x128xf32>
    %13 = vector.broadcast %12 : vector<1x128xf32> to vector<128x128xf32>
    %14 = arith.addf %11, %13 : vector<128x128xf32>
    %15 = arith.truncf %14 : vector<128x128xf32> to vector<128x128xbf16>
    %c0_8 = arith.constant 0 : index
    %c0_9 = arith.constant 0 : index
    %16 = vector.load %arg4[%c0_8, %c0_9] : memref<128x128xbf16, #tpu.memory_space<vmem>>, vector<128x128xbf16>
    tpu.vector_store %arg4[%c0_8, %c0_9], %15 {strides = array<i32>} : memref<128x128xbf16, #tpu.memory_space<vmem>>, vector<128x128xbf16>,
    return
  }
  func.func @transform_0(%arg0: i32) -> (i32, i32) {
    %c0_i32 = arith.constant 0 : i32
    %c0_i32_0 = arith.constant 0 : i32
    return %arg0, %c0_i32 : i32, i32
  }
  func.func @transform_1(%arg0: i32) -> (i32, i32) {
    %c0_i32 = arith.constant 0 : i32
    %c0_i32_0 = arith.constant 0 : i32
    %c0_i32_1 = arith.constant 0 : i32
    return %c0_i32, %c0_i32_0 : i32, i32
  }
  func.func @transform_2(%arg0: i32) -> (i32, i32) {
    %c0_i32 = arith.constant 0 : i32
    %c0_i32_0 = arith.constant 0 : i32
    %c0_i32_1 = arith.constant 0 : i32
    return %c0_i32, %c0_i32_0 : i32, i32
  }
  func.func @transform_3(%arg0: i32) -> (i32, i32) {
    %c0_i32 = arith.constant 0 : i32
    %c0_i32_0 = arith.constant 0 : i32
    return %arg0, %c0_i32 : i32, i32
  }
}

module attributes {stable_mosaic.version = 11 : i64} {
  func.func @_conv_gemm_kernel(%arg0: i32, %arg1: memref<16x896xbf16, #tpu.memory_space<vmem>>, %arg2: memref<896x128xbf16, #tpu.memory_space<vmem>>, %arg3: memref<8x128xf32, #tpu.memory_space<vmem>>, %arg4: memref<16x128xbf16, #tpu.memory_space<vmem>>) attributes {dimension_semantics = [#tpu.dimension_semantics<parallel>], iteration_bounds = array<i64: 1>, scalar_prefetch = 0 : i64, scratch_operands = 0 : i64, tpu.core_type = #tpu.core_type<tc>, window_params = [{transform_indices = @transform_0, window_bounds = array<i64: 16, 896>}, {pipeline_mode = #tpu.pipeline_mode<synchronous>, transform_indices = @transform_1, window_bounds = array<i64: 896, 128>}, {pipeline_mode = #tpu.pipeline_mode<synchronous>, transform_indices = @transform_2, window_bounds = array<i64: 8, 128>}, {transform_indices = @transform_3, window_bounds = array<i64: 16, 128>}]} {
    %c0 = arith.constant 0 : index
    %c0_0 = arith.constant 0 : index
    %0 = vector.load %arg1[%c0, %c0_0] : memref<16x896xbf16, #tpu.memory_space<vmem>>, vector<16x896xbf16>
    %c0_1 = arith.constant 0 : index
    %c0_2 = arith.constant 0 : index
    %1 = vector.load %arg2[%c0_1, %c0_2] : memref<896x128xbf16, #tpu.memory_space<vmem>>, vector<896x128xbf16>
    %cst = arith.constant dense<0.000000e+00> : vector<16x128xf32>
    %2 = tpu.matmul %0, %1, %cst {dimension_numbers = #tpu.dot_dimension_numbers<[1], [0], [0], [1], [0, 0, 1, 1], [], []>} : vector<16x896xbf16>, vector<896x128xbf16>, vector<16x128xf32> -> vector<16x128xf32>
    %c0_3 = arith.constant 0 : index
    %c0_4 = arith.constant 0 : index
    %3 = vector.load %arg3[%c0_3, %c0_4] : memref<8x128xf32, #tpu.memory_space<vmem>>, vector<1x128xf32>
    %4 = vector.broadcast %3 : vector<1x128xf32> to vector<16x128xf32>
    %5 = arith.addf %2, %4 : vector<16x128xf32>
    %cst_5 = arith.constant 2.000000e-01 : f32
    %6 = vector.broadcast %cst_5 : f32 to vector<16x128xf32>
    %7 = arith.mulf %6, %5 : vector<16x128xf32>
    %8 = arith.maximumf %5, %7 : vector<16x128xf32>
    %c1 = arith.constant 1 : index
    %c0_6 = arith.constant 0 : index
    %9 = vector.load %arg3[%c1, %c0_6] : memref<8x128xf32, #tpu.memory_space<vmem>>, vector<1x128xf32>
    %10 = vector.broadcast %9 : vector<1x128xf32> to vector<16x128xf32>
    %11 = arith.mulf %8, %10 : vector<16x128xf32>
    %c2 = arith.constant 2 : index
    %c0_7 = arith.constant 0 : index
    %12 = vector.load %arg3[%c2, %c0_7] : memref<8x128xf32, #tpu.memory_space<vmem>>, vector<1x128xf32>
    %13 = vector.broadcast %12 : vector<1x128xf32> to vector<16x128xf32>
    %14 = arith.addf %11, %13 : vector<16x128xf32>
    %15 = arith.truncf %14 : vector<16x128xf32> to vector<16x128xbf16>
    %c0_8 = arith.constant 0 : index
    %c0_9 = arith.constant 0 : index
    %16 = vector.load %arg4[%c0_8, %c0_9] : memref<16x128xbf16, #tpu.memory_space<vmem>>, vector<16x128xbf16>
    tpu.vector_store %arg4[%c0_8, %c0_9], %15 {strides = array<i32>} : memref<16x128xbf16, #tpu.memory_space<vmem>>, vector<16x128xbf16>,
    return
  }
  func.func @transform_0(%arg0: i32) -> (i32, i32) {
    %c0_i32 = arith.constant 0 : i32
    %c0_i32_0 = arith.constant 0 : i32
    return %arg0, %c0_i32 : i32, i32
  }
  func.func @transform_1(%arg0: i32) -> (i32, i32) {
    %c0_i32 = arith.constant 0 : i32
    %c0_i32_0 = arith.constant 0 : i32
    %c0_i32_1 = arith.constant 0 : i32
    return %c0_i32, %c0_i32_0 : i32, i32
  }
  func.func @transform_2(%arg0: i32) -> (i32, i32) {
    %c0_i32 = arith.constant 0 : i32
    %c0_i32_0 = arith.constant 0 : i32
    %c0_i32_1 = arith.constant 0 : i32
    return %c0_i32, %c0_i32_0 : i32, i32
  }
  func.func @transform_3(%arg0: i32) -> (i32, i32) {
    %c0_i32 = arith.constant 0 : i32
    %c0_i32_0 = arith.constant 0 : i32
    return %arg0, %c0_i32 : i32, i32
  }
}

module attributes {stable_mosaic.version = 11 : i64} {
  func.func @_head_kernel(%arg0: memref<8x128xbf16, #tpu.memory_space<vmem>>, %arg1: memref<128x128xbf16, #tpu.memory_space<vmem>>, %arg2: memref<1x128xf32, #tpu.memory_space<vmem>>, %arg3: memref<8x128xf32, #tpu.memory_space<vmem>>) attributes {dimension_semantics = [], scalar_prefetch = 0 : i64, scratch_operands = 0 : i64, tpu.core_type = #tpu.core_type<tc>} {
    %c0 = arith.constant 0 : index
    %c0_0 = arith.constant 0 : index
    %0 = vector.load %arg0[%c0, %c0_0] : memref<8x128xbf16, #tpu.memory_space<vmem>>, vector<8x128xbf16>
    %c0_1 = arith.constant 0 : index
    %c0_2 = arith.constant 0 : index
    %1 = vector.load %arg1[%c0_1, %c0_2] : memref<128x128xbf16, #tpu.memory_space<vmem>>, vector<128x128xbf16>
    %cst = arith.constant dense<0.000000e+00> : vector<8x128xf32>
    %2 = tpu.matmul %0, %1, %cst {dimension_numbers = #tpu.dot_dimension_numbers<[1], [0], [0], [1], [0, 0, 1, 1], [], []>} : vector<8x128xbf16>, vector<128x128xbf16>, vector<8x128xf32> -> vector<8x128xf32>
    %c0_3 = arith.constant 0 : index
    %c0_4 = arith.constant 0 : index
    %3 = vector.load %arg2[%c0_3, %c0_4] : memref<1x128xf32, #tpu.memory_space<vmem>>, vector<1x128xf32>
    %4 = vector.broadcast %3 : vector<1x128xf32> to vector<8x128xf32>
    %5 = arith.addf %2, %4 : vector<8x128xf32>
    %cst_5 = arith.constant 5.000000e-01 : f32
    %6 = vector.broadcast %cst_5 : f32 to vector<8x128xf32>
    %7 = arith.mulf %6, %5 : vector<8x128xf32>
    %8 = math.tanh %7 : vector<8x128xf32>
    %cst_6 = arith.constant 1.000000e+00 : f32
    %9 = vector.broadcast %cst_6 : f32 to vector<8x128xf32>
    %10 = arith.addf %8, %9 : vector<8x128xf32>
    %cst_7 = arith.constant 5.000000e-01 : f32
    %11 = vector.broadcast %cst_7 : f32 to vector<8x128xf32>
    %12 = arith.mulf %11, %10 : vector<8x128xf32>
    %c0_8 = arith.constant 0 : index
    %c0_9 = arith.constant 0 : index
    %13 = vector.load %arg3[%c0_8, %c0_9] : memref<8x128xf32, #tpu.memory_space<vmem>>, vector<8x128xf32>
    tpu.vector_store %arg3[%c0_8, %c0_9], %12 {strides = array<i32>} : memref<8x128xf32, #tpu.memory_space<vmem>>, vector<8x128xf32>,
    return
  }
}

module attributes {stable_mosaic.version = 11 : i64} {
  func.func @_conv_gemm_kernel(%arg0: i32, %arg1: memref<8x1792xbf16, #tpu.memory_space<vmem>>, %arg2: memref<1792x128xbf16, #tpu.memory_space<vmem>>, %arg3: memref<8x128xf32, #tpu.memory_space<vmem>>, %arg4: memref<8x128xbf16, #tpu.memory_space<vmem>>) attributes {dimension_semantics = [#tpu.dimension_semantics<parallel>], iteration_bounds = array<i64: 1>, scalar_prefetch = 0 : i64, scratch_operands = 0 : i64, tpu.core_type = #tpu.core_type<tc>, window_params = [{transform_indices = @transform_0, window_bounds = array<i64: 8, 1792>}, {pipeline_mode = #tpu.pipeline_mode<synchronous>, transform_indices = @transform_1, window_bounds = array<i64: 1792, 128>}, {pipeline_mode = #tpu.pipeline_mode<synchronous>, transform_indices = @transform_2, window_bounds = array<i64: 8, 128>}, {transform_indices = @transform_3, window_bounds = array<i64: 8, 128>}]} {
    %c0 = arith.constant 0 : index
    %c0_0 = arith.constant 0 : index
    %0 = vector.load %arg1[%c0, %c0_0] : memref<8x1792xbf16, #tpu.memory_space<vmem>>, vector<8x1792xbf16>
    %c0_1 = arith.constant 0 : index
    %c0_2 = arith.constant 0 : index
    %1 = vector.load %arg2[%c0_1, %c0_2] : memref<1792x128xbf16, #tpu.memory_space<vmem>>, vector<1792x128xbf16>
    %cst = arith.constant dense<0.000000e+00> : vector<8x128xf32>
    %2 = tpu.matmul %0, %1, %cst {dimension_numbers = #tpu.dot_dimension_numbers<[1], [0], [0], [1], [0, 0, 1, 1], [], []>} : vector<8x1792xbf16>, vector<1792x128xbf16>, vector<8x128xf32> -> vector<8x128xf32>
    %c0_3 = arith.constant 0 : index
    %c0_4 = arith.constant 0 : index
    %3 = vector.load %arg3[%c0_3, %c0_4] : memref<8x128xf32, #tpu.memory_space<vmem>>, vector<1x128xf32>
    %4 = vector.broadcast %3 : vector<1x128xf32> to vector<8x128xf32>
    %5 = arith.addf %2, %4 : vector<8x128xf32>
    %cst_5 = arith.constant 2.000000e-01 : f32
    %6 = vector.broadcast %cst_5 : f32 to vector<8x128xf32>
    %7 = arith.mulf %6, %5 : vector<8x128xf32>
    %8 = arith.maximumf %5, %7 : vector<8x128xf32>
    %c1 = arith.constant 1 : index
    %c0_6 = arith.constant 0 : index
    %9 = vector.load %arg3[%c1, %c0_6] : memref<8x128xf32, #tpu.memory_space<vmem>>, vector<1x128xf32>
    %10 = vector.broadcast %9 : vector<1x128xf32> to vector<8x128xf32>
    %11 = arith.mulf %8, %10 : vector<8x128xf32>
    %c2 = arith.constant 2 : index
    %c0_7 = arith.constant 0 : index
    %12 = vector.load %arg3[%c2, %c0_7] : memref<8x128xf32, #tpu.memory_space<vmem>>, vector<1x128xf32>
    %13 = vector.broadcast %12 : vector<1x128xf32> to vector<8x128xf32>
    %14 = arith.addf %11, %13 : vector<8x128xf32>
    %15 = arith.truncf %14 : vector<8x128xf32> to vector<8x128xbf16>
    %c0_8 = arith.constant 0 : index
    %c0_9 = arith.constant 0 : index
    %16 = vector.load %arg4[%c0_8, %c0_9] : memref<8x128xbf16, #tpu.memory_space<vmem>>, vector<8x128xbf16>
    tpu.vector_store %arg4[%c0_8, %c0_9], %15 {strides = array<i32>} : memref<8x128xbf16, #tpu.memory_space<vmem>>, vector<8x128xbf16>,
    return
  }
  func.func @transform_0(%arg0: i32) -> (i32, i32) {
    %c0_i32 = arith.constant 0 : i32
    %c0_i32_0 = arith.constant 0 : i32
    return %arg0, %c0_i32 : i32, i32
  }
  func.func @transform_1(%arg0: i32) -> (i32, i32) {
    %c0_i32 = arith.constant 0 : i32
    %c0_i32_0 = arith.constant 0 : i32
    %c0_i32_1 = arith.constant 0 : i32
    return %c0_i32, %c0_i32_0 : i32, i32
  }
  func.func @transform_2(%arg0: i32) -> (i32, i32) {
    %c0_i32 = arith.constant 0 : i32
    %c0_i32_0 = arith.constant 0 : i32
    %c0_i32_1 = arith.constant 0 : i32
    return %c0_i32, %c0_i32_0 : i32, i32
  }
  func.func @transform_3(%arg0: i32) -> (i32, i32) {
    %c0_i32 = arith.constant 0 : i32
    %c0_i32_0 = arith.constant 0 : i32
    return %arg0, %c0_i32 : i32, i32
  }
}

</mosaic_0001>

<llo_original>
// kernel: discriminator_forward.5
$region0: #{discriminator_forward.5}
  #allocation0 [shape = 'u32[]', space=smem, size = 0x4, offset = 0x4, fixed_abs, tag = 'smem constant byte address 0x4 - core index']
  #allocation1 [shape = 'u32[144,128]{1,0:T(1,128)}', space=vmem, size = 0x12000, scoped, tag = 'internal scratch']
  %s0 = inlined_call_operand.vmem [shape: bf16[1024,128], index: 0, kind: input, shape index: {}]
  %s1 = inlined_call_operand.vmem [shape: bf16[128,128], index: 1, kind: input, shape index: {}]
  %s2 = inlined_call_operand.vmem [shape: f32[8,128], index: 2, kind: input, shape index: {}]
  %s3 = inlined_call_operand.vmem [shape: bf16[1024,128], index: 3, kind: output, shape index: {}]
  %s4 = sld [smem:[#allocation0]]
  $region45: #{discriminator_forward.5} parent=0
    _
  %s6 = ssub.s32 1, %s4
  %s7 = scalar_select 0, %s6, %s4
  loop: start=0, step=1, limit=4
  $region2: #{discriminator_forward.5} parent=0 // loop_pre_header
    _
  $region3: #{discriminator_forward.5} parent=0 // loop_header
    %s9 = sphi 0, %s13
    %p10 = scmp.ge.s32.totalorder %s9, 4
    %s19 = sphi 0, %s21
    %s22 = sphi 0, %s19
    %s23 = sphi 0, %s22
    %s39 = sphi 0, %s23
    %s43 = sphi 0, %s43
    %s45 = sphi 0, %s43
    %s46 = sphi 0, %s45
    %s60 = sphi 0, %s46
    %s64 = sphi 0, %s64
    %s66 = sphi 0, %s64
    %s67 = sphi 0, %s66
    %s81 = sphi 0, %s67
    %s87 = sphi 0, %s89
    %s90 = sphi 0, %s87
    %s91 = sphi 0, %s90
    %s107 = sphi 0, %s91
  $region4: #{discriminator_forward.5} parent=0 // loop_header_branch
    %12 = sbr.rel (%p10) target = $region8
  $region5: #{discriminator_forward.5} parent=0 // loop_body
    %s14 = ssub.s32 %s9, 1
    %s15 = ssub.s32 %s9, 2
    %s16 = sadd.s32 %s9, 1
    %s17 = ssub.s32 %s9, %s16
    %p18 = scmp.eq.s32.totalorder %s17, 0
    %s20 = sadd.s32 %s19, 1
    %s21 = scalar_select %p18, %s19, %s20
    %p24 = pneg %p18
    %p25 = scmp.eq.s32.totalorder %s9, 1
    %p26 = por %p24, %p25
    %p27 = scmp.ne.s32.totalorder %s19, %s22
    %p28 = scmp.eq.s32.totalorder %s9, 0
    %p29 = por %p27, %p28
    %p30 = scmp.ne.s32.totalorder %s19, %s22
    %p31 = scmp.eq.s32.totalorder %s14, 1
    %p32 = por %p30, %p31
    %p33 = scmp.ne.s32.totalorder %s22, %s23
    %p34 = scmp.eq.s32.totalorder %s14, 0
    %p35 = por %p33, %p34
    %p36 = scmp.ne.s32.totalorder %s22, %s23
    %p37 = scmp.eq.s32.totalorder %s15, 1
    %p38 = por %p36, %p37
    %p40 = scmp.ne.s32.totalorder %s23, %s39
    %p41 = scmp.eq.s32.totalorder %s15, 0
    %p42 = por %p40, %p41
    %s44 = sadd.s32 %s43, 1
    %p47 = scmp.eq.s32.totalorder %s9, 1
    %p48 = scmp.ne.s32.totalorder %s43, %s45
    %p49 = scmp.eq.s32.totalorder %s9, 0
    %p50 = por %p48, %p49
    %p51 = scmp.ne.s32.totalorder %s43, %s45
    %p52 = scmp.eq.s32.totalorder %s14, 1
    %p53 = por %p51, %p52
    %p54 = scmp.ne.s32.totalorder %s45, %s46
    %p55 = scmp.eq.s32.totalorder %s14, 0
    %p56 = por %p54, %p55
    %p57 = scmp.ne.s32.totalorder %s45, %s46
    %p58 = scmp.eq.s32.totalorder %s15, 1
    %p59 = por %p57, %p58
    %p61 = scmp.ne.s32.totalorder %s46, %s60
    %p62 = scmp.eq.s32.totalorder %s15, 0
    %p63 = por %p61, %p62
    %s65 = sadd.s32 %s64, 1
    %p68 = scmp.eq.s32.totalorder %s9, 1
    %p69 = scmp.ne.s32.totalorder %s64, %s66
    %p70 = scmp.eq.s32.totalorder %s9, 0
    %p71 = por %p69, %p70
    %p72 = scmp.ne.s32.totalorder %s64, %s66
    %p73 = scmp.eq.s32.totalorder %s14, 1
    %p74 = por %p72, %p73
    %p75 = scmp.ne.s32.totalorder %s66, %s67
    %p76 = scmp.eq.s32.totalorder %s14, 0
    %p77 = por %p75, %p76
    %p78 = scmp.ne.s32.totalorder %s66, %s67
    %p79 = scmp.eq.s32.totalorder %s15, 1
    %p80 = por %p78, %p79
    %p82 = scmp.ne.s32.totalorder %s67, %s81
    %p83 = scmp.eq.s32.totalorder %s15, 0
    %p84 = por %p82, %p83
    %s85 = ssub.s32 %s9, %s16
    %p86 = scmp.eq.s32.totalorder %s85, 0
    %s88 = sadd.s32 %s87, 1
    %s89 = scalar_select %p86, %s87, %s88
    %p92 = pneg %p86
    %p93 = scmp.eq.s32.totalorder %s9, 1
    %p94 = por %p92, %p93
    %p95 = scmp.ne.s32.totalorder %s87, %s90
    %p96 = scmp.eq.s32.totalorder %s9, 0
    %p97 = por %p95, %p96
    %p98 = scmp.ne.s32.totalorder %s87, %s90
    %p99 = scmp.eq.s32.totalorder %s14, 1
    %p100 = por %p98, %p99
    %p101 = scmp.ne.s32.totalorder %s90, %s91
    %p102 = scmp.eq.s32.totalorder %s14, 0
    %p103 = por %p101, %p102
    %p104 = scmp.ne.s32.totalorder %s90, %s91
    %p105 = scmp.eq.s32.totalorder %s15, 1
    %p106 = por %p104, %p105
    %p108 = scmp.ne.s32.totalorder %s91, %s107
    %p109 = scmp.eq.s32.totalorder %s15, 0
    %p110 = por %p108, %p109
    %p111 = scmp.le.s32.totalorder 1, %s9
    %p112 = scmp.lt.s32.totalorder %s9, 3
    %p113 = pnand %p111, %p112
    %p114 = pneg %p113
    // Predicated region
    $region9: #{discriminator_forward.5} parent=5 // pred_check
      _
    $region10: #{discriminator_forward.5} parent=5 // pred_check_branch
      %116 = sbr.rel (%p113) target = $region12
    $region11: #{discriminator_forward.5} parent=5 // pred_region
      %s117 = ssub.s32 %s9, 1
      // Predicated region
      $region13: #{discriminator_forward.5} parent=11 // pred_check
        %p118 = pneg %p56
      $region14: #{discriminator_forward.5} parent=11 // pred_check_branch
        %120 = sbr.rel (%p118) target = $region16
      $region15: #{discriminator_forward.5} parent=11 // pred_region
        _
      $region16: #{discriminator_forward.5} parent=11 // pred_fallthru
        _
      // Predicated region
      $region17: #{discriminator_forward.5} parent=11 // pred_check
        %p121 = pneg %p77
      $region18: #{discriminator_forward.5} parent=11 // pred_check_branch
        %123 = sbr.rel (%p121) target = $region20
      $region19: #{discriminator_forward.5} parent=11 // pred_region
        _
      $region20: #{discriminator_forward.5} parent=11 // pred_fallthru
        _
    $region12: #{discriminator_forward.5} parent=5 // pred_fallthru
      _
    %p124 = scmp.lt.s32.totalorder %s9, 2
    // Predicated region
    $region21: #{discriminator_forward.5} parent=5 // pred_check
      %p125 = pneg %p124
    $region22: #{discriminator_forward.5} parent=5 // pred_check_branch
      %127 = sbr.rel (%p125) target = $region24
    $region23: #{discriminator_forward.5} parent=5 // pred_region
      // Predicated region
      $region25: #{discriminator_forward.5} parent=23 // pred_check
        %p128 = pneg %p29
      $region26: #{discriminator_forward.5} parent=23 // pred_check_branch
        %130 = sbr.rel (%p128) target = $region28
      $region27: #{discriminator_forward.5} parent=23 // pred_region
        %s131 = smul.u32 64, %s9
        %p132 = scmp.lt.s32.totalorder %s131, 127
        %s133 = scalar_select %p132, %s131, 127
        %s134 = smul.addr %s133, 4
        %s135 = scalar_lea.vmem %s0, %s134
        %s136 = smul.u32 64, %s9
      $region28: #{discriminator_forward.5} parent=23 // pred_fallthru
        _
    $region24: #{discriminator_forward.5} parent=5 // pred_fallthru
      _
    %p137 = scmp.le.s32.totalorder 1, %s9
    %p138 = scmp.lt.s32.totalorder %s9, 3
    %p139 = pnand %p137, %p138
    %p140 = pneg %p139
    // Predicated region
    $region29: #{discriminator_forward.5} parent=5 // pred_check
      _
    $region30: #{discriminator_forward.5} parent=5 // pred_check_branch
      %142 = sbr.rel (%p139) target = $region32
    $region31: #{discriminator_forward.5} parent=5 // pred_region
      %s143 = ssub.s32 %s9, 1
      %s144 = smul.u32 64, %s14
      %p145 = scmp.lt.s32.totalorder %s144, 127
      %s146 = scalar_select %p145, %s144, 127
      %s147 = smul.addr %s146, 4
      %s148 = scalar_lea.vmem %s0, %s147
      %p149 = pneg %p35
      %p150 = pneg %p32
      %p151 = pneg %p56
      %p152 = pneg %p53
      %p153 = pneg %p77
      %p154 = pneg %p74
      %p155 = pneg %p103
      %p156 = pneg %p100
      %s157 = smul.u32 64, %s14
      %p158 = scmp.lt.s32.totalorder %s157, 127
      %s159 = scalar_select %p158, %s157, 127
      %s160 = smul.addr %s159, 4
      %s161 = scalar_lea.vmem %s3, %s160
      %s162 = smul.u32 64, %s14
      %p163 = scmp.lt.s32.totalorder %s162, 127
      %s164 = scalar_select %p163, %s162, 127
      %s165 = smul.addr %s164, 4
      %s166 = scalar_lea.vmem %s0, %s165
      %s167 = smul.u32 64, %s14
      %s168 = smul.u32 64, %s14
      %p169 = scmp.lt.s32.totalorder %s168, 127
      %s170 = scalar_select %p169, %s168, 127
      %s171 = smul.addr %s170, 4
      %s172 = scalar_lea.vmem %s3, %s171
      %s173 = smul.u32 64, %s14
      %v175 = vld [vmem:[%s166] sm:$0xf]
      %v176 = vld [vmem:[%s166 + $0x4] sm:$0xf]
      %v177 = vld [vmem:[%s166 + $0x8] sm:$0xf]
      %v178 = vld [vmem:[%s166 + $0xc] sm:$0xf]
      %v179 = vld [vmem:[%s166 + $0x10] sm:$0xf]
      %v180 = vld [vmem:[%s166 + $0x14] sm:$0xf]
      %v181 = vld [vmem:[%s166 + $0x18] sm:$0xf]
      %v182 = vld [vmem:[%s166 + $0x1c] sm:$0xf]
      %v183 = vld [vmem:[%s166 + $0x20] sm:$0xf]
      %v184 = vld [vmem:[%s166 + $0x24] sm:$0xf]
      %v185 = vld [vmem:[%s166 + $0x28] sm:$0xf]
      %v186 = vld [vmem:[%s166 + $0x2c] sm:$0xf]
      %v187 = vld [vmem:[%s166 + $0x30] sm:$0xf]
      %v188 = vld [vmem:[%s166 + $0x34] sm:$0xf]
      %v189 = vld [vmem:[%s166 + $0x38] sm:$0xf]
      %v190 = vld [vmem:[%s166 + $0x3c] sm:$0xf]
      %v191 = vld [vmem:[%s166 + $0x40] sm:$0xf]
      %v192 = vld [vmem:[%s166 + $0x44] sm:$0xf]
      %v193 = vld [vmem:[%s166 + $0x48] sm:$0xf]
      %v194 = vld [vmem:[%s166 + $0x4c] sm:$0xf]
      %v195 = vld [vmem:[%s166 + $0x50] sm:$0xf]
      %v196 = vld [vmem:[%s166 + $0x54] sm:$0xf]
      %v197 = vld [vmem:[%s166 + $0x58] sm:$0xf]
      %v198 = vld [vmem:[%s166 + $0x5c] sm:$0xf]
      %v199 = vld [vmem:[%s166 + $0x60] sm:$0xf]
      %v200 = vld [vmem:[%s166 + $0x64] sm:$0xf]
      %v201 = vld [vmem:[%s166 + $0x68] sm:$0xf]
      %v202 = vld [vmem:[%s166 + $0x6c] sm:$0xf]
      %v203 = vld [vmem:[%s166 + $0x70] sm:$0xf]
      %v204 = vld [vmem:[%s166 + $0x74] sm:$0xf]
      %v205 = vld [vmem:[%s166 + $0x78] sm:$0xf]
      %v206 = vld [vmem:[%s166 + $0x7c] sm:$0xf]
      %v207 = vld [vmem:[%s166 + $0x80] sm:$0xf]
      %v208 = vld [vmem:[%s166 + $0x84] sm:$0xf]
      %v209 = vld [vmem:[%s166 + $0x88] sm:$0xf]
      %v210 = vld [vmem:[%s166 + $0x8c] sm:$0xf]
      %v211 = vld [vmem:[%s166 + $0x90] sm:$0xf]
      %v212 = vld [vmem:[%s166 + $0x94] sm:$0xf]
      %v213 = vld [vmem:[%s166 + $0x98] sm:$0xf]
      %v214 = vld [vmem:[%s166 + $0x9c] sm:$0xf]
      %v215 = vld [vmem:[%s166 + $0xa0] sm:$0xf]
      %v216 = vld [vmem:[%s166 + $0xa4] sm:$0xf]
      %v217 = vld [vmem:[%s166 + $0xa8] sm:$0xf]
      %v218 = vld [vmem:[%s166 + $0xac] sm:$0xf]
      %v219 = vld [vmem:[%s166 + $0xb0] sm:$0xf]
      %v220 = vld [vmem:[%s166 + $0xb4] sm:$0xf]
      %v221 = vld [vmem:[%s166 + $0xb8] sm:$0xf]
      %v222 = vld [vmem:[%s166 + $0xbc] sm:$0xf]
      %v223 = vld [vmem:[%s166 + $0xc0] sm:$0xf]
      %v224 = vld [vmem:[%s166 + $0xc4] sm:$0xf]
      %v225 = vld [vmem:[%s166 + $0xc8] sm:$0xf]
      %v226 = vld [vmem:[%s166 + $0xcc] sm:$0xf]
      %v227 = vld [vmem:[%s166 + $0xd0] sm:$0xf]
      %v228 = vld [vmem:[%s166 + $0xd4] sm:$0xf]
      %v229 = vld [vmem:[%s166 + $0xd8] sm:$0xf]
      %v230 = vld [vmem:[%s166 + $0xdc] sm:$0xf]
      %v231 = vld [vmem:[%s166 + $0xe0] sm:$0xf]
      %v232 = vld [vmem:[%s166 + $0xe4] sm:$0xf]
      %v233 = vld [vmem:[%s166 + $0xe8] sm:$0xf]
      %v234 = vld [vmem:[%s166 + $0xec] sm:$0xf]
      %v235 = vld [vmem:[%s166 + $0xf0] sm:$0xf]
      %v236 = vld [vmem:[%s166 + $0xf4] sm:$0xf]
      %v237 = vld [vmem:[%s166 + $0xf8] sm:$0xf]
      %v238 = vld [vmem:[%s166 + $0xfc] sm:$0xf]
      %v239 = vld [vmem:[%s1] sm:$0xf]
      %v240 = vld [vmem:[%s1 + $0x4] sm:$0xf]
      %v241 = vld [vmem:[%s1 + $0x8] sm:$0xf]
      %v242 = vld [vmem:[%s1 + $0xc] sm:$0xf]
      %v243 = vld [vmem:[%s1 + $0x10] sm:$0xf]
      %v244 = vld [vmem:[%s1 + $0x14] sm:$0xf]
      %v245 = vld [vmem:[%s1 + $0x18] sm:$0xf]
      %v246 = vld [vmem:[%s1 + $0x1c] sm:$0xf]
      %v247 = vld [vmem:[%s1 + $0x20] sm:$0xf]
      %v248 = vld [vmem:[%s1 + $0x24] sm:$0xf]
      %v249 = vld [vmem:[%s1 + $0x28] sm:$0xf]
      %v250 = vld [vmem:[%s1 + $0x2c] sm:$0xf]
      %v251 = vld [vmem:[%s1 + $0x30] sm:$0xf]
      %v252 = vld [vmem:[%s1 + $0x34] sm:$0xf]
      %v253 = vld [vmem:[%s1 + $0x38] sm:$0xf]
      %v254 = vld [vmem:[%s1 + $0x3c] sm:$0xf]
      %v255 = vld [vmem:[%s2] sm:$0x1]
      %v256 = vlaneseq
      %v257 = vshrl.u32 %v256, 7
      %v258 = vsub.s32 0, %v257
      %v259 = vrot.slane %v255, %v258
      %v324 = vunpack.c.l.b16 %v175
      %v325 = vunpack.c.l.b16 %v176
      %v326 = vunpack.c.l.b16 %v177
      %v327 = vunpack.c.l.b16 %v178
      %v328 = vunpack.c.l.b16 %v179
      %v329 = vunpack.c.l.b16 %v180
      %v330 = vunpack.c.l.b16 %v181
      %v331 = vunpack.c.l.b16 %v182
      %v332 = vunpack.c.l.b16 %v183
      %v333 = vunpack.c.l.b16 %v184
      %v334 = vunpack.c.l.b16 %v185
      %v335 = vunpack.c.l.b16 %v186
      %v336 = vunpack.c.l.b16 %v187
      %v337 = vunpack.c.l.b16 %v188
      %v338 = vunpack.c.l.b16 %v189
      %v339 = vunpack.c.l.b16 %v190
      %v340 = vunpack.c.l.b16 %v191
      %v341 = vunpack.c.l.b16 %v192
      %v342 = vunpack.c.l.b16 %v193
      %v343 = vunpack.c.l.b16 %v194
      %v344 = vunpack.c.l.b16 %v195
      %v345 = vunpack.c.l.b16 %v196
      %v346 = vunpack.c.l.b16 %v197
      %v347 = vunpack.c.l.b16 %v198
      %v348 = vunpack.c.l.b16 %v199
      %v349 = vunpack.c.l.b16 %v200
      %v350 = vunpack.c.l.b16 %v201
      %v351 = vunpack.c.l.b16 %v202
      %v352 = vunpack.c.l.b16 %v203
      %v353 = vunpack.c.l.b16 %v204
      %v354 = vunpack.c.l.b16 %v205
      %v355 = vunpack.c.l.b16 %v206
      %v356 = vunpack.c.l.b16 %v207
      %v357 = vunpack.c.l.b16 %v208
      %v358 = vunpack.c.l.b16 %v209
      %v359 = vunpack.c.l.b16 %v210
      %v360 = vunpack.c.l.b16 %v211
      %v361 = vunpack.c.l.b16 %v212
      %v362 = vunpack.c.l.b16 %v213
      %v363 = vunpack.c.l.b16 %v214
      %v364 = vunpack.c.l.b16 %v215
      %v365 = vunpack.c.l.b16 %v216
      %v366 = vunpack.c.l.b16 %v217
      %v367 = vunpack.c.l.b16 %v218
      %v368 = vunpack.c.l.b16 %v219
      %v369 = vunpack.c.l.b16 %v220
      %v370 = vunpack.c.l.b16 %v221
      %v371 = vunpack.c.l.b16 %v222
      %v372 = vunpack.c.l.b16 %v223
      %v373 = vunpack.c.l.b16 %v224
      %v374 = vunpack.c.l.b16 %v225
      %v375 = vunpack.c.l.b16 %v226
      %v376 = vunpack.c.l.b16 %v227
      %v377 = vunpack.c.l.b16 %v228
      %v378 = vunpack.c.l.b16 %v229
      %v379 = vunpack.c.l.b16 %v230
      %v380 = vunpack.c.l.b16 %v231
      %v381 = vunpack.c.l.b16 %v232
      %v382 = vunpack.c.l.b16 %v233
      %v383 = vunpack.c.l.b16 %v234
      %v384 = vunpack.c.l.b16 %v235
      %v385 = vunpack.c.l.b16 %v236
      %v386 = vunpack.c.l.b16 %v237
      %v387 = vunpack.c.l.b16 %v238
      %v388 = vpack.c.b16 %v325, %v324
      %v389 = vpack.c.b16 %v327, %v326
      %v390 = vpack.c.b16 %v329, %v328
      %v391 = vpack.c.b16 %v331, %v330
      %v392 = vpack.c.b16 %v333, %v332
      %v393 = vpack.c.b16 %v335, %v334
      %v394 = vpack.c.b16 %v337, %v336
      %v395 = vpack.c.b16 %v339, %v338
      %v396 = vpack.c.b16 %v341, %v340
      %v397 = vpack.c.b16 %v343, %v342
      %v398 = vpack.c.b16 %v345, %v344
      %v399 = vpack.c.b16 %v347, %v346
      %v400 = vpack.c.b16 %v349, %v348
      %v401 = vpack.c.b16 %v351, %v350
      %v402 = vpack.c.b16 %v353, %v352
      %v403 = vpack.c.b16 %v355, %v354
      %v404 = vpack.c.b16 %v357, %v356
      %v405 = vpack.c.b16 %v359, %v358
      %v406 = vpack.c.b16 %v361, %v360
      %v407 = vpack.c.b16 %v363, %v362
      %v408 = vpack.c.b16 %v365, %v364
      %v409 = vpack.c.b16 %v367, %v366
      %v410 = vpack.c.b16 %v369, %v368
      %v411 = vpack.c.b16 %v371, %v370
      %v412 = vpack.c.b16 %v373, %v372
      %v413 = vpack.c.b16 %v375, %v374
      %v414 = vpack.c.b16 %v377, %v376
      %v415 = vpack.c.b16 %v379, %v378
      %v416 = vpack.c.b16 %v381, %v380
      %v417 = vpack.c.b16 %v383, %v382
      %v418 = vpack.c.b16 %v385, %v384
      %v419 = vpack.c.b16 %v387, %v386
      %v468 = vunpack.c.l.b16 %v239
      %v469 = vunpack.c.l.b16 %v240
      %v470 = vunpack.c.l.b16 %v241
      %v471 = vunpack.c.l.b16 %v242
      %v472 = vunpack.c.l.b16 %v243
      %v473 = vunpack.c.l.b16 %v244
      %v474 = vunpack.c.l.b16 %v245
      %v475 = vunpack.c.l.b16 %v246
      %v476 = vunpack.c.l.b16 %v247
      %v477 = vunpack.c.l.b16 %v248
      %v478 = vunpack.c.l.b16 %v249
      %v479 = vunpack.c.l.b16 %v250
      %v480 = vunpack.c.l.b16 %v251
      %v481 = vunpack.c.l.b16 %v252
      %v482 = vunpack.c.l.b16 %v253
      %v483 = vunpack.c.l.b16 %v254
      %v484 = vpack.c.b16 %v469, %v468
      %v485 = vpack.c.b16 %v471, %v470
      %v486 = vpack.c.b16 %v473, %v472
      %v487 = vpack.c.b16 %v475, %v474
      %v488 = vpack.c.b16 %v477, %v476
      %v489 = vpack.c.b16 %v479, %v478
      %v490 = vpack.c.b16 %v481, %v480
      %v491 = vpack.c.b16 %v483, %v482
      %500 = vmatprep.subr.bf16.mxu0 0
      %501 = vmatpush1.bf16.msra.mxu0 %v484
      %502 = vmatprep.subr.bf16.mxu0 0
      %503 = vmatpush1.bf16.msra.mxu0 %v485
      %504 = vmatprep.subr.bf16.mxu0 0
      %505 = vmatpush1.bf16.msra.mxu0 %v486
      %506 = vmatprep.subr.bf16.mxu0 0
      %507 = vmatpush1.bf16.msra.mxu0 %v487
      %508 = vmatprep.subr.bf16.mxu0 0
      %509 = vmatpush1.bf16.msra.mxu0 %v488
      %510 = vmatprep.subr.bf16.mxu0 0
      %511 = vmatpush1.bf16.msra.mxu0 %v489
      %512 = vmatprep.subr.bf16.mxu0 0
      %513 = vmatpush1.bf16.msra.mxu0 %v490
      %514 = vmatprep.subr.bf16.mxu0 0
      %515 = vmatpush1.bf16.msra.mxu0 %v491
      %516 = vmatprep.subr.bf16.mxu0 0
      %517 = vmatpush1.bf16.msra.mxu0 0
      %518 = vmatprep.subr.bf16.mxu0 0
      %519 = vmatpush1.bf16.msra.mxu0 0
      %520 = vmatprep.subr.bf16.mxu0 0
      %521 = vmatpush1.bf16.msra.mxu0 0
      %522 = vmatprep.subr.bf16.mxu0 0
      %523 = vmatpush1.bf16.msra.mxu0 0
      %524 = vmatprep.subr.bf16.mxu0 0
      %525 = vmatpush1.bf16.msra.mxu0 0
      %526 = vmatprep.subr.bf16.mxu0 0
      %527 = vmatpush1.bf16.msra.mxu0 0
      %528 = vmatprep.subr.bf16.mxu0 0
      %529 = vmatpush1.bf16.msra.mxu0 0
      %530 = vmatprep.subr.bf16.mxu0 0
      %531 = vmatpush1.bf16.msra.mxu0 0
      %532 = vmatprep.mubr.bf16.mxu0 0
      %533 = vmatmul.mubr.bf16.gmra.mrb[0].mxu0 %v388
      %v534 = vpop.f32.mrb[0].mxu0
      %v535 = vadd.f32 %v259, %v534
      %v536 = vpop.f32.mrb[0].mxu0
      %v537 = vpop.f32.mrb[0].mxu0
      %v538 = vadd.f32 %v259, %v537
      %v539 = vpop.f32.mrb[0].mxu0
      %540 = vmatprep.mubr.bf16.mxu0 0
      %541 = vmatmul.mubr.bf16.gmra.mrb[0].mxu0 %v389
      %v542 = vpop.f32.mrb[0].mxu0
      %v543 = vadd.f32 %v259, %v542
      %v544 = vpop.f32.mrb[0].mxu0
      %v545 = vpop.f32.mrb[0].mxu0
      %v546 = vadd.f32 %v259, %v545
      %v547 = vpop.f32.mrb[0].mxu0
      %548 = vmatprep.mubr.bf16.mxu0 0
      %549 = vmatmul.mubr.bf16.gmra.mrb[0].mxu0 %v390
      %v550 = vpop.f32.mrb[0].mxu0
      %v551 = vadd.f32 %v259, %v550
      %v552 = vpop.f32.mrb[0].mxu0
      %v553 = vpop.f32.mrb[0].mxu0
      %v554 = vadd.f32 %v259, %v553
      %v555 = vpop.f32.mrb[0].mxu0
      %556 = vmatprep.mubr.bf16.mxu0 0
      %557 = vmatmul.mubr.bf16.gmra.mrb[0].mxu0 %v391
      %v558 = vpop.f32.mrb[0].mxu0
      %v559 = vadd.f32 %v259, %v558
      %v560 = vpop.f32.mrb[0].mxu0
      %v561 = vpop.f32.mrb[0].mxu0
      %v562 = vadd.f32 %v259, %v561
      %v563 = vpop.f32.mrb[0].mxu0
      %564 = vmatprep.mubr.bf16.mxu0 0
      %565 = vmatmul.mubr.bf16.gmra.mrb[0].mxu0 %v392
      %v566 = vpop.f32.mrb[0].mxu0
      %v567 = vadd.f32 %v259, %v566
      %v568 = vpop.f32.mrb[0].mxu0
      %v569 = vpop.f32.mrb[0].mxu0
      %v570 = vadd.f32 %v259, %v569
      %v571 = vpop.f32.mrb[0].mxu0
      %572 = vmatprep.mubr.bf16.mxu0 0
      %573 = vmatmul.mubr.bf16.gmra.mrb[0].mxu0 %v393
      %v574 = vpop.f32.mrb[0].mxu0
      %v575 = vadd.f32 %v259, %v574
      %v576 = vpop.f32.mrb[0].mxu0
      %v577 = vpop.f32.mrb[0].mxu0
      %v578 = vadd.f32 %v259, %v577
      %v579 = vpop.f32.mrb[0].mxu0
      %580 = vmatprep.mubr.bf16.mxu0 0
      %581 = vmatmul.mubr.bf16.gmra.mrb[0].mxu0 %v394
      %v582 = vpop.f32.mrb[0].mxu0
      %v583 = vadd.f32 %v259, %v582
      %v584 = vpop.f32.mrb[0].mxu0
      %v585 = vpop.f32.mrb[0].mxu0
      %v586 = vadd.f32 %v259, %v585
      %v587 = vpop.f32.mrb[0].mxu0
      %588 = vmatprep.mubr.bf16.mxu0 0
      %589 = vmatmul.mubr.bf16.gmra.mrb[0].mxu0 %v395
      %v590 = vpop.f32.mrb[0].mxu0
      %v591 = vadd.f32 %v259, %v590
      %v592 = vpop.f32.mrb[0].mxu0
      %v593 = vpop.f32.mrb[0].mxu0
      %v594 = vadd.f32 %v259, %v593
      %v595 = vpop.f32.mrb[0].mxu0
      %596 = vmatprep.mubr.bf16.mxu0 0
      %597 = vmatmul.mubr.bf16.gmra.mrb[0].mxu0 %v396
      %v598 = vpop.f32.mrb[0].mxu0
      %v599 = vadd.f32 %v259, %v598
      %v600 = vpop.f32.mrb[0].mxu0
      %v601 = vpop.f32.mrb[0].mxu0
      %v602 = vadd.f32 %v259, %v601
      %v603 = vpop.f32.mrb[0].mxu0
      %604 = vmatprep.mubr.bf16.mxu0 0
      %605 = vmatmul.mubr.bf16.gmra.mrb[0].mxu0 %v397
      %v606 = vpop.f32.mrb[0].mxu0
      %v607 = vadd.f32 %v259, %v606
      %v608 = vpop.f32.mrb[0].mxu0
      %v609 = vpop.f32.mrb[0].mxu0
      %v610 = vadd.f32 %v259, %v609
      %v611 = vpop.f32.mrb[0].mxu0
      %612 = vmatprep.mubr.bf16.mxu0 0
      %613 = vmatmul.mubr.bf16.gmra.mrb[0].mxu0 %v398
      %v614 = vpop.f32.mrb[0].mxu0
      %v615 = vadd.f32 %v259, %v614
      %v616 = vpop.f32.mrb[0].mxu0
      %v617 = vpop.f32.mrb[0].mxu0
      %v618 = vadd.f32 %v259, %v617
      %v619 = vpop.f32.mrb[0].mxu0
      %620 = vmatprep.mubr.bf16.mxu0 0
      %621 = vmatmul.mubr.bf16.gmra.mrb[0].mxu0 %v399
      %v622 = vpop.f32.mrb[0].mxu0
      %v623 = vadd.f32 %v259, %v622
      %v624 = vpop.f32.mrb[0].mxu0
      %v625 = vpop.f32.mrb[0].mxu0
      %v626 = vadd.f32 %v259, %v625
      %v627 = vpop.f32.mrb[0].mxu0
      %628 = vmatprep.mubr.bf16.mxu0 0
      %629 = vmatmul.mubr.bf16.gmra.mrb[0].mxu0 %v400
      %v630 = vpop.f32.mrb[0].mxu0
      %v631 = vadd.f32 %v259, %v630
      %v632 = vpop.f32.mrb[0].mxu0
      %v633 = vpop.f32.mrb[0].mxu0
      %v634 = vadd.f32 %v259, %v633
      %v635 = vpop.f32.mrb[0].mxu0
      %636 = vmatprep.mubr.bf16.mxu0 0
      %637 = vmatmul.mubr.bf16.gmra.mrb[0].mxu0 %v401
      %v638 = vpop.f32.mrb[0].mxu0
      %v639 = vadd.f32 %v259, %v638
      %v640 = vpop.f32.mrb[0].mxu0
      %v641 = vpop.f32.mrb[0].mxu0
      %v642 = vadd.f32 %v259, %v641
      %v643 = vpop.f32.mrb[0].mxu0
      %644 = vmatprep.mubr.bf16.mxu0 0
      %645 = vmatmul.mubr.bf16.gmra.mrb[0].mxu0 %v402
      %v646 = vpop.f32.mrb[0].mxu0
      %v647 = vadd.f32 %v259, %v646
      %v648 = vpop.f32.mrb[0].mxu0
      %v649 = vpop.f32.mrb[0].mxu0
      %v650 = vadd.f32 %v259, %v649
      %v651 = vpop.f32.mrb[0].mxu0
      %652 = vmatprep.mubr.bf16.mxu0 0
      %653 = vmatmul.mubr.bf16.gmra.mrb[0].mxu0 %v403
      %v654 = vpop.f32.mrb[0].mxu0
      %v655 = vadd.f32 %v259, %v654
      %v656 = vpop.f32.mrb[0].mxu0
      %v657 = vpop.f32.mrb[0].mxu0
      %v658 = vadd.f32 %v259, %v657
      %v659 = vpop.f32.mrb[0].mxu0
      %660 = vmatprep.mubr.bf16.mxu0 0
      %661 = vmatmul.mubr.bf16.gmra.mrb[0].mxu0 %v404
      %v662 = vpop.f32.mrb[0].mxu0
      %v663 = vadd.f32 %v259, %v662
      %v664 = vpop.f32.mrb[0].mxu0
      %v665 = vpop.f32.mrb[0].mxu0
      %v666 = vadd.f32 %v259, %v665
      %v667 = vpop.f32.mrb[0].mxu0
      %668 = vmatprep.mubr.bf16.mxu0 0
      %669 = vmatmul.mubr.bf16.gmra.mrb[0].mxu0 %v405
      %v670 = vpop.f32.mrb[0].mxu0
      %v671 = vadd.f32 %v259, %v670
      %v672 = vpop.f32.mrb[0].mxu0
      %v673 = vpop.f32.mrb[0].mxu0
      %v674 = vadd.f32 %v259, %v673
      %v675 = vpop.f32.mrb[0].mxu0
      %676 = vmatprep.mubr.bf16.mxu0 0
      %677 = vmatmul.mubr.bf16.gmra.mrb[0].mxu0 %v406
      %v678 = vpop.f32.mrb[0].mxu0
      %v679 = vadd.f32 %v259, %v678
      %v680 = vpop.f32.mrb[0].mxu0
      %v681 = vpop.f32.mrb[0].mxu0
      %v682 = vadd.f32 %v259, %v681
      %v683 = vpop.f32.mrb[0].mxu0
      %684 = vmatprep.mubr.bf16.mxu0 0
      %685 = vmatmul.mubr.bf16.gmra.mrb[0].mxu0 %v407
      %v686 = vpop.f32.mrb[0].mxu0
      %v687 = vadd.f32 %v259, %v686
      %v688 = vpop.f32.mrb[0].mxu0
      %v689 = vpop.f32.mrb[0].mxu0
      %v690 = vadd.f32 %v259, %v689
      %v691 = vpop.f32.mrb[0].mxu0
      %692 = vmatprep.mubr.bf16.mxu0 0
      %693 = vmatmul.mubr.bf16.gmra.mrb[0].mxu0 %v408
      %v694 = vpop.f32.mrb[0].mxu0
      %v695 = vadd.f32 %v259, %v694
      %v696 = vpop.f32.mrb[0].mxu0
      %v697 = vpop.f32.mrb[0].mxu0
      %v698 = vadd.f32 %v259, %v697
      %v699 = vpop.f32.mrb[0].mxu0
      %700 = vmatprep.mubr.bf16.mxu0 0
      %701 = vmatmul.mubr.bf16.gmra.mrb[0].mxu0 %v409
      %v702 = vpop.f32.mrb[0].mxu0
      %v703 = vadd.f32 %v259, %v702
      %v704 = vpop.f32.mrb[0].mxu0
      %v705 = vpop.f32.mrb[0].mxu0
      %v706 = vadd.f32 %v259, %v705
      %v707 = vpop.f32.mrb[0].mxu0
      %708 = vmatprep.mubr.bf16.mxu0 0
      %709 = vmatmul.mubr.bf16.gmra.mrb[0].mxu0 %v410
      %v710 = vpop.f32.mrb[0].mxu0
      %v711 = vadd.f32 %v259, %v710
      %v712 = vpop.f32.mrb[0].mxu0
      %v713 = vpop.f32.mrb[0].mxu0
      %v714 = vadd.f32 %v259, %v713
      %v715 = vpop.f32.mrb[0].mxu0
      %716 = vmatprep.mubr.bf16.mxu0 0
      %717 = vmatmul.mubr.bf16.gmra.mrb[0].mxu0 %v411
      %v718 = vpop.f32.mrb[0].mxu0
      %v719 = vadd.f32 %v259, %v718
      %v720 = vpop.f32.mrb[0].mxu0
      %v721 = vpop.f32.mrb[0].mxu0
      %v722 = vadd.f32 %v259, %v721
      %v723 = vpop.f32.mrb[0].mxu0
      %724 = vmatprep.mubr.bf16.mxu0 0
      %725 = vmatmul.mubr.bf16.gmra.mrb[0].mxu0 %v412
      %v726 = vpop.f32.mrb[0].mxu0
      %v727 = vadd.f32 %v259, %v726
      %v728 = vpop.f32.mrb[0].mxu0
      %v729 = vpop.f32.mrb[0].mxu0
      %v730 = vadd.f32 %v259, %v729
      %v731 = vpop.f32.mrb[0].mxu0
      %732 = vmatprep.mubr.bf16.mxu0 0
      %733 = vmatmul.mubr.bf16.gmra.mrb[0].mxu0 %v413
      %v734 = vpop.f32.mrb[0].mxu0
      %v735 = vadd.f32 %v259, %v734
      %v736 = vpop.f32.mrb[0].mxu0
      %v737 = vpop.f32.mrb[0].mxu0
      %v738 = vadd.f32 %v259, %v737
      %v739 = vpop.f32.mrb[0].mxu0
      %740 = vmatprep.mubr.bf16.mxu0 0
      %741 = vmatmul.mubr.bf16.gmra.mrb[0].mxu0 %v414
      %v742 = vpop.f32.mrb[0].mxu0
      %v743 = vadd.f32 %v259, %v742
      %v744 = vpop.f32.mrb[0].mxu0
      %v745 = vpop.f32.mrb[0].mxu0
      %v746 = vadd.f32 %v259, %v745
      %v747 = vpop.f32.mrb[0].mxu0
      %748 = vmatprep.mubr.bf16.mxu0 0
      %749 = vmatmul.mubr.bf16.gmra.mrb[0].mxu0 %v415
      %v750 = vpop.f32.mrb[0].mxu0
      %v751 = vadd.f32 %v259, %v750
      %v752 = vpop.f32.mrb[0].mxu0
      %v753 = vpop.f32.mrb[0].mxu0
      %v754 = vadd.f32 %v259, %v753
      %v755 = vpop.f32.mrb[0].mxu0
      %756 = vmatprep.mubr.bf16.mxu0 0
      %757 = vmatmul.mubr.bf16.gmra.mrb[0].mxu0 %v416
      %v758 = vpop.f32.mrb[0].mxu0
      %v759 = vadd.f32 %v259, %v758
      %v760 = vpop.f32.mrb[0].mxu0
      %v761 = vpop.f32.mrb[0].mxu0
      %v762 = vadd.f32 %v259, %v761
      %v763 = vpop.f32.mrb[0].mxu0
      %764 = vmatprep.mubr.bf16.mxu0 0
      %765 = vmatmul.mubr.bf16.gmra.mrb[0].mxu0 %v417
      %v766 = vpop.f32.mrb[0].mxu0
      %v767 = vadd.f32 %v259, %v766
      %v768 = vpop.f32.mrb[0].mxu0
      %v769 = vpop.f32.mrb[0].mxu0
      %v770 = vadd.f32 %v259, %v769
      %v771 = vpop.f32.mrb[0].mxu0
      %772 = vmatprep.mubr.bf16.mxu0 0
      %773 = vmatmul.mubr.bf16.gmra.mrb[0].mxu0 %v418
      %v774 = vpop.f32.mrb[0].mxu0
      %v775 = vadd.f32 %v259, %v774
      %v776 = vpop.f32.mrb[0].mxu0
      %v777 = vpop.f32.mrb[0].mxu0
      %v778 = vadd.f32 %v259, %v777
      %v779 = vpop.f32.mrb[0].mxu0
      %780 = vmatprep.mubr.bf16.mxu0 0
      %781 = vmatmul.mubr.bf16.gmra.mrb[0].mxu0 %v419
      %v782 = vpop.f32.mrb[0].mxu0
      %v783 = vadd.f32 %v259, %v782
      %v784 = vpop.f32.mrb[0].mxu0
      %v785 = vpop.f32.mrb[0].mxu0
      %v786 = vadd.f32 %v259, %v785
      %v787 = vpop.f32.mrb[0].mxu0
      %788 = vdwg.mxu0
      %v789 = vmul.f32 %v535, 0.2
      %v790 = vmul.f32 %v538, 0.2
      %v791 = vmul.f32 %v543, 0.2
      %v792 = vmul.f32 %v546, 0.2
      %v793 = vmul.f32 %v551, 0.2
      %v794 = vmul.f32 %v554, 0.2
      %v795 = vmul.f32 %v559, 0.2
      %v796 = vmul.f32 %v562, 0.2
      %v797 = vmul.f32 %v567, 0.2
      %v798 = vmul.f32 %v570, 0.2
      %v799 = vmul.f32 %v575, 0.2
      %v800 = vmul.f32 %v578, 0.2
      %v801 = vmul.f32 %v583, 0.2
      %v802 = vmul.f32 %v586, 0.2
      %v803 = vmul.f32 %v591, 0.2
      %v804 = vmul.f32 %v594, 0.2
      %v805 = vmul.f32 %v599, 0.2
      %v806 = vmul.f32 %v602, 0.2
      %v807 = vmul.f32 %v607, 0.2
      %v808 = vmul.f32 %v610, 0.2
      %v809 = vmul.f32 %v615, 0.2
      %v810 = vmul.f32 %v618, 0.2
      %v811 = vmul.f32 %v623, 0.2
      %v812 = vmul.f32 %v626, 0.2
      %v813 = vmul.f32 %v631, 0.2
      %v814 = vmul.f32 %v634, 0.2
      %v815 = vmul.f32 %v639, 0.2
      %v816 = vmul.f32 %v642, 0.2
      %v817 = vmul.f32 %v647, 0.2
      %v818 = vmul.f32 %v650, 0.2
      %v819 = vmul.f32 %v655, 0.2
      %v820 = vmul.f32 %v658, 0.2
      %v821 = vmul.f32 %v663, 0.2
      %v822 = vmul.f32 %v666, 0.2
      %v823 = vmul.f32 %v671, 0.2
      %v824 = vmul.f32 %v674, 0.2
      %v825 = vmul.f32 %v679, 0.2
      %v826 = vmul.f32 %v682, 0.2
      %v827 = vmul.f32 %v687, 0.2
      %v828 = vmul.f32 %v690, 0.2
      %v829 = vmul.f32 %v695, 0.2
      %v830 = vmul.f32 %v698, 0.2
      %v831 = vmul.f32 %v703, 0.2
      %v832 = vmul.f32 %v706, 0.2
      %v833 = vmul.f32 %v711, 0.2
      %v834 = vmul.f32 %v714, 0.2
      %v835 = vmul.f32 %v719, 0.2
      %v836 = vmul.f32 %v722, 0.2
      %v837 = vmul.f32 %v727, 0.2
      %v838 = vmul.f32 %v730, 0.2
      %v839 = vmul.f32 %v735, 0.2
      %v840 = vmul.f32 %v738, 0.2
      %v841 = vmul.f32 %v743, 0.2
      %v842 = vmul.f32 %v746, 0.2
      %v843 = vmul.f32 %v751, 0.2
      %v844 = vmul.f32 %v754, 0.2
      %v845 = vmul.f32 %v759, 0.2
      %v846 = vmul.f32 %v762, 0.2
      %v847 = vmul.f32 %v767, 0.2
      %v848 = vmul.f32 %v770, 0.2
      %v849 = vmul.f32 %v775, 0.2
      %v850 = vmul.f32 %v778, 0.2
      %v851 = vmul.f32 %v783, 0.2
      %v852 = vmul.f32 %v786, 0.2
      %v853 = vmax.f32 %v535, %v789
      %v854 = vmax.f32 %v538, %v790
      %v855 = vmax.f32 %v543, %v791
      %v856 = vmax.f32 %v546, %v792
      %v857 = vmax.f32 %v551, %v793
      %v858 = vmax.f32 %v554, %v794
      %v859 = vmax.f32 %v559, %v795
      %v860 = vmax.f32 %v562, %v796
      %v861 = vmax.f32 %v567, %v797
      %v862 = vmax.f32 %v570, %v798
      %v863 = vmax.f32 %v575, %v799
      %v864 = vmax.f32 %v578, %v800
      %v865 = vmax.f32 %v583, %v801
      %v866 = vmax.f32 %v586, %v802
      %v867 = vmax.f32 %v591, %v803
      %v868 = vmax.f32 %v594, %v804
      %v869 = vmax.f32 %v599, %v805
      %v870 = vmax.f32 %v602, %v806
      %v871 = vmax.f32 %v607, %v807
      %v872 = vmax.f32 %v610, %v808
      %v873 = vmax.f32 %v615, %v809
      %v874 = vmax.f32 %v618, %v810
      %v875 = vmax.f32 %v623, %v811
      %v876 = vmax.f32 %v626, %v812
      %v877 = vmax.f32 %v631, %v813
      %v878 = vmax.f32 %v634, %v814
      %v879 = vmax.f32 %v639, %v815
      %v880 = vmax.f32 %v642, %v816
      %v881 = vmax.f32 %v647, %v817
      %v882 = vmax.f32 %v650, %v818
      %v883 = vmax.f32 %v655, %v819
      %v884 = vmax.f32 %v658, %v820
      %v885 = vmax.f32 %v663, %v821
      %v886 = vmax.f32 %v666, %v822
      %v887 = vmax.f32 %v671, %v823
      %v888 = vmax.f32 %v674, %v824
      %v889 = vmax.f32 %v679, %v825
      %v890 = vmax.f32 %v682, %v826
      %v891 = vmax.f32 %v687, %v827
      %v892 = vmax.f32 %v690, %v828
      %v893 = vmax.f32 %v695, %v829
      %v894 = vmax.f32 %v698, %v830
      %v895 = vmax.f32 %v703, %v831
      %v896 = vmax.f32 %v706, %v832
      %v897 = vmax.f32 %v711, %v833
      %v898 = vmax.f32 %v714, %v834
      %v899 = vmax.f32 %v719, %v835
      %v900 = vmax.f32 %v722, %v836
      %v901 = vmax.f32 %v727, %v837
      %v902 = vmax.f32 %v730, %v838
      %v903 = vmax.f32 %v735, %v839
      %v904 = vmax.f32 %v738, %v840
      %v905 = vmax.f32 %v743, %v841
      %v906 = vmax.f32 %v746, %v842
      %v907 = vmax.f32 %v751, %v843
      %v908 = vmax.f32 %v754, %v844
      %v909 = vmax.f32 %v759, %v845
      %v910 = vmax.f32 %v762, %v846
      %v911 = vmax.f32 %v767, %v847
      %v912 = vmax.f32 %v770, %v848
      %v913 = vmax.f32 %v775, %v849
      %v914 = vmax.f32 %v778, %v850
      %v915 = vmax.f32 %v783, %v851
      %v916 = vmax.f32 %v786, %v852
      %v917 = vld [vmem:[%s2 + $0x1] sm:$0x1]
      %v918 = vlaneseq
      %v919 = vshrl.u32 %v918, 7
      %v920 = vsub.s32 0, %v919
      %v921 = vrot.slane %v917, %v920
      %v922 = vmul.f32 %v853, %v921
      %v923 = vmul.f32 %v854, %v921
      %v924 = vmul.f32 %v855, %v921
      %v925 = vmul.f32 %v856, %v921
      %v926 = vmul.f32 %v857, %v921
      %v927 = vmul.f32 %v858, %v921
      %v928 = vmul.f32 %v859, %v921
      %v929 = vmul.f32 %v860, %v921
      %v930 = vmul.f32 %v861, %v921
      %v931 = vmul.f32 %v862, %v921
      %v932 = vmul.f32 %v863, %v921
      %v933 = vmul.f32 %v864, %v921
      %v934 = vmul.f32 %v865, %v921
      %v935 = vmul.f32 %v866, %v921
      %v936 = vmul.f32 %v867, %v921
      %v937 = vmul.f32 %v868, %v921
      %v938 = vmul.f32 %v869, %v921
      %v939 = vmul.f32 %v870, %v921
      %v940 = vmul.f32 %v871, %v921
      %v941 = vmul.f32 %v872, %v921
      %v942 = vmul.f32 %v873, %v921
      %v943 = vmul.f32 %v874, %v921
      %v944 = vmul.f32 %v875, %v921
      %v945 = vmul.f32 %v876, %v921
      %v946 = vmul.f32 %v877, %v921
      %v947 = vmul.f32 %v878, %v921
      %v948 = vmul.f32 %v879, %v921
      %v949 = vmul.f32 %v880, %v921
      %v950 = vmul.f32 %v881, %v921
      %v951 = vmul.f32 %v882, %v921
      %v952 = vmul.f32 %v883, %v921
      %v953 = vmul.f32 %v884, %v921
      %v954 = vmul.f32 %v885, %v921
      %v955 = vmul.f32 %v886, %v921
      %v956 = vmul.f32 %v887, %v921
      %v957 = vmul.f32 %v888, %v921
      %v958 = vmul.f32 %v889, %v921
      %v959 = vmul.f32 %v890, %v921
      %v960 = vmul.f32 %v891, %v921
      %v961 = vmul.f32 %v892, %v921
      %v962 = vmul.f32 %v893, %v921
      %v963 = vmul.f32 %v894, %v921
      %v964 = vmul.f32 %v895, %v921
      %v965 = vmul.f32 %v896, %v921
      %v966 = vmul.f32 %v897, %v921
      %v967 = vmul.f32 %v898, %v921
      %v968 = vmul.f32 %v899, %v921
      %v969 = vmul.f32 %v900, %v921
      %v970 = vmul.f32 %v901, %v921
      %v971 = vmul.f32 %v902, %v921
      %v972 = vmul.f32 %v903, %v921
      %v973 = vmul.f32 %v904, %v921
      %v974 = vmul.f32 %v905, %v921
      %v975 = vmul.f32 %v906, %v921
      %v976 = vmul.f32 %v907, %v921
      %v977 = vmul.f32 %v908, %v921
      %v978 = vmul.f32 %v909, %v921
      %v979 = vmul.f32 %v910, %v921
      %v980 = vmul.f32 %v911, %v921
      %v981 = vmul.f32 %v912, %v921
      %v982 = vmul.f32 %v913, %v921
      %v983 = vmul.f32 %v914, %v921
      %v984 = vmul.f32 %v915, %v921
      %v985 = vmul.f32 %v916, %v921
      %v986 = vld [vmem:[%s2 + $0x2] sm:$0x1]
      %v987 = vlaneseq
      %v988 = vshrl.u32 %v987, 7
      %v989 = vsub.s32 0, %v988
      %v990 = vrot.slane %v986, %v989
      %v991 = vadd.f32 %v922, %v990
      %v992 = vadd.f32 %v923, %v990
      %v993 = vadd.f32 %v924, %v990
      %v994 = vadd.f32 %v925, %v990
      %v995 = vadd.f32 %v926, %v990
      %v996 = vadd.f32 %v927, %v990
      %v997 = vadd.f32 %v928, %v990
      %v998 = vadd.f32 %v929, %v990
      %v999 = vadd.f32 %v930, %v990
      %v1000 = vadd.f32 %v931, %v990
      %v1001 = vadd.f32 %v932, %v990
      %v1002 = vadd.f32 %v933, %v990
      %v1003 = vadd.f32 %v934, %v990
      %v1004 = vadd.f32 %v935, %v990
      %v1005 = vadd.f32 %v936, %v990
      %v1006 = vadd.f32 %v937, %v990
      %v1007 = vadd.f32 %v938, %v990
      %v1008 = vadd.f32 %v939, %v990
      %v1009 = vadd.f32 %v940, %v990
      %v1010 = vadd.f32 %v941, %v990
      %v1011 = vadd.f32 %v942, %v990
      %v1012 = vadd.f32 %v943, %v990
      %v1013 = vadd.f32 %v944, %v990
      %v1014 = vadd.f32 %v945, %v990
      %v1015 = vadd.f32 %v946, %v990
      %v1016 = vadd.f32 %v947, %v990
      %v1017 = vadd.f32 %v948, %v990
      %v1018 = vadd.f32 %v949, %v990
      %v1019 = vadd.f32 %v950, %v990
      %v1020 = vadd.f32 %v951, %v990
      %v1021 = vadd.f32 %v952, %v990
      %v1022 = vadd.f32 %v953, %v990
      %v1023 = vadd.f32 %v954, %v990
      %v1024 = vadd.f32 %v955, %v990
      %v1025 = vadd.f32 %v956, %v990
      %v1026 = vadd.f32 %v957, %v990
      %v1027 = vadd.f32 %v958, %v990
      %v1028 = vadd.f32 %v959, %v990
      %v1029 = vadd.f32 %v960, %v990
      %v1030 = vadd.f32 %v961, %v990
      %v1031 = vadd.f32 %v962, %v990
      %v1032 = vadd.f32 %v963, %v990
      %v1033 = vadd.f32 %v964, %v990
      %v1034 = vadd.f32 %v965, %v990
      %v1035 = vadd.f32 %v966, %v990
      %v1036 = vadd.f32 %v967, %v990
      %v1037 = vadd.f32 %v968, %v990
      %v1038 = vadd.f32 %v969, %v990
      %v1039 = vadd.f32 %v970, %v990
      %v1040 = vadd.f32 %v971, %v990
      %v1041 = vadd.f32 %v972, %v990
      %v1042 = vadd.f32 %v973, %v990
      %v1043 = vadd.f32 %v974, %v990
      %v1044 = vadd.f32 %v975, %v990
      %v1045 = vadd.f32 %v976, %v990
      %v1046 = vadd.f32 %v977, %v990
      %v1047 = vadd.f32 %v978, %v990
      %v1048 = vadd.f32 %v979, %v990
      %v1049 = vadd.f32 %v980, %v990
      %v1050 = vadd.f32 %v981, %v990
      %v1051 = vadd.f32 %v982, %v990
      %v1052 = vadd.f32 %v983, %v990
      %v1053 = vadd.f32 %v984, %v990
      %v1054 = vadd.f32 %v985, %v990
      %v1055 = vpack.c.bf16 %v992, %v991
      %v1056 = vpack.c.bf16 %v994, %v993
      %v1057 = vpack.c.bf16 %v996, %v995
      %v1058 = vpack.c.bf16 %v998, %v997
      %v1059 = vpack.c.bf16 %v1000, %v999
      %v1060 = vpack.c.bf16 %v1002, %v1001
      %v1061 = vpack.c.bf16 %v1004, %v1003
      %v1062 = vpack.c.bf16 %v1006, %v1005
      %v1063 = vpack.c.bf16 %v1008, %v1007
      %v1064 = vpack.c.bf16 %v1010, %v1009
      %v1065 = vpack.c.bf16 %v1012, %v1011
      %v1066 = vpack.c.bf16 %v1014, %v1013
      %v1067 = vpack.c.bf16 %v1016, %v1015
      %v1068 = vpack.c.bf16 %v1018, %v1017
      %v1069 = vpack.c.bf16 %v1020, %v1019
      %v1070 = vpack.c.bf16 %v1022, %v1021
      %v1071 = vpack.c.bf16 %v1024, %v1023
      %v1072 = vpack.c.bf16 %v1026, %v1025
      %v1073 = vpack.c.bf16 %v1028, %v1027
      %v1074 = vpack.c.bf16 %v1030, %v1029
      %v1075 = vpack.c.bf16 %v1032, %v1031
      %v1076 = vpack.c.bf16 %v1034, %v1033
      %v1077 = vpack.c.bf16 %v1036, %v1035
      %v1078 = vpack.c.bf16 %v1038, %v1037
      %v1079 = vpack.c.bf16 %v1040, %v1039
      %v1080 = vpack.c.bf16 %v1042, %v1041
      %v1081 = vpack.c.bf16 %v1044, %v1043
      %v1082 = vpack.c.bf16 %v1046, %v1045
      %v1083 = vpack.c.bf16 %v1048, %v1047
      %v1084 = vpack.c.bf16 %v1050, %v1049
      %v1085 = vpack.c.bf16 %v1052, %v1051
      %v1086 = vpack.c.bf16 %v1054, %v1053
      %v1119 = vunpack.c.l.b16 %v1055
      %v1120 = vunpack.c.h.b16 %v1055
      %v1121 = vunpack.c.l.b16 %v1056
      %v1122 = vunpack.c.h.b16 %v1056
      %v1123 = vunpack.c.l.b16 %v1057
      %v1124 = vunpack.c.h.b16 %v1057
      %v1125 = vunpack.c.l.b16 %v1058
      %v1126 = vunpack.c.h.b16 %v1058
      %v1127 = vunpack.c.l.b16 %v1059
      %v1128 = vunpack.c.h.b16 %v1059
      %v1129 = vunpack.c.l.b16 %v1060
      %v1130 = vunpack.c.h.b16 %v1060
      %v1131 = vunpack.c.l.b16 %v1061
      %v1132 = vunpack.c.h.b16 %v1061
      %v1133 = vunpack.c.l.b16 %v1062
      %v1134 = vunpack.c.h.b16 %v1062
      %v1135 = vunpack.c.l.b16 %v1063
      %v1136 = vunpack.c.h.b16 %v1063
      %v1137 = vunpack.c.l.b16 %v1064
      %v1138 = vunpack.c.h.b16 %v1064
      %v1139 = vunpack.c.l.b16 %v1065
      %v1140 = vunpack.c.h.b16 %v1065
      %v1141 = vunpack.c.l.b16 %v1066
      %v1142 = vunpack.c.h.b16 %v1066
      %v1143 = vunpack.c.l.b16 %v1067
      %v1144 = vunpack.c.h.b16 %v1067
      %v1145 = vunpack.c.l.b16 %v1068
      %v1146 = vunpack.c.h.b16 %v1068
      %v1147 = vunpack.c.l.b16 %v1069
      %v1148 = vunpack.c.h.b16 %v1069
      %v1149 = vunpack.c.l.b16 %v1070
      %v1150 = vunpack.c.h.b16 %v1070
      %v1151 = vunpack.c.l.b16 %v1071
      %v1152 = vunpack.c.h.b16 %v1071
      %v1153 = vunpack.c.l.b16 %v1072
      %v1154 = vunpack.c.h.b16 %v1072
      %v1155 = vunpack.c.l.b16 %v1073
      %v1156 = vunpack.c.h.b16 %v1073
      %v1157 = vunpack.c.l.b16 %v1074
      %v1158 = vunpack.c.h.b16 %v1074
      %v1159 = vunpack.c.l.b16 %v1075
      %v1160 = vunpack.c.h.b16 %v1075
      %v1161 = vunpack.c.l.b16 %v1076
      %v1162 = vunpack.c.h.b16 %v1076
      %v1163 = vunpack.c.l.b16 %v1077
      %v1164 = vunpack.c.h.b16 %v1077
      %v1165 = vunpack.c.l.b16 %v1078
      %v1166 = vunpack.c.h.b16 %v1078
      %v1167 = vunpack.c.l.b16 %v1079
      %v1168 = vunpack.c.h.b16 %v1079
      %v1169 = vunpack.c.l.b16 %v1080
      %v1170 = vunpack.c.h.b16 %v1080
      %v1171 = vunpack.c.l.b16 %v1081
      %v1172 = vunpack.c.h.b16 %v1081
      %v1173 = vunpack.c.l.b16 %v1082
      %v1174 = vunpack.c.h.b16 %v1082
      %v1175 = vunpack.c.l.b16 %v1083
      %v1176 = vunpack.c.h.b16 %v1083
      %v1177 = vunpack.c.l.b16 %v1084
      %v1178 = vunpack.c.h.b16 %v1084
      %v1179 = vunpack.c.l.b16 %v1085
      %v1180 = vunpack.c.h.b16 %v1085
      %v1181 = vunpack.c.l.b16 %v1086
      %v1182 = vunpack.c.h.b16 %v1086
      %v1183 = vpack.c.b16 %v1119, %v1119
      %v1184 = vpack.c.b16 %v1120, %v1120
      %v1185 = vpack.c.b16 %v1121, %v1121
      %v1186 = vpack.c.b16 %v1122, %v1122
      %v1187 = vpack.c.b16 %v1123, %v1123
      %v1188 = vpack.c.b16 %v1124, %v1124
      %v1189 = vpack.c.b16 %v1125, %v1125
      %v1190 = vpack.c.b16 %v1126, %v1126
      %v1191 = vpack.c.b16 %v1127, %v1127
      %v1192 = vpack.c.b16 %v1128, %v1128
      %v1193 = vpack.c.b16 %v1129, %v1129
      %v1194 = vpack.c.b16 %v1130, %v1130
      %v1195 = vpack.c.b16 %v1131, %v1131
      %v1196 = vpack.c.b16 %v1132, %v1132
      %v1197 = vpack.c.b16 %v1133, %v1133
      %v1198 = vpack.c.b16 %v1134, %v1134
      %v1199 = vpack.c.b16 %v1135, %v1135
      %v1200 = vpack.c.b16 %v1136, %v1136
      %v1201 = vpack.c.b16 %v1137, %v1137
      %v1202 = vpack.c.b16 %v1138, %v1138
      %v1203 = vpack.c.b16 %v1139, %v1139
      %v1204 = vpack.c.b16 %v1140, %v1140
      %v1205 = vpack.c.b16 %v1141, %v1141
      %v1206 = vpack.c.b16 %v1142, %v1142
      %v1207 = vpack.c.b16 %v1143, %v1143
      %v1208 = vpack.c.b16 %v1144, %v1144
      %v1209 = vpack.c.b16 %v1145, %v1145
      %v1210 = vpack.c.b16 %v1146, %v1146
      %v1211 = vpack.c.b16 %v1147, %v1147
      %v1212 = vpack.c.b16 %v1148, %v1148
      %v1213 = vpack.c.b16 %v1149, %v1149
      %v1214 = vpack.c.b16 %v1150, %v1150
      %v1215 = vpack.c.b16 %v1151, %v1151
      %v1216 = vpack.c.b16 %v1152, %v1152
      %v1217 = vpack.c.b16 %v1153, %v1153
      %v1218 = vpack.c.b16 %v1154, %v1154
      %v1219 = vpack.c.b16 %v1155, %v1155
      %v1220 = vpack.c.b16 %v1156, %v1156
      %v1221 = vpack.c.b16 %v1157, %v1157
      %v1222 = vpack.c.b16 %v1158, %v1158
      %v1223 = vpack.c.b16 %v1159, %v1159
      %v1224 = vpack.c.b16 %v1160, %v1160
      %v1225 = vpack.c.b16 %v1161, %v1161
      %v1226 = vpack.c.b16 %v1162, %v1162
      %v1227 = vpack.c.b16 %v1163, %v1163
      %v1228 = vpack.c.b16 %v1164, %v1164
      %v1229 = vpack.c.b16 %v1165, %v1165
      %v1230 = vpack.c.b16 %v1166, %v1166
      %v1231 = vpack.c.b16 %v1167, %v1167
      %v1232 = vpack.c.b16 %v1168, %v1168
      %v1233 = vpack.c.b16 %v1169, %v1169
      %v1234 = vpack.c.b16 %v1170, %v1170
      %v1235 = vpack.c.b16 %v1171, %v1171
      %v1236 = vpack.c.b16 %v1172, %v1172
      %v1237 = vpack.c.b16 %v1173, %v1173
      %v1238 = vpack.c.b16 %v1174, %v1174
      %v1239 = vpack.c.b16 %v1175, %v1175
      %v1240 = vpack.c.b16 %v1176, %v1176
      %v1241 = vpack.c.b16 %v1177, %v1177
      %v1242 = vpack.c.b16 %v1178, %v1178
      %v1243 = vpack.c.b16 %v1179, %v1179
      %v1244 = vpack.c.b16 %v1180, %v1180
      %v1245 = vpack.c.b16 %v1181, %v1181
      %v1246 = vpack.c.b16 %v1182, %v1182
      %1311 = vst [vmem:[%s172] sm:$0xf] %v1183
      %1312 = vst [vmem:[%s172 + $0x4] sm:$0xf] %v1184
      %1313 = vst [vmem:[%s172 + $0x8] sm:$0xf] %v1185
      %1314 = vst [vmem:[%s172 + $0xc] sm:$0xf] %v1186
      %1315 = vst [vmem:[%s172 + $0x10] sm:$0xf] %v1187
      %1316 = vst [vmem:[%s172 + $0x14] sm:$0xf] %v1188
      %1317 = vst [vmem:[%s172 + $0x18] sm:$0xf] %v1189
      %1318 = vst [vmem:[%s172 + $0x1c] sm:$0xf] %v1190
      %1319 = vst [vmem:[%s172 + $0x20] sm:$0xf] %v1191
      %1320 = vst [vmem:[%s172 + $0x24] sm:$0xf] %v1192
      %1321 = vst [vmem:[%s172 + $0x28] sm:$0xf] %v1193
      %1322 = vst [vmem:[%s172 + $0x2c] sm:$0xf] %v1194
      %1323 = vst [vmem:[%s172 + $0x30] sm:$0xf] %v1195
      %1324 = vst [vmem:[%s172 + $0x34] sm:$0xf] %v1196
      %1325 = vst [vmem:[%s172 + $0x38] sm:$0xf] %v1197
      %1326 = vst [vmem:[%s172 + $0x3c] sm:$0xf] %v1198
      %1327 = vst [vmem:[%s172 + $0x40] sm:$0xf] %v1199
      %1328 = vst [vmem:[%s172 + $0x44] sm:$0xf] %v1200
      %1329 = vst [vmem:[%s172 + $0x48] sm:$0xf] %v1201
      %1330 = vst [vmem:[%s172 + $0x4c] sm:$0xf] %v1202
      %1331 = vst [vmem:[%s172 + $0x50] sm:$0xf] %v1203
      %1332 = vst [vmem:[%s172 + $0x54] sm:$0xf] %v1204
      %1333 = vst [vmem:[%s172 + $0x58] sm:$0xf] %v1205
      %1334 = vst [vmem:[%s172 + $0x5c] sm:$0xf] %v1206
      %1335 = vst [vmem:[%s172 + $0x60] sm:$0xf] %v1207
      %1336 = vst [vmem:[%s172 + $0x64] sm:$0xf] %v1208
      %1337 = vst [vmem:[%s172 + $0x68] sm:$0xf] %v1209
      %1338 = vst [vmem:[%s172 + $0x6c] sm:$0xf] %v1210
      %1339 = vst [vmem:[%s172 + $0x70] sm:$0xf] %v1211
      %1340 = vst [vmem:[%s172 + $0x74] sm:$0xf] %v1212
      %1341 = vst [vmem:[%s172 + $0x78] sm:$0xf] %v1213
      %1342 = vst [vmem:[%s172 + $0x7c] sm:$0xf] %v1214
      %1343 = vst [vmem:[%s172 + $0x80] sm:$0xf] %v1215
      %1344 = vst [vmem:[%s172 + $0x84] sm:$0xf] %v1216
      %1345 = vst [vmem:[%s172 + $0x88] sm:$0xf] %v1217
      %1346 = vst [vmem:[%s172 + $0x8c] sm:$0xf] %v1218
      %1347 = vst [vmem:[%s172 + $0x90] sm:$0xf] %v1219
      %1348 = vst [vmem:[%s172 + $0x94] sm:$0xf] %v1220
      %1349 = vst [vmem:[%s172 + $0x98] sm:$0xf] %v1221
      %1350 = vst [vmem:[%s172 + $0x9c] sm:$0xf] %v1222
      %1351 = vst [vmem:[%s172 + $0xa0] sm:$0xf] %v1223
      %1352 = vst [vmem:[%s172 + $0xa4] sm:$0xf] %v1224
      %1353 = vst [vmem:[%s172 + $0xa8] sm:$0xf] %v1225
      %1354 = vst [vmem:[%s172 + $0xac] sm:$0xf] %v1226
      %1355 = vst [vmem:[%s172 + $0xb0] sm:$0xf] %v1227
      %1356 = vst [vmem:[%s172 + $0xb4] sm:$0xf] %v1228
      %1357 = vst [vmem:[%s172 + $0xb8] sm:$0xf] %v1229
      %1358 = vst [vmem:[%s172 + $0xbc] sm:$0xf] %v1230
      %1359 = vst [vmem:[%s172 + $0xc0] sm:$0xf] %v1231
      %1360 = vst [vmem:[%s172 + $0xc4] sm:$0xf] %v1232
      %1361 = vst [vmem:[%s172 + $0xc8] sm:$0xf] %v1233
      %1362 = vst [vmem:[%s172 + $0xcc] sm:$0xf] %v1234
      %1363 = vst [vmem:[%s172 + $0xd0] sm:$0xf] %v1235
      %1364 = vst [vmem:[%s172 + $0xd4] sm:$0xf] %v1236
      %1365 = vst [vmem:[%s172 + $0xd8] sm:$0xf] %v1237
      %1366 = vst [vmem:[%s172 + $0xdc] sm:$0xf] %v1238
      %1367 = vst [vmem:[%s172 + $0xe0] sm:$0xf] %v1239
      %1368 = vst [vmem:[%s172 + $0xe4] sm:$0xf] %v1240
      %1369 = vst [vmem:[%s172 + $0xe8] sm:$0xf] %v1241
      %1370 = vst [vmem:[%s172 + $0xec] sm:$0xf] %v1242
      %1371 = vst [vmem:[%s172 + $0xf0] sm:$0xf] %v1243
      %1372 = vst [vmem:[%s172 + $0xf4] sm:$0xf] %v1244
      %1373 = vst [vmem:[%s172 + $0xf8] sm:$0xf] %v1245
      %1374 = vst [vmem:[%s172 + $0xfc] sm:$0xf] %v1246
      %s1375 = smul.u32 64, %s14
      %p1376 = scmp.lt.s32.totalorder %s1375, 127
      %s1377 = scalar_select %p1376, %s1375, 127
      %s1378 = smul.addr %s1377, 4
      %s1379 = scalar_lea.vmem %s3, %s1378
      // Predicated region
      $region33: #{discriminator_forward.5} parent=31 // pred_check
        %p1380 = pneg %p100
      $region34: #{discriminator_forward.5} parent=31 // pred_check_branch
        %1382 = sbr.rel (%p1380) target = $region36
      $region35: #{discriminator_forward.5} parent=31 // pred_region
        %s1383 = smul.u32 64, %s14
      $region36: #{discriminator_forward.5} parent=31 // pred_fallthru
        _
    $region32: #{discriminator_forward.5} parent=5 // pred_fallthru
      _
    %p1384 = scmp.le.s32.totalorder 2, %s9
    // Predicated region
    $region37: #{discriminator_forward.5} parent=5 // pred_check
      %p1385 = pneg %p1384
    $region38: #{discriminator_forward.5} parent=5 // pred_check_branch
      %1387 = sbr.rel (%p1385) target = $region40
    $region39: #{discriminator_forward.5} parent=5 // pred_region
      %s1388 = ssub.s32 %s9, 2
      // Predicated region
      $region41: #{discriminator_forward.5} parent=39 // pred_check
        %p1389 = pneg %p106
      $region42: #{discriminator_forward.5} parent=39 // pred_check_branch
        %1391 = sbr.rel (%p1389) target = $region44
      $region43: #{discriminator_forward.5} parent=39 // pred_region
        %s1392 = smul.u32 64, %s15
        %p1393 = scmp.lt.s32.totalorder %s1392, 127
        %s1394 = scalar_select %p1393, %s1392, 127
        %s1395 = smul.addr %s1394, 4
        %s1396 = scalar_lea.vmem %s3, %s1395
      $region44: #{discriminator_forward.5} parent=39 // pred_fallthru
        _
    $region40: #{discriminator_forward.5} parent=5 // pred_fallthru
      _
  $region6: #{discriminator_forward.5} parent=0 // loop_footer
    %s13 = sadd.s32 1, %s9
  $region7: #{discriminator_forward.5} parent=0 // loop_footer_branch
    %8 = sbr.rel target = $region3
  $region8: #{discriminator_forward.5} parent=0 // loop_exit
    _

// kernel: discriminator_forward.6
$region0: #{discriminator_forward.6}
  #allocation0 [shape = 'u32[]', space=smem, size = 0x4, offset = 0x4, fixed_abs, tag = 'smem constant byte address 0x4 - core index']
  #allocation1 [shape = 'u32[144,128]{1,0:T(1,128)}', space=vmem, size = 0x12000, scoped, tag = 'internal scratch']
  %s0 = inlined_call_operand.vmem [shape: bf16[128,512], index: 0, kind: input, shape index: {}]
  %s1 = inlined_call_operand.vmem [shape: bf16[512,128], index: 1, kind: input, shape index: {}]
  %s2 = inlined_call_operand.vmem [shape: f32[8,128], index: 2, kind: input, shape index: {}]
  %s3 = inlined_call_operand.vmem [shape: bf16[128,128], index: 3, kind: output, shape index: {}]
  %s4 = sld [smem:[#allocation0]]
  $region22: #{discriminator_forward.6} parent=0
    _
  %s6 = ssub.s32 1, %s4
  %s7 = scalar_select 0, %s6, %s4
  // Predicated region
  $region2: #{discriminator_forward.6} parent=0 // pred_check
    _
  $region3: #{discriminator_forward.6} parent=0 // pred_check_branch
    %9 = sbr.rel (0) target = $region5
  $region4: #{discriminator_forward.6} parent=0 // pred_region
    _
  $region5: #{discriminator_forward.6} parent=0 // pred_fallthru
    _
  // Predicated region
  $region6: #{discriminator_forward.6} parent=0 // pred_check
    _
  $region7: #{discriminator_forward.6} parent=0 // pred_check_branch
    %11 = sbr.rel (0) target = $region9
  $region8: #{discriminator_forward.6} parent=0 // pred_region
    _
  $region9: #{discriminator_forward.6} parent=0 // pred_fallthru
    _
  // Predicated region
  $region10: #{discriminator_forward.6} parent=0 // pred_check
    _
  $region11: #{discriminator_forward.6} parent=0 // pred_check_branch
    %13 = sbr.rel (0) target = $region13
  $region12: #{discriminator_forward.6} parent=0 // pred_region
    _
  $region13: #{discriminator_forward.6} parent=0 // pred_fallthru
    _
  %v15 = vld [vmem:[%s0] sm:$0xff]
  %v16 = vld [vmem:[%s0 + $0x8] sm:$0xff]
  %v17 = vld [vmem:[%s0 + $0x10] sm:$0xff]
  %v18 = vld [vmem:[%s0 + $0x18] sm:$0xff]
  %v19 = vld [vmem:[%s0 + $0x20] sm:$0xff]
  %v20 = vld [vmem:[%s0 + $0x28] sm:$0xff]
  %v21 = vld [vmem:[%s0 + $0x30] sm:$0xff]
  %v22 = vld [vmem:[%s0 + $0x38] sm:$0xff]
  %v23 = vld [vmem:[%s0 + $0x40] sm:$0xff]
  %v24 = vld [vmem:[%s0 + $0x48] sm:$0xff]
  %v25 = vld [vmem:[%s0 + $0x50] sm:$0xff]
  %v26 = vld [vmem:[%s0 + $0x58] sm:$0xff]
  %v27 = vld [vmem:[%s0 + $0x60] sm:$0xff]
  %v28 = vld [vmem:[%s0 + $0x68] sm:$0xff]
  %v29 = vld [vmem:[%s0 + $0x70] sm:$0xff]
  %v30 = vld [vmem:[%s0 + $0x78] sm:$0xff]
  %v31 = vld [vmem:[%s0 + $0x80] sm:$0xff]
  %v32 = vld [vmem:[%s0 + $0x88] sm:$0xff]
  %v33 = vld [vmem:[%s0 + $0x90] sm:$0xff]
  %v34 = vld [vmem:[%s0 + $0x98] sm:$0xff]
  %v35 = vld [vmem:[%s0 + $0xa0] sm:$0xff]
  %v36 = vld [vmem:[%s0 + $0xa8] sm:$0xff]
  %v37 = vld [vmem:[%s0 + $0xb0] sm:$0xff]
  %v38 = vld [vmem:[%s0 + $0xb8] sm:$0xff]
  %v39 = vld [vmem:[%s0 + $0xc0] sm:$0xff]
  %v40 = vld [vmem:[%s0 + $0xc8] sm:$0xff]
  %v41 = vld [vmem:[%s0 + $0xd0] sm:$0xff]
  %v42 = vld [vmem:[%s0 + $0xd8] sm:$0xff]
  %v43 = vld [vmem:[%s0 + $0xe0] sm:$0xff]
  %v44 = vld [vmem:[%s0 + $0xe8] sm:$0xff]
  %v45 = vld [vmem:[%s0 + $0xf0] sm:$0xff]
  %v46 = vld [vmem:[%s0 + $0xf8] sm:$0xff]
  %v47 = vld [vmem:[%s1] sm:$0xf]
  %v48 = vld [vmem:[%s1 + $0x4] sm:$0xf]
  %v49 = vld [vmem:[%s1 + $0x8] sm:$0xf]
  %v50 = vld [vmem:[%s1 + $0xc] sm:$0xf]
  %v51 = vld [vmem:[%s1 + $0x10] sm:$0xf]
  %v52 = vld [vmem:[%s1 + $0x14] sm:$0xf]
  %v53 = vld [vmem:[%s1 + $0x18] sm:$0xf]
  %v54 = vld [vmem:[%s1 + $0x1c] sm:$0xf]
  %v55 = vld [vmem:[%s1 + $0x20] sm:$0xf]
  %v56 = vld [vmem:[%s1 + $0x24] sm:$0xf]
  %v57 = vld [vmem:[%s1 + $0x28] sm:$0xf]
  %v58 = vld [vmem:[%s1 + $0x2c] sm:$0xf]
  %v59 = vld [vmem:[%s1 + $0x30] sm:$0xf]
  %v60 = vld [vmem:[%s1 + $0x34] sm:$0xf]
  %v61 = vld [vmem:[%s1 + $0x38] sm:$0xf]
  %v62 = vld [vmem:[%s1 + $0x3c] sm:$0xf]
  %v63 = vld [vmem:[%s1 + $0x40] sm:$0xf]
  %v64 = vld [vmem:[%s1 + $0x44] sm:$0xf]
  %v65 = vld [vmem:[%s1 + $0x48] sm:$0xf]
  %v66 = vld [vmem:[%s1 + $0x4c] sm:$0xf]
  %v67 = vld [vmem:[%s1 + $0x50] sm:$0xf]
  %v68 = vld [vmem:[%s1 + $0x54] sm:$0xf]
  %v69 = vld [vmem:[%s1 + $0x58] sm:$0xf]
  %v70 = vld [vmem:[%s1 + $0x5c] sm:$0xf]
  %v71 = vld [vmem:[%s1 + $0x60] sm:$0xf]
  %v72 = vld [vmem:[%s1 + $0x64] sm:$0xf]
  %v73 = vld [vmem:[%s1 + $0x68] sm:$0xf]
  %v74 = vld [vmem:[%s1 + $0x6c] sm:$0xf]
  %v75 = vld [vmem:[%s1 + $0x70] sm:$0xf]
  %v76 = vld [vmem:[%s1 + $0x74] sm:$0xf]
  %v77 = vld [vmem:[%s1 + $0x78] sm:$0xf]
  %v78 = vld [vmem:[%s1 + $0x7c] sm:$0xf]
  %v79 = vld [vmem:[%s1 + $0x80] sm:$0xf]
  %v80 = vld [vmem:[%s1 + $0x84] sm:$0xf]
  %v81 = vld [vmem:[%s1 + $0x88] sm:$0xf]
  %v82 = vld [vmem:[%s1 + $0x8c] sm:$0xf]
  %v83 = vld [vmem:[%s1 + $0x90] sm:$0xf]
  %v84 = vld [vmem:[%s1 + $0x94] sm:$0xf]
  %v85 = vld [vmem:[%s1 + $0x98] sm:$0xf]
  %v86 = vld [vmem:[%s1 + $0x9c] sm:$0xf]
  %v87 = vld [vmem:[%s1 + $0xa0] sm:$0xf]
  %v88 = vld [vmem:[%s1 + $0xa4] sm:$0xf]
  %v89 = vld [vmem:[%s1 + $0xa8] sm:$0xf]
  %v90 = vld [vmem:[%s1 + $0xac] sm:$0xf]
  %v91 = vld [vmem:[%s1 + $0xb0] sm:$0xf]
  %v92 = vld [vmem:[%s1 + $0xb4] sm:$0xf]
  %v93 = vld [vmem:[%s1 + $0xb8] sm:$0xf]
  %v94 = vld [vmem:[%s1 + $0xbc] sm:$0xf]
  %v95 = vld [vmem:[%s1 + $0xc0] sm:$0xf]
  %v96 = vld [vmem:[%s1 + $0xc4] sm:$0xf]
  %v97 = vld [vmem:[%s1 + $0xc8] sm:$0xf]
  %v98 = vld [vmem:[%s1 + $0xcc] sm:$0xf]
  %v99 = vld [vmem:[%s1 + $0xd0] sm:$0xf]
  %v100 = vld [vmem:[%s1 + $0xd4] sm:$0xf]
  %v101 = vld [vmem:[%s1 + $0xd8] sm:$0xf]
  %v102 = vld [vmem:[%s1 + $0xdc] sm:$0xf]
  %v103 = vld [vmem:[%s1 + $0xe0] sm:$0xf]
  %v104 = vld [vmem:[%s1 + $0xe4] sm:$0xf]
  %v105 = vld [vmem:[%s1 + $0xe8] sm:$0xf]
  %v106 = vld [vmem:[%s1 + $0xec] sm:$0xf]
  %v107 = vld [vmem:[%s1 + $0xf0] sm:$0xf]
  %v108 = vld [vmem:[%s1 + $0xf4] sm:$0xf]
  %v109 = vld [vmem:[%s1 + $0xf8] sm:$0xf]
  %v110 = vld [vmem:[%s1 + $0xfc] sm:$0xf]
  %v111 = vld [vmem:[%s2] sm:$0x1]
  %v112 = vlaneseq
  %v113 = vshrl.u32 %v112, 7
  %v114 = vsub.s32 0, %v113
  %v115 = vrot.slane %v111, %v114
  %v148 = vunpack.c.l.b16 %v15
  %v149 = vunpack.c.h.b16 %v15
  %v150 = vunpack.c.l.b16 %v16
  %v151 = vunpack.c.h.b16 %v16
  %v152 = vunpack.c.l.b16 %v17
  %v153 = vunpack.c.h.b16 %v17
  %v154 = vunpack.c.l.b16 %v18
  %v155 = vunpack.c.h.b16 %v18
  %v156 = vunpack.c.l.b16 %v19
  %v157 = vunpack.c.h.b16 %v19
  %v158 = vunpack.c.l.b16 %v20
  %v159 = vunpack.c.h.b16 %v20
  %v160 = vunpack.c.l.b16 %v21
  %v161 = vunpack.c.h.b16 %v21
  %v162 = vunpack.c.l.b16 %v22
  %v163 = vunpack.c.h.b16 %v22
  %v164 = vunpack.c.l.b16 %v23
  %v165 = vunpack.c.h.b16 %v23
  %v166 = vunpack.c.l.b16 %v24
  %v167 = vunpack.c.h.b16 %v24
  %v168 = vunpack.c.l.b16 %v25
  %v169 = vunpack.c.h.b16 %v25
  %v170 = vunpack.c.l.b16 %v26
  %v171 = vunpack.c.h.b16 %v26
  %v172 = vunpack.c.l.b16 %v27
  %v173 = vunpack.c.h.b16 %v27
  %v174 = vunpack.c.l.b16 %v28
  %v175 = vunpack.c.h.b16 %v28
  %v176 = vunpack.c.l.b16 %v29
  %v177 = vunpack.c.h.b16 %v29
  %v178 = vunpack.c.l.b16 %v30
  %v179 = vunpack.c.h.b16 %v30
  %v180 = vunpack.c.l.b16 %v31
  %v181 = vunpack.c.h.b16 %v31
  %v182 = vunpack.c.l.b16 %v32
  %v183 = vunpack.c.h.b16 %v32
  %v184 = vunpack.c.l.b16 %v33
  %v185 = vunpack.c.h.b16 %v33
  %v186 = vunpack.c.l.b16 %v34
  %v187 = vunpack.c.h.b16 %v34
  %v188 = vunpack.c.l.b16 %v35
  %v189 = vunpack.c.h.b16 %v35
  %v190 = vunpack.c.l.b16 %v36
  %v191 = vunpack.c.h.b16 %v36
  %v192 = vunpack.c.l.b16 %v37
  %v193 = vunpack.c.h.b16 %v37
  %v194 = vunpack.c.l.b16 %v38
  %v195 = vunpack.c.h.b16 %v38
  %v196 = vunpack.c.l.b16 %v39
  %v197 = vunpack.c.h.b16 %v39
  %v198 = vunpack.c.l.b16 %v40
  %v199 = vunpack.c.h.b16 %v40
  %v200 = vunpack.c.l.b16 %v41
  %v201 = vunpack.c.h.b16 %v41
  %v202 = vunpack.c.l.b16 %v42
  %v203 = vunpack.c.h.b16 %v42
  %v204 = vunpack.c.l.b16 %v43
  %v205 = vunpack.c.h.b16 %v43
  %v206 = vunpack.c.l.b16 %v44
  %v207 = vunpack.c.h.b16 %v44
  %v208 = vunpack.c.l.b16 %v45
  %v209 = vunpack.c.h.b16 %v45
  %v210 = vunpack.c.l.b16 %v46
  %v211 = vunpack.c.h.b16 %v46
  %v212 = vpack.c.b16 %v152, %v148
  %v213 = vpack.c.b16 %v153, %v149
  %v214 = vpack.c.b16 %v154, %v150
  %v215 = vpack.c.b16 %v155, %v151
  %v216 = vpack.c.b16 %v160, %v156
  %v217 = vpack.c.b16 %v161, %v157
  %v218 = vpack.c.b16 %v162, %v158
  %v219 = vpack.c.b16 %v163, %v159
  %v220 = vpack.c.b16 %v168, %v164
  %v221 = vpack.c.b16 %v169, %v165
  %v222 = vpack.c.b16 %v170, %v166
  %v223 = vpack.c.b16 %v171, %v167
  %v224 = vpack.c.b16 %v176, %v172
  %v225 = vpack.c.b16 %v177, %v173
  %v226 = vpack.c.b16 %v178, %v174
  %v227 = vpack.c.b16 %v179, %v175
  %v228 = vpack.c.b16 %v184, %v180
  %v229 = vpack.c.b16 %v185, %v181
  %v230 = vpack.c.b16 %v186, %v182
  %v231 = vpack.c.b16 %v187, %v183
  %v232 = vpack.c.b16 %v192, %v188
  %v233 = vpack.c.b16 %v193, %v189
  %v234 = vpack.c.b16 %v194, %v190
  %v235 = vpack.c.b16 %v195, %v191
  %v236 = vpack.c.b16 %v200, %v196
  %v237 = vpack.c.b16 %v201, %v197
  %v238 = vpack.c.b16 %v202, %v198
  %v239 = vpack.c.b16 %v203, %v199
  %v240 = vpack.c.b16 %v208, %v204
  %v241 = vpack.c.b16 %v209, %v205
  %v242 = vpack.c.b16 %v210, %v206
  %v243 = vpack.c.b16 %v211, %v207
  %v340 = vunpack.c.l.b16 %v47
  %v341 = vunpack.c.l.b16 %v48
  %v342 = vunpack.c.l.b16 %v49
  %v343 = vunpack.c.l.b16 %v50
  %v344 = vunpack.c.l.b16 %v51
  %v345 = vunpack.c.l.b16 %v52
  %v346 = vunpack.c.l.b16 %v53
  %v347 = vunpack.c.l.b16 %v54
  %v348 = vunpack.c.l.b16 %v55
  %v349 = vunpack.c.l.b16 %v56
  %v350 = vunpack.c.l.b16 %v57
  %v351 = vunpack.c.l.b16 %v58
  %v352 = vunpack.c.l.b16 %v59
  %v353 = vunpack.c.l.b16 %v60
  %v354 = vunpack.c.l.b16 %v61
  %v355 = vunpack.c.l.b16 %v62
  %v356 = vunpack.c.l.b16 %v63
  %v357 = vunpack.c.l.b16 %v64
  %v358 = vunpack.c.l.b16 %v65
  %v359 = vunpack.c.l.b16 %v66
  %v360 = vunpack.c.l.b16 %v67
  %v361 = vunpack.c.l.b16 %v68
  %v362 = vunpack.c.l.b16 %v69
  %v363 = vunpack.c.l.b16 %v70
  %v364 = vunpack.c.l.b16 %v71
  %v365 = vunpack.c.l.b16 %v72
  %v366 = vunpack.c.l.b16 %v73
  %v367 = vunpack.c.l.b16 %v74
  %v368 = vunpack.c.l.b16 %v75
  %v369 = vunpack.c.l.b16 %v76
  %v370 = vunpack.c.l.b16 %v77
  %v371 = vunpack.c.l.b16 %v78
  %v372 = vunpack.c.l.b16 %v79
  %v373 = vunpack.c.l.b16 %v80
  %v374 = vunpack.c.l.b16 %v81
  %v375 = vunpack.c.l.b16 %v82
  %v376 = vunpack.c.l.b16 %v83
  %v377 = vunpack.c.l.b16 %v84
  %v378 = vunpack.c.l.b16 %v85
  %v379 = vunpack.c.l.b16 %v86
  %v380 = vunpack.c.l.b16 %v87
  %v381 = vunpack.c.l.b16 %v88
  %v382 = vunpack.c.l.b16 %v89
  %v383 = vunpack.c.l.b16 %v90
  %v384 = vunpack.c.l.b16 %v91
  %v385 = vunpack.c.l.b16 %v92
  %v386 = vunpack.c.l.b16 %v93
  %v387 = vunpack.c.l.b16 %v94
  %v388 = vunpack.c.l.b16 %v95
  %v389 = vunpack.c.l.b16 %v96
  %v390 = vunpack.c.l.b16 %v97
  %v391 = vunpack.c.l.b16 %v98
  %v392 = vunpack.c.l.b16 %v99
  %v393 = vunpack.c.l.b16 %v100
  %v394 = vunpack.c.l.b16 %v101
  %v395 = vunpack.c.l.b16 %v102
  %v396 = vunpack.c.l.b16 %v103
  %v397 = vunpack.c.l.b16 %v104
  %v398 = vunpack.c.l.b16 %v105
  %v399 = vunpack.c.l.b16 %v106
  %v400 = vunpack.c.l.b16 %v107
  %v401 = vunpack.c.l.b16 %v108
  %v402 = vunpack.c.l.b16 %v109
  %v403 = vunpack.c.l.b16 %v110
  %v404 = vpack.c.b16 %v341, %v340
  %v405 = vpack.c.b16 %v343, %v342
  %v406 = vpack.c.b16 %v345, %v344
  %v407 = vpack.c.b16 %v347, %v346
  %v408 = vpack.c.b16 %v349, %v348
  %v409 = vpack.c.b16 %v351, %v350
  %v410 = vpack.c.b16 %v353, %v352
  %v411 = vpack.c.b16 %v355, %v354
  %v412 = vpack.c.b16 %v357, %v356
  %v413 = vpack.c.b16 %v359, %v358
  %v414 = vpack.c.b16 %v361, %v360
  %v415 = vpack.c.b16 %v363, %v362
  %v416 = vpack.c.b16 %v365, %v364
  %v417 = vpack.c.b16 %v367, %v366
  %v418 = vpack.c.b16 %v369, %v368
  %v419 = vpack.c.b16 %v371, %v370
  %v420 = vpack.c.b16 %v373, %v372
  %v421 = vpack.c.b16 %v375, %v374
  %v422 = vpack.c.b16 %v377, %v376
  %v423 = vpack.c.b16 %v379, %v378
  %v424 = vpack.c.b16 %v381, %v380
  %v425 = vpack.c.b16 %v383, %v382
  %v426 = vpack.c.b16 %v385, %v384
  %v427 = vpack.c.b16 %v387, %v386
  %v428 = vpack.c.b16 %v389, %v388
  %v429 = vpack.c.b16 %v391, %v390
  %v430 = vpack.c.b16 %v393, %v392
  %v431 = vpack.c.b16 %v395, %v394
  %v432 = vpack.c.b16 %v397, %v396
  %v433 = vpack.c.b16 %v399, %v398
  %v434 = vpack.c.b16 %v401, %v400
  %v435 = vpack.c.b16 %v403, %v402
  %468 = vmatprep.subr.bf16.mxu0 0
  %469 = vmatpush1.bf16.msra.mxu0 %v404
  %470 = vmatprep.subr.bf16.mxu0 0
  %471 = vmatpush1.bf16.msra.mxu0 %v405
  %472 = vmatprep.subr.bf16.mxu0 0
  %473 = vmatpush1.bf16.msra.mxu0 %v406
  %474 = vmatprep.subr.bf16.mxu0 0
  %475 = vmatpush1.bf16.msra.mxu0 %v407
  %476 = vmatprep.subr.bf16.mxu0 0
  %477 = vmatpush1.bf16.msra.mxu0 %v408
  %478 = vmatprep.subr.bf16.mxu0 0
  %479 = vmatpush1.bf16.msra.mxu0 %v409
  %480 = vmatprep.subr.bf16.mxu0 0
  %481 = vmatpush1.bf16.msra.mxu0 %v410
  %482 = vmatprep.subr.bf16.mxu0 0
  %483 = vmatpush1.bf16.msra.mxu0 %v411
  %484 = vmatprep.subr.bf16.mxu0 0
  %485 = vmatpush1.bf16.msra.mxu0 %v412
  %486 = vmatprep.subr.bf16.mxu0 0
  %487 = vmatpush1.bf16.msra.mxu0 %v413
  %488 = vmatprep.subr.bf16.mxu0 0
  %489 = vmatpush1.bf16.msra.mxu0 %v414
  %490 = vmatprep.subr.bf16.mxu0 0
  %491 = vmatpush1.bf16.msra.mxu0 %v415
  %492 = vmatprep.subr.bf16.mxu0 0
  %493 = vmatpush1.bf16.msra.mxu0 %v416
  %494 = vmatprep.subr.bf16.mxu0 0
  %495 = vmatpush1.bf16.msra.mxu0 %v417
  %496 = vmatprep.subr.bf16.mxu0 0
  %497 = vmatpush1.bf16.msra.mxu0 %v418
  %498 = vmatprep.subr.bf16.mxu0 0
  %499 = vmatpush1.bf16.msra.mxu0 %v419
  %500 = vmatprep.mubr.bf16.mxu0 %v213
  %501 = vmatmul.mubr.bf16.gmra.mrb[0].mxu0 %v212
  %v502 = vpop.f32.mrb[0].mxu0
  %v503 = vadd.f32 %v115, %v502
  %v504 = vpop.f32.mrb[0].mxu0
  %v505 = vpop.f32.mrb[0].mxu0
  %v506 = vadd.f32 %v115, %v505
  %v507 = vpop.f32.mrb[0].mxu0
  %508 = vmatprep.mubr.bf16.mxu0 %v217
  %509 = vmatmul.mubr.bf16.gmra.mrb[0].mxu0 %v216
  %v510 = vpop.f32.mrb[0].mxu0
  %v511 = vadd.f32 %v115, %v510
  %v512 = vpop.f32.mrb[0].mxu0
  %v513 = vpop.f32.mrb[0].mxu0
  %v514 = vadd.f32 %v115, %v513
  %v515 = vpop.f32.mrb[0].mxu0
  %516 = vmatprep.mubr.bf16.mxu0 %v221
  %517 = vmatmul.mubr.bf16.gmra.mrb[0].mxu0 %v220
  %v518 = vpop.f32.mrb[0].mxu0
  %v519 = vadd.f32 %v115, %v518
  %v520 = vpop.f32.mrb[0].mxu0
  %v521 = vpop.f32.mrb[0].mxu0
  %v522 = vadd.f32 %v115, %v521
  %v523 = vpop.f32.mrb[0].mxu0
  %524 = vmatprep.mubr.bf16.mxu0 %v225
  %525 = vmatmul.mubr.bf16.gmra.mrb[0].mxu0 %v224
  %v526 = vpop.f32.mrb[0].mxu0
  %v527 = vadd.f32 %v115, %v526
  %v528 = vpop.f32.mrb[0].mxu0
  %v529 = vpop.f32.mrb[0].mxu0
  %v530 = vadd.f32 %v115, %v529
  %v531 = vpop.f32.mrb[0].mxu0
  %532 = vmatprep.mubr.bf16.mxu0 %v229
  %533 = vmatmul.mubr.bf16.gmra.mrb[0].mxu0 %v228
  %v534 = vpop.f32.mrb[0].mxu0
  %v535 = vadd.f32 %v115, %v534
  %v536 = vpop.f32.mrb[0].mxu0
  %v537 = vpop.f32.mrb[0].mxu0
  %v538 = vadd.f32 %v115, %v537
  %v539 = vpop.f32.mrb[0].mxu0
  %540 = vmatprep.mubr.bf16.mxu0 %v233
  %541 = vmatmul.mubr.bf16.gmra.mrb[0].mxu0 %v232
  %v542 = vpop.f32.mrb[0].mxu0
  %v543 = vadd.f32 %v115, %v542
  %v544 = vpop.f32.mrb[0].mxu0
  %v545 = vpop.f32.mrb[0].mxu0
  %v546 = vadd.f32 %v115, %v545
  %v547 = vpop.f32.mrb[0].mxu0
  %548 = vmatprep.mubr.bf16.mxu0 %v237
  %549 = vmatmul.mubr.bf16.gmra.mrb[0].mxu0 %v236
  %v550 = vpop.f32.mrb[0].mxu0
  %v551 = vadd.f32 %v115, %v550
  %v552 = vpop.f32.mrb[0].mxu0
  %v553 = vpop.f32.mrb[0].mxu0
  %v554 = vadd.f32 %v115, %v553
  %v555 = vpop.f32.mrb[0].mxu0
  %556 = vmatprep.mubr.bf16.mxu0 %v241
  %557 = vmatmul.mubr.bf16.gmra.mrb[0].mxu0 %v240
  %v558 = vpop.f32.mrb[0].mxu0
  %v559 = vadd.f32 %v115, %v558
  %v560 = vpop.f32.mrb[0].mxu0
  %v561 = vpop.f32.mrb[0].mxu0
  %v562 = vadd.f32 %v115, %v561
  %v563 = vpop.f32.mrb[0].mxu0
  %564 = vdwg.mxu0
  %565 = vmatprep.subr.bf16.mxu0 0
  %566 = vmatpush1.bf16.msra.mxu0 %v420
  %567 = vmatprep.subr.bf16.mxu0 0
  %568 = vmatpush1.bf16.msra.mxu0 %v421
  %569 = vmatprep.subr.bf16.mxu0 0
  %570 = vmatpush1.bf16.msra.mxu0 %v422
  %571 = vmatprep.subr.bf16.mxu0 0
  %572 = vmatpush1.bf16.msra.mxu0 %v423
  %573 = vmatprep.subr.bf16.mxu0 0
  %574 = vmatpush1.bf16.msra.mxu0 %v424
  %575 = vmatprep.subr.bf16.mxu0 0
  %576 = vmatpush1.bf16.msra.mxu0 %v425
  %577 = vmatprep.subr.bf16.mxu0 0
  %578 = vmatpush1.bf16.msra.mxu0 %v426
  %579 = vmatprep.subr.bf16.mxu0 0
  %580 = vmatpush1.bf16.msra.mxu0 %v427
  %581 = vmatprep.subr.bf16.mxu0 0
  %582 = vmatpush1.bf16.msra.mxu0 %v428
  %583 = vmatprep.subr.bf16.mxu0 0
  %584 = vmatpush1.bf16.msra.mxu0 %v429
  %585 = vmatprep.subr.bf16.mxu0 0
  %586 = vmatpush1.bf16.msra.mxu0 %v430
  %587 = vmatprep.subr.bf16.mxu0 0
  %588 = vmatpush1.bf16.msra.mxu0 %v431
  %589 = vmatprep.subr.bf16.mxu0 0
  %590 = vmatpush1.bf16.msra.mxu0 %v432
  %591 = vmatprep.subr.bf16.mxu0 0
  %592 = vmatpush1.bf16.msra.mxu0 %v433
  %593 = vmatprep.subr.bf16.mxu0 0
  %594 = vmatpush1.bf16.msra.mxu0 %v434
  %595 = vmatprep.subr.bf16.mxu0 0
  %596 = vmatpush1.bf16.msra.mxu0 %v435
  %597 = vmatprep.mubr.bf16.mxu0 %v215
  %598 = vmatmul.mubr.bf16.gmra.mrb[0].mxu0 %v214
  %v599 = vpop.f32.mrb[0].mxu0
  %v600 = vadd.f32 %v503, %v599
  %v601 = vpop.f32.mrb[0].mxu0
  %v602 = vpop.f32.mrb[0].mxu0
  %v603 = vadd.f32 %v506, %v602
  %v604 = vpop.f32.mrb[0].mxu0
  %605 = vmatprep.mubr.bf16.mxu0 %v219
  %606 = vmatmul.mubr.bf16.gmra.mrb[0].mxu0 %v218
  %v607 = vpop.f32.mrb[0].mxu0
  %v608 = vadd.f32 %v511, %v607
  %v609 = vpop.f32.mrb[0].mxu0
  %v610 = vpop.f32.mrb[0].mxu0
  %v611 = vadd.f32 %v514, %v610
  %v612 = vpop.f32.mrb[0].mxu0
  %613 = vmatprep.mubr.bf16.mxu0 %v223
  %614 = vmatmul.mubr.bf16.gmra.mrb[0].mxu0 %v222
  %v615 = vpop.f32.mrb[0].mxu0
  %v616 = vadd.f32 %v519, %v615
  %v617 = vpop.f32.mrb[0].mxu0
  %v618 = vpop.f32.mrb[0].mxu0
  %v619 = vadd.f32 %v522, %v618
  %v620 = vpop.f32.mrb[0].mxu0
  %621 = vmatprep.mubr.bf16.mxu0 %v227
  %622 = vmatmul.mubr.bf16.gmra.mrb[0].mxu0 %v226
  %v623 = vpop.f32.mrb[0].mxu0
  %v624 = vadd.f32 %v527, %v623
  %v625 = vpop.f32.mrb[0].mxu0
  %v626 = vpop.f32.mrb[0].mxu0
  %v627 = vadd.f32 %v530, %v626
  %v628 = vpop.f32.mrb[0].mxu0
  %629 = vmatprep.mubr.bf16.mxu0 %v231
  %630 = vmatmul.mubr.bf16.gmra.mrb[0].mxu0 %v230
  %v631 = vpop.f32.mrb[0].mxu0
  %v632 = vadd.f32 %v535, %v631
  %v633 = vpop.f32.mrb[0].mxu0
  %v634 = vpop.f32.mrb[0].mxu0
  %v635 = vadd.f32 %v538, %v634
  %v636 = vpop.f32.mrb[0].mxu0
  %637 = vmatprep.mubr.bf16.mxu0 %v235
  %638 = vmatmul.mubr.bf16.gmra.mrb[0].mxu0 %v234
  %v639 = vpop.f32.mrb[0].mxu0
  %v640 = vadd.f32 %v543, %v639
  %v641 = vpop.f32.mrb[0].mxu0
  %v642 = vpop.f32.mrb[0].mxu0
  %v643 = vadd.f32 %v546, %v642
  %v644 = vpop.f32.mrb[0].mxu0
  %645 = vmatprep.mubr.bf16.mxu0 %v239
  %646 = vmatmul.mubr.bf16.gmra.mrb[0].mxu0 %v238
  %v647 = vpop.f32.mrb[0].mxu0
  %v648 = vadd.f32 %v551, %v647
  %v649 = vpop.f32.mrb[0].mxu0
  %v650 = vpop.f32.mrb[0].mxu0
  %v651 = vadd.f32 %v554, %v650
  %v652 = vpop.f32.mrb[0].mxu0
  %653 = vmatprep.mubr.bf16.mxu0 %v243
  %654 = vmatmul.mubr.bf16.gmra.mrb[0].mxu0 %v242
  %v655 = vpop.f32.mrb[0].mxu0
  %v656 = vadd.f32 %v559, %v655
  %v657 = vpop.f32.mrb[0].mxu0
  %v658 = vpop.f32.mrb[0].mxu0
  %v659 = vadd.f32 %v562, %v658
  %v660 = vpop.f32.mrb[0].mxu0
  %661 = vdwg.mxu0
  %v662 = vmul.f32 %v600, 0.2
  %v663 = vmul.f32 %v603, 0.2
  %v664 = vmul.f32 %v608, 0.2
  %v665 = vmul.f32 %v611, 0.2
  %v666 = vmul.f32 %v616, 0.2
  %v667 = vmul.f32 %v619, 0.2
  %v668 = vmul.f32 %v624, 0.2
  %v669 = vmul.f32 %v627, 0.2
  %v670 = vmul.f32 %v632, 0.2
  %v671 = vmul.f32 %v635, 0.2
  %v672 = vmul.f32 %v640, 0.2
  %v673 = vmul.f32 %v643, 0.2
  %v674 = vmul.f32 %v648, 0.2
  %v675 = vmul.f32 %v651, 0.2
  %v676 = vmul.f32 %v656, 0.2
  %v677 = vmul.f32 %v659, 0.2
  %v678 = vmax.f32 %v600, %v662
  %v679 = vmax.f32 %v603, %v663
  %v680 = vmax.f32 %v608, %v664
  %v681 = vmax.f32 %v611, %v665
  %v682 = vmax.f32 %v616, %v666
  %v683 = vmax.f32 %v619, %v667
  %v684 = vmax.f32 %v624, %v668
  %v685 = vmax.f32 %v627, %v669
  %v686 = vmax.f32 %v632, %v670
  %v687 = vmax.f32 %v635, %v671
  %v688 = vmax.f32 %v640, %v672
  %v689 = vmax.f32 %v643, %v673
  %v690 = vmax.f32 %v648, %v674
  %v691 = vmax.f32 %v651, %v675
  %v692 = vmax.f32 %v656, %v676
  %v693 = vmax.f32 %v659, %v677
  %v694 = vld [vmem:[%s2 + $0x1] sm:$0x1]
  %v695 = vlaneseq
  %v696 = vshrl.u32 %v695, 7
  %v697 = vsub.s32 0, %v696
  %v698 = vrot.slane %v694, %v697
  %v699 = vmul.f32 %v678, %v698
  %v700 = vmul.f32 %v679, %v698
  %v701 = vmul.f32 %v680, %v698
  %v702 = vmul.f32 %v681, %v698
  %v703 = vmul.f32 %v682, %v698
  %v704 = vmul.f32 %v683, %v698
  %v705 = vmul.f32 %v684, %v698
  %v706 = vmul.f32 %v685, %v698
  %v707 = vmul.f32 %v686, %v698
  %v708 = vmul.f32 %v687, %v698
  %v709 = vmul.f32 %v688, %v698
  %v710 = vmul.f32 %v689, %v698
  %v711 = vmul.f32 %v690, %v698
  %v712 = vmul.f32 %v691, %v698
  %v713 = vmul.f32 %v692, %v698
  %v714 = vmul.f32 %v693, %v698
  %v715 = vld [vmem:[%s2 + $0x2] sm:$0x1]
  %v716 = vlaneseq
  %v717 = vshrl.u32 %v716, 7
  %v718 = vsub.s32 0, %v717
  %v719 = vrot.slane %v715, %v718
  %v720 = vadd.f32 %v699, %v719
  %v721 = vadd.f32 %v700, %v719
  %v722 = vadd.f32 %v701, %v719
  %v723 = vadd.f32 %v702, %v719
  %v724 = vadd.f32 %v703, %v719
  %v725 = vadd.f32 %v704, %v719
  %v726 = vadd.f32 %v705, %v719
  %v727 = vadd.f32 %v706, %v719
  %v728 = vadd.f32 %v707, %v719
  %v729 = vadd.f32 %v708, %v719
  %v730 = vadd.f32 %v709, %v719
  %v731 = vadd.f32 %v710, %v719
  %v732 = vadd.f32 %v711, %v719
  %v733 = vadd.f32 %v712, %v719
  %v734 = vadd.f32 %v713, %v719
  %v735 = vadd.f32 %v714, %v719
  %v736 = vpack.c.bf16 %v721, %v720
  %v737 = vpack.c.bf16 %v723, %v722
  %v738 = vpack.c.bf16 %v725, %v724
  %v739 = vpack.c.bf16 %v727, %v726
  %v740 = vpack.c.bf16 %v729, %v728
  %v741 = vpack.c.bf16 %v731, %v730
  %v742 = vpack.c.bf16 %v733, %v732
  %v743 = vpack.c.bf16 %v735, %v734
  %v752 = vunpack.c.l.b16 %v736
  %v753 = vunpack.c.h.b16 %v736
  %v754 = vunpack.c.l.b16 %v737
  %v755 = vunpack.c.h.b16 %v737
  %v756 = vunpack.c.l.b16 %v738
  %v757 = vunpack.c.h.b16 %v738
  %v758 = vunpack.c.l.b16 %v739
  %v759 = vunpack.c.h.b16 %v739
  %v760 = vunpack.c.l.b16 %v740
  %v761 = vunpack.c.h.b16 %v740
  %v762 = vunpack.c.l.b16 %v741
  %v763 = vunpack.c.h.b16 %v741
  %v764 = vunpack.c.l.b16 %v742
  %v765 = vunpack.c.h.b16 %v742
  %v766 = vunpack.c.l.b16 %v743
  %v767 = vunpack.c.h.b16 %v743
  %v768 = vpack.c.b16 %v752, %v752
  %v769 = vpack.c.b16 %v753, %v753
  %v770 = vpack.c.b16 %v754, %v754
  %v771 = vpack.c.b16 %v755, %v755
  %v772 = vpack.c.b16 %v756, %v756
  %v773 = vpack.c.b16 %v757, %v757
  %v774 = vpack.c.b16 %v758, %v758
  %v775 = vpack.c.b16 %v759, %v759
  %v776 = vpack.c.b16 %v760, %v760
  %v777 = vpack.c.b16 %v761, %v761
  %v778 = vpack.c.b16 %v762, %v762
  %v779 = vpack.c.b16 %v763, %v763
  %v780 = vpack.c.b16 %v764, %v764
  %v781 = vpack.c.b16 %v765, %v765
  %v782 = vpack.c.b16 %v766, %v766
  %v783 = vpack.c.b16 %v767, %v767
  %800 = vst [vmem:[%s3] sm:$0xf] %v768
  %801 = vst [vmem:[%s3 + $0x4] sm:$0xf] %v769
  %802 = vst [vmem:[%s3 + $0x8] sm:$0xf] %v770
  %803 = vst [vmem:[%s3 + $0xc] sm:$0xf] %v771
  %804 = vst [vmem:[%s3 + $0x10] sm:$0xf] %v772
  %805 = vst [vmem:[%s3 + $0x14] sm:$0xf] %v773
  %806 = vst [vmem:[%s3 + $0x18] sm:$0xf] %v774
  %807 = vst [vmem:[%s3 + $0x1c] sm:$0xf] %v775
  %808 = vst [vmem:[%s3 + $0x20] sm:$0xf] %v776
  %809 = vst [vmem:[%s3 + $0x24] sm:$0xf] %v777
  %810 = vst [vmem:[%s3 + $0x28] sm:$0xf] %v778
  %811 = vst [vmem:[%s3 + $0x2c] sm:$0xf] %v779
  %812 = vst [vmem:[%s3 + $0x30] sm:$0xf] %v780
  %813 = vst [vmem:[%s3 + $0x34] sm:$0xf] %v781
  %814 = vst [vmem:[%s3 + $0x38] sm:$0xf] %v782
  %815 = vst [vmem:[%s3 + $0x3c] sm:$0xf] %v783
  // Predicated region
  $region14: #{discriminator_forward.6} parent=0 // pred_check
    _
  $region15: #{discriminator_forward.6} parent=0 // pred_check_branch
    %817 = sbr.rel (0) target = $region17
  $region16: #{discriminator_forward.6} parent=0 // pred_region
    _
  $region17: #{discriminator_forward.6} parent=0 // pred_fallthru
    _
  // Predicated region
  $region18: #{discriminator_forward.6} parent=0 // pred_check
    _
  $region19: #{discriminator_forward.6} parent=0 // pred_check_branch
    %819 = sbr.rel (0) target = $region21
  $region20: #{discriminator_forward.6} parent=0 // pred_region
    _
  $region21: #{discriminator_forward.6} parent=0 // pred_fallthru
    _

// kernel: discriminator_forward.7
$region0: #{discriminator_forward.7}
  #allocation0 [shape = 'u32[]', space=smem, size = 0x4, offset = 0x4, fixed_abs, tag = 'smem constant byte address 0x4 - core index']
  #allocation1 [shape = 'u32[144,128]{1,0:T(1,128)}', space=vmem, size = 0x12000, scoped, tag = 'internal scratch']
  %s0 = inlined_call_operand.vmem [shape: bf16[16,896], index: 0, kind: input, shape index: {}]
  %s1 = inlined_call_operand.vmem [shape: bf16[896,128], index: 1, kind: input, shape index: {}]
  %s2 = inlined_call_operand.vmem [shape: f32[8,128], index: 2, kind: input, shape index: {}]
  %s3 = inlined_call_operand.vmem [shape: bf16[16,128], index: 3, kind: output, shape index: {}]
  %s4 = sld [smem:[#allocation0]]
  $region22: #{discriminator_forward.7} parent=0
    _
  %s6 = ssub.s32 1, %s4
  %s7 = scalar_select 0, %s6, %s4
  // Predicated region
  $region2: #{discriminator_forward.7} parent=0 // pred_check
    _
  $region3: #{discriminator_forward.7} parent=0 // pred_check_branch
    %9 = sbr.rel (0) target = $region5
  $region4: #{discriminator_forward.7} parent=0 // pred_region
    _
  $region5: #{discriminator_forward.7} parent=0 // pred_fallthru
    _
  // Predicated region
  $region6: #{discriminator_forward.7} parent=0 // pred_check
    _
  $region7: #{discriminator_forward.7} parent=0 // pred_check_branch
    %11 = sbr.rel (0) target = $region9
  $region8: #{discriminator_forward.7} parent=0 // pred_region
    _
  $region9: #{discriminator_forward.7} parent=0 // pred_fallthru
    _
  // Predicated region
  $region10: #{discriminator_forward.7} parent=0 // pred_check
    _
  $region11: #{discriminator_forward.7} parent=0 // pred_check_branch
    %13 = sbr.rel (0) target = $region13
  $region12: #{discriminator_forward.7} parent=0 // pred_region
    _
  $region13: #{discriminator_forward.7} parent=0 // pred_fallthru
    _
  %v15 = vld [vmem:[%s0] sm:$0xff]
  %v16 = vld [vmem:[%s0 + $0x8] sm:$0xff]
  %v17 = vld [vmem:[%s0 + $0x10] sm:$0xff]
  %v18 = vld [vmem:[%s0 + $0x18] sm:$0xf]
  %v19 = vld [vmem:[%s0 + $0x1c] sm:$0xff]
  %v20 = vld [vmem:[%s0 + $0x24] sm:$0xff]
  %v21 = vld [vmem:[%s0 + $0x2c] sm:$0xff]
  %v22 = vld [vmem:[%s0 + $0x34] sm:$0xf]
  %v23 = vld [vmem:[%s1] sm:$0xf]
  %v24 = vld [vmem:[%s1 + $0x4] sm:$0xf]
  %v25 = vld [vmem:[%s1 + $0x8] sm:$0xf]
  %v26 = vld [vmem:[%s1 + $0xc] sm:$0xf]
  %v27 = vld [vmem:[%s1 + $0x10] sm:$0xf]
  %v28 = vld [vmem:[%s1 + $0x14] sm:$0xf]
  %v29 = vld [vmem:[%s1 + $0x18] sm:$0xf]
  %v30 = vld [vmem:[%s1 + $0x1c] sm:$0xf]
  %v31 = vld [vmem:[%s1 + $0x20] sm:$0xf]
  %v32 = vld [vmem:[%s1 + $0x24] sm:$0xf]
  %v33 = vld [vmem:[%s1 + $0x28] sm:$0xf]
  %v34 = vld [vmem:[%s1 + $0x2c] sm:$0xf]
  %v35 = vld [vmem:[%s1 + $0x30] sm:$0xf]
  %v36 = vld [vmem:[%s1 + $0x34] sm:$0xf]
  %v37 = vld [vmem:[%s1 + $0x38] sm:$0xf]
  %v38 = vld [vmem:[%s1 + $0x3c] sm:$0xf]
  %v39 = vld [vmem:[%s1 + $0x40] sm:$0xf]
  %v40 = vld [vmem:[%s1 + $0x44] sm:$0xf]
  %v41 = vld [vmem:[%s1 + $0x48] sm:$0xf]
  %v42 = vld [vmem:[%s1 + $0x4c] sm:$0xf]
  %v43 = vld [vmem:[%s1 + $0x50] sm:$0xf]
  %v44 = vld [vmem:[%s1 + $0x54] sm:$0xf]
  %v45 = vld [vmem:[%s1 + $0x58] sm:$0xf]
  %v46 = vld [vmem:[%s1 + $0x5c] sm:$0xf]
  %v47 = vld [vmem:[%s1 + $0x60] sm:$0xf]
  %v48 = vld [vmem:[%s1 + $0x64] sm:$0xf]
  %v49 = vld [vmem:[%s1 + $0x68] sm:$0xf]
  %v50 = vld [vmem:[%s1 + $0x6c] sm:$0xf]
  %v51 = vld [vmem:[%s1 + $0x70] sm:$0xf]
  %v52 = vld [vmem:[%s1 + $0x74] sm:$0xf]
  %v53 = vld [vmem:[%s1 + $0x78] sm:$0xf]
  %v54 = vld [vmem:[%s1 + $0x7c] sm:$0xf]
  %v55 = vld [vmem:[%s1 + $0x80] sm:$0xf]
  %v56 = vld [vmem:[%s1 + $0x84] sm:$0xf]
  %v57 = vld [vmem:[%s1 + $0x88] sm:$0xf]
  %v58 = vld [vmem:[%s1 + $0x8c] sm:$0xf]
  %v59 = vld [vmem:[%s1 + $0x90] sm:$0xf]
  %v60 = vld [vmem:[%s1 + $0x94] sm:$0xf]
  %v61 = vld [vmem:[%s1 + $0x98] sm:$0xf]
  %v62 = vld [vmem:[%s1 + $0x9c] sm:$0xf]
  %v63 = vld [vmem:[%s1 + $0xa0] sm:$0xf]
  %v64 = vld [vmem:[%s1 + $0xa4] sm:$0xf]
  %v65 = vld [vmem:[%s1 + $0xa8] sm:$0xf]
  %v66 = vld [vmem:[%s1 + $0xac] sm:$0xf]
  %v67 = vld [vmem:[%s1 + $0xb0] sm:$0xf]
  %v68 = vld [vmem:[%s1 + $0xb4] sm:$0xf]
  %v69 = vld [vmem:[%s1 + $0xb8] sm:$0xf]
  %v70 = vld [vmem:[%s1 + $0xbc] sm:$0xf]
  %v71 = vld [vmem:[%s1 + $0xc0] sm:$0xf]
  %v72 = vld [vmem:[%s1 + $0xc4] sm:$0xf]
  %v73 = vld [vmem:[%s1 + $0xc8] sm:$0xf]
  %v74 = vld [vmem:[%s1 + $0xcc] sm:$0xf]
  %v75 = vld [vmem:[%s1 + $0xd0] sm:$0xf]
  %v76 = vld [vmem:[%s1 + $0xd4] sm:$0xf]
  %v77 = vld [vmem:[%s1 + $0xd8] sm:$0xf]
  %v78 = vld [vmem:[%s1 + $0xdc] sm:$0xf]
  %v79 = vld [vmem:[%s1 + $0xe0] sm:$0xf]
  %v80 = vld [vmem:[%s1 + $0xe4] sm:$0xf]
  %v81 = vld [vmem:[%s1 + $0xe8] sm:$0xf]
  %v82 = vld [vmem:[%s1 + $0xec] sm:$0xf]
  %v83 = vld [vmem:[%s1 + $0xf0] sm:$0xf]
  %v84 = vld [vmem:[%s1 + $0xf4] sm:$0xf]
  %v85 = vld [vmem:[%s1 + $0xf8] sm:$0xf]
  %v86 = vld [vmem:[%s1 + $0xfc] sm:$0xf]
  %v87 = vld [vmem:[%s1 + $0x100] sm:$0xf]
  %v88 = vld [vmem:[%s1 + $0x104] sm:$0xf]
  %v89 = vld [vmem:[%s1 + $0x108] sm:$0xf]
  %v90 = vld [vmem:[%s1 + $0x10c] sm:$0xf]
  %v91 = vld [vmem:[%s1 + $0x110] sm:$0xf]
  %v92 = vld [vmem:[%s1 + $0x114] sm:$0xf]
  %v93 = vld [vmem:[%s1 + $0x118] sm:$0xf]
  %v94 = vld [vmem:[%s1 + $0x11c] sm:$0xf]
  %v95 = vld [vmem:[%s1 + $0x120] sm:$0xf]
  %v96 = vld [vmem:[%s1 + $0x124] sm:$0xf]
  %v97 = vld [vmem:[%s1 + $0x128] sm:$0xf]
  %v98 = vld [vmem:[%s1 + $0x12c] sm:$0xf]
  %v99 = vld [vmem:[%s1 + $0x130] sm:$0xf]
  %v100 = vld [vmem:[%s1 + $0x134] sm:$0xf]
  %v101 = vld [vmem:[%s1 + $0x138] sm:$0xf]
  %v102 = vld [vmem:[%s1 + $0x13c] sm:$0xf]
  %v103 = vld [vmem:[%s1 + $0x140] sm:$0xf]
  %v104 = vld [vmem:[%s1 + $0x144] sm:$0xf]
  %v105 = vld [vmem:[%s1 + $0x148] sm:$0xf]
  %v106 = vld [vmem:[%s1 + $0x14c] sm:$0xf]
  %v107 = vld [vmem:[%s1 + $0x150] sm:$0xf]
  %v108 = vld [vmem:[%s1 + $0x154] sm:$0xf]
  %v109 = vld [vmem:[%s1 + $0x158] sm:$0xf]
  %v110 = vld [vmem:[%s1 + $0x15c] sm:$0xf]
  %v111 = vld [vmem:[%s1 + $0x160] sm:$0xf]
  %v112 = vld [vmem:[%s1 + $0x164] sm:$0xf]
  %v113 = vld [vmem:[%s1 + $0x168] sm:$0xf]
  %v114 = vld [vmem:[%s1 + $0x16c] sm:$0xf]
  %v115 = vld [vmem:[%s1 + $0x170] sm:$0xf]
  %v116 = vld [vmem:[%s1 + $0x174] sm:$0xf]
  %v117 = vld [vmem:[%s1 + $0x178] sm:$0xf]
  %v118 = vld [vmem:[%s1 + $0x17c] sm:$0xf]
  %v119 = vld [vmem:[%s1 + $0x180] sm:$0xf]
  %v120 = vld [vmem:[%s1 + $0x184] sm:$0xf]
  %v121 = vld [vmem:[%s1 + $0x188] sm:$0xf]
  %v122 = vld [vmem:[%s1 + $0x18c] sm:$0xf]
  %v123 = vld [vmem:[%s1 + $0x190] sm:$0xf]
  %v124 = vld [vmem:[%s1 + $0x194] sm:$0xf]
  %v125 = vld [vmem:[%s1 + $0x198] sm:$0xf]
  %v126 = vld [vmem:[%s1 + $0x19c] sm:$0xf]
  %v127 = vld [vmem:[%s1 + $0x1a0] sm:$0xf]
  %v128 = vld [vmem:[%s1 + $0x1a4] sm:$0xf]
  %v129 = vld [vmem:[%s1 + $0x1a8] sm:$0xf]
  %v130 = vld [vmem:[%s1 + $0x1ac] sm:$0xf]
  %v131 = vld [vmem:[%s1 + $0x1b0] sm:$0xf]
  %v132 = vld [vmem:[%s1 + $0x1b4] sm:$0xf]
  %v133 = vld [vmem:[%s1 + $0x1b8] sm:$0xf]
  %v134 = vld [vmem:[%s1 + $0x1bc] sm:$0xf]
  %v135 = vld [vmem:[%s2] sm:$0x1]
  %v136 = vlaneseq
  %v137 = vshrl.u32 %v136, 7
  %v138 = vsub.s32 0, %v137
  %v139 = vrot.slane %v135, %v138
  %v148 = vunpack.c.l.b16 %v15
  %v149 = vunpack.c.h.b16 %v15
  %v150 = vunpack.c.l.b16 %v16
  %v151 = vunpack.c.h.b16 %v16
  %v152 = vunpack.c.l.b16 %v17
  %v153 = vunpack.c.h.b16 %v17
  %v154 = vunpack.c.l.b16 %v18
  %v155 = vunpack.c.l.b16 %v19
  %v156 = vunpack.c.h.b16 %v19
  %v157 = vunpack.c.l.b16 %v20
  %v158 = vunpack.c.h.b16 %v20
  %v159 = vunpack.c.l.b16 %v21
  %v160 = vunpack.c.h.b16 %v21
  %v161 = vunpack.c.l.b16 %v22
  %v162 = vpack.c.b16 %v155, %v148
  %v163 = vpack.c.b16 %v156, %v149
  %v164 = vpack.c.b16 %v157, %v150
  %v165 = vpack.c.b16 %v158, %v151
  %v166 = vpack.c.b16 %v159, %v152
  %v167 = vpack.c.b16 %v160, %v153
  %v168 = vpack.c.b16 %v161, %v154
  %v288 = vunpack.c.l.b16 %v23
  %v289 = vunpack.c.l.b16 %v24
  %v290 = vunpack.c.l.b16 %v25
  %v291 = vunpack.c.l.b16 %v26
  %v292 = vunpack.c.l.b16 %v27
  %v293 = vunpack.c.l.b16 %v28
  %v294 = vunpack.c.l.b16 %v29
  %v295 = vunpack.c.l.b16 %v30
  %v296 = vunpack.c.l.b16 %v31
  %v297 = vunpack.c.l.b16 %v32
  %v298 = vunpack.c.l.b16 %v33
  %v299 = vunpack.c.l.b16 %v34
  %v300 = vunpack.c.l.b16 %v35
  %v301 = vunpack.c.l.b16 %v36
  %v302 = vunpack.c.l.b16 %v37
  %v303 = vunpack.c.l.b16 %v38
  %v304 = vunpack.c.l.b16 %v39
  %v305 = vunpack.c.l.b16 %v40
  %v306 = vunpack.c.l.b16 %v41
  %v307 = vunpack.c.l.b16 %v42
  %v308 = vunpack.c.l.b16 %v43
  %v309 = vunpack.c.l.b16 %v44
  %v310 = vunpack.c.l.b16 %v45
  %v311 = vunpack.c.l.b16 %v46
  %v312 = vunpack.c.l.b16 %v47
  %v313 = vunpack.c.l.b16 %v48
  %v314 = vunpack.c.l.b16 %v49
  %v315 = vunpack.c.l.b16 %v50
  %v316 = vunpack.c.l.b16 %v51
  %v317 = vunpack.c.l.b16 %v52
  %v318 = vunpack.c.l.b16 %v53
  %v319 = vunpack.c.l.b16 %v54
  %v320 = vunpack.c.l.b16 %v55
  %v321 = vunpack.c.l.b16 %v56
  %v322 = vunpack.c.l.b16 %v57
  %v323 = vunpack.c.l.b16 %v58
  %v324 = vunpack.c.l.b16 %v59
  %v325 = vunpack.c.l.b16 %v60
  %v326 = vunpack.c.l.b16 %v61
  %v327 = vunpack.c.l.b16 %v62
  %v328 = vunpack.c.l.b16 %v63
  %v329 = vunpack.c.l.b16 %v64
  %v330 = vunpack.c.l.b16 %v65
  %v331 = vunpack.c.l.b16 %v66
  %v332 = vunpack.c.l.b16 %v67
  %v333 = vunpack.c.l.b16 %v68
  %v334 = vunpack.c.l.b16 %v69
  %v335 = vunpack.c.l.b16 %v70
  %v336 = vunpack.c.l.b16 %v71
  %v337 = vunpack.c.l.b16 %v72
  %v338 = vunpack.c.l.b16 %v73
  %v339 = vunpack.c.l.b16 %v74
  %v340 = vunpack.c.l.b16 %v75
  %v341 = vunpack.c.l.b16 %v76
  %v342 = vunpack.c.l.b16 %v77
  %v343 = vunpack.c.l.b16 %v78
  %v344 = vunpack.c.l.b16 %v79
  %v345 = vunpack.c.l.b16 %v80
  %v346 = vunpack.c.l.b16 %v81
  %v347 = vunpack.c.l.b16 %v82
  %v348 = vunpack.c.l.b16 %v83
  %v349 = vunpack.c.l.b16 %v84
  %v350 = vunpack.c.l.b16 %v85
  %v351 = vunpack.c.l.b16 %v86
  %v352 = vunpack.c.l.b16 %v87
  %v353 = vunpack.c.l.b16 %v88
  %v354 = vunpack.c.l.b16 %v89
  %v355 = vunpack.c.l.b16 %v90
  %v356 = vunpack.c.l.b16 %v91
  %v357 = vunpack.c.l.b16 %v92
  %v358 = vunpack.c.l.b16 %v93
  %v359 = vunpack.c.l.b16 %v94
  %v360 = vunpack.c.l.b16 %v95
  %v361 = vunpack.c.l.b16 %v96
  %v362 = vunpack.c.l.b16 %v97
  %v363 = vunpack.c.l.b16 %v98
  %v364 = vunpack.c.l.b16 %v99
  %v365 = vunpack.c.l.b16 %v100
  %v366 = vunpack.c.l.b16 %v101
  %v367 = vunpack.c.l.b16 %v102
  %v368 = vunpack.c.l.b16 %v103
  %v369 = vunpack.c.l.b16 %v104
  %v370 = vunpack.c.l.b16 %v105
  %v371 = vunpack.c.l.b16 %v106
  %v372 = vunpack.c.l.b16 %v107
  %v373 = vunpack.c.l.b16 %v108
  %v374 = vunpack.c.l.b16 %v109
  %v375 = vunpack.c.l.b16 %v110
  %v376 = vunpack.c.l.b16 %v111
  %v377 = vunpack.c.l.b16 %v112
  %v378 = vunpack.c.l.b16 %v113
  %v379 = vunpack.c.l.b16 %v114
  %v380 = vunpack.c.l.b16 %v115
  %v381 = vunpack.c.l.b16 %v116
  %v382 = vunpack.c.l.b16 %v117
  %v383 = vunpack.c.l.b16 %v118
  %v384 = vunpack.c.l.b16 %v119
  %v385 = vunpack.c.l.b16 %v120
  %v386 = vunpack.c.l.b16 %v121
  %v387 = vunpack.c.l.b16 %v122
  %v388 = vunpack.c.l.b16 %v123
  %v389 = vunpack.c.l.b16 %v124
  %v390 = vunpack.c.l.b16 %v125
  %v391 = vunpack.c.l.b16 %v126
  %v392 = vunpack.c.l.b16 %v127
  %v393 = vunpack.c.l.b16 %v128
  %v394 = vunpack.c.l.b16 %v129
  %v395 = vunpack.c.l.b16 %v130
  %v396 = vunpack.c.l.b16 %v131
  %v397 = vunpack.c.l.b16 %v132
  %v398 = vunpack.c.l.b16 %v133
  %v399 = vunpack.c.l.b16 %v134
  %v400 = vpack.c.b16 %v289, %v288
  %v401 = vpack.c.b16 %v291, %v290
  %v402 = vpack.c.b16 %v293, %v292
  %v403 = vpack.c.b16 %v295, %v294
  %v404 = vpack.c.b16 %v297, %v296
  %v405 = vpack.c.b16 %v299, %v298
  %v406 = vpack.c.b16 %v301, %v300
  %v407 = vpack.c.b16 %v303, %v302
  %v408 = vpack.c.b16 %v305, %v304
  %v409 = vpack.c.b16 %v307, %v306
  %v410 = vpack.c.b16 %v309, %v308
  %v411 = vpack.c.b16 %v311, %v310
  %v412 = vpack.c.b16 %v313, %v312
  %v413 = vpack.c.b16 %v315, %v314
  %v414 = vpack.c.b16 %v317, %v316
  %v415 = vpack.c.b16 %v319, %v318
  %v416 = vpack.c.b16 %v321, %v320
  %v417 = vpack.c.b16 %v323, %v322
  %v418 = vpack.c.b16 %v325, %v324
  %v419 = vpack.c.b16 %v327, %v326
  %v420 = vpack.c.b16 %v329, %v328
  %v421 = vpack.c.b16 %v331, %v330
  %v422 = vpack.c.b16 %v333, %v332
  %v423 = vpack.c.b16 %v335, %v334
  %v424 = vpack.c.b16 %v337, %v336
  %v425 = vpack.c.b16 %v339, %v338
  %v426 = vpack.c.b16 %v341, %v340
  %v427 = vpack.c.b16 %v343, %v342
  %v428 = vpack.c.b16 %v345, %v344
  %v429 = vpack.c.b16 %v347, %v346
  %v430 = vpack.c.b16 %v349, %v348
  %v431 = vpack.c.b16 %v351, %v350
  %v432 = vpack.c.b16 %v353, %v352
  %v433 = vpack.c.b16 %v355, %v354
  %v434 = vpack.c.b16 %v357, %v356
  %v435 = vpack.c.b16 %v359, %v358
  %v436 = vpack.c.b16 %v361, %v360
  %v437 = vpack.c.b16 %v363, %v362
  %v438 = vpack.c.b16 %v365, %v364
  %v439 = vpack.c.b16 %v367, %v366
  %v440 = vpack.c.b16 %v369, %v368
  %v441 = vpack.c.b16 %v371, %v370
  %v442 = vpack.c.b16 %v373, %v372
  %v443 = vpack.c.b16 %v375, %v374
  %v444 = vpack.c.b16 %v377, %v376
  %v445 = vpack.c.b16 %v379, %v378
  %v446 = vpack.c.b16 %v381, %v380
  %v447 = vpack.c.b16 %v383, %v382
  %v448 = vpack.c.b16 %v385, %v384
  %v449 = vpack.c.b16 %v387, %v386
  %v450 = vpack.c.b16 %v389, %v388
  %v451 = vpack.c.b16 %v391, %v390
  %v452 = vpack.c.b16 %v393, %v392
  %v453 = vpack.c.b16 %v395, %v394
  %v454 = vpack.c.b16 %v397, %v396
  %v455 = vpack.c.b16 %v399, %v398
  %512 = vmatprep.subr.bf16.mxu0 0
  %513 = vmatpush1.bf16.msra.mxu0 %v400
  %514 = vmatprep.subr.bf16.mxu0 0
  %515 = vmatpush1.bf16.msra.mxu0 %v401
  %516 = vmatprep.subr.bf16.mxu0 0
  %517 = vmatpush1.bf16.msra.mxu0 %v402
  %518 = vmatprep.subr.bf16.mxu0 0
  %519 = vmatpush1.bf16.msra.mxu0 %v403
  %520 = vmatprep.subr.bf16.mxu0 0
  %521 = vmatpush1.bf16.msra.mxu0 %v404
  %522 = vmatprep.subr.bf16.mxu0 0
  %523 = vmatpush1.bf16.msra.mxu0 %v405
  %524 = vmatprep.subr.bf16.mxu0 0
  %525 = vmatpush1.bf16.msra.mxu0 %v406
  %526 = vmatprep.subr.bf16.mxu0 0
  %527 = vmatpush1.bf16.msra.mxu0 %v407
  %528 = vmatprep.subr.bf16.mxu0 0
  %529 = vmatpush1.bf16.msra.mxu0 %v408
  %530 = vmatprep.subr.bf16.mxu0 0
  %531 = vmatpush1.bf16.msra.mxu0 %v409
  %532 = vmatprep.subr.bf16.mxu0 0
  %533 = vmatpush1.bf16.msra.mxu0 %v410
  %534 = vmatprep.subr.bf16.mxu0 0
  %535 = vmatpush1.bf16.msra.mxu0 %v411
  %536 = vmatprep.subr.bf16.mxu0 0
  %537 = vmatpush1.bf16.msra.mxu0 %v412
  %538 = vmatprep.subr.bf16.mxu0 0
  %539 = vmatpush1.bf16.msra.mxu0 %v413
  %540 = vmatprep.subr.bf16.mxu0 0
  %541 = vmatpush1.bf16.msra.mxu0 %v414
  %542 = vmatprep.subr.bf16.mxu0 0
  %543 = vmatpush1.bf16.msra.mxu0 %v415
  %544 = vmatprep.mubr.bf16.mxu0 %v163
  %545 = vmatmul.mubr.bf16.gmra.mrb[0].mxu0 %v162
  %v546 = vpop.f32.mrb[0].mxu0
  %v547 = vadd.f32 %v139, %v546
  %v548 = vpop.f32.mrb[0].mxu0
  %v549 = vpop.f32.mrb[0].mxu0
  %v550 = vadd.f32 %v139, %v549
  %v551 = vpop.f32.mrb[0].mxu0
  %552 = vdwg.mxu0
  %553 = vmatprep.subr.bf16.mxu0 0
  %554 = vmatpush1.bf16.msra.mxu0 %v416
  %555 = vmatprep.subr.bf16.mxu0 0
  %556 = vmatpush1.bf16.msra.mxu0 %v417
  %557 = vmatprep.subr.bf16.mxu0 0
  %558 = vmatpush1.bf16.msra.mxu0 %v418
  %559 = vmatprep.subr.bf16.mxu0 0
  %560 = vmatpush1.bf16.msra.mxu0 %v419
  %561 = vmatprep.subr.bf16.mxu0 0
  %562 = vmatpush1.bf16.msra.mxu0 %v420
  %563 = vmatprep.subr.bf16.mxu0 0
  %564 = vmatpush1.bf16.msra.mxu0 %v421
  %565 = vmatprep.subr.bf16.mxu0 0
  %566 = vmatpush1.bf16.msra.mxu0 %v422
  %567 = vmatprep.subr.bf16.mxu0 0
  %568 = vmatpush1.bf16.msra.mxu0 %v423
  %569 = vmatprep.subr.bf16.mxu0 0
  %570 = vmatpush1.bf16.msra.mxu0 %v424
  %571 = vmatprep.subr.bf16.mxu0 0
  %572 = vmatpush1.bf16.msra.mxu0 %v425
  %573 = vmatprep.subr.bf16.mxu0 0
  %574 = vmatpush1.bf16.msra.mxu0 %v426
  %575 = vmatprep.subr.bf16.mxu0 0
  %576 = vmatpush1.bf16.msra.mxu0 %v427
  %577 = vmatprep.subr.bf16.mxu0 0
  %578 = vmatpush1.bf16.msra.mxu0 %v428
  %579 = vmatprep.subr.bf16.mxu0 0
  %580 = vmatpush1.bf16.msra.mxu0 %v429
  %581 = vmatprep.subr.bf16.mxu0 0
  %582 = vmatpush1.bf16.msra.mxu0 %v430
  %583 = vmatprep.subr.bf16.mxu0 0
  %584 = vmatpush1.bf16.msra.mxu0 %v431
  %585 = vmatprep.mubr.bf16.mxu0 %v165
  %586 = vmatmul.mubr.bf16.gmra.mrb[0].mxu0 %v164
  %v587 = vpop.f32.mrb[0].mxu0
  %v588 = vadd.f32 %v547, %v587
  %v589 = vpop.f32.mrb[0].mxu0
  %v590 = vpop.f32.mrb[0].mxu0
  %v591 = vadd.f32 %v550, %v590
  %v592 = vpop.f32.mrb[0].mxu0
  %593 = vdwg.mxu0
  %594 = vmatprep.subr.bf16.mxu0 0
  %595 = vmatpush1.bf16.msra.mxu0 %v432
  %596 = vmatprep.subr.bf16.mxu0 0
  %597 = vmatpush1.bf16.msra.mxu0 %v433
  %598 = vmatprep.subr.bf16.mxu0 0
  %599 = vmatpush1.bf16.msra.mxu0 %v434
  %600 = vmatprep.subr.bf16.mxu0 0
  %601 = vmatpush1.bf16.msra.mxu0 %v435
  %602 = vmatprep.subr.bf16.mxu0 0
  %603 = vmatpush1.bf16.msra.mxu0 %v436
  %604 = vmatprep.subr.bf16.mxu0 0
  %605 = vmatpush1.bf16.msra.mxu0 %v437
  %606 = vmatprep.subr.bf16.mxu0 0
  %607 = vmatpush1.bf16.msra.mxu0 %v438
  %608 = vmatprep.subr.bf16.mxu0 0
  %609 = vmatpush1.bf16.msra.mxu0 %v439
  %610 = vmatprep.subr.bf16.mxu0 0
  %611 = vmatpush1.bf16.msra.mxu0 %v440
  %612 = vmatprep.subr.bf16.mxu0 0
  %613 = vmatpush1.bf16.msra.mxu0 %v441
  %614 = vmatprep.subr.bf16.mxu0 0
  %615 = vmatpush1.bf16.msra.mxu0 %v442
  %616 = vmatprep.subr.bf16.mxu0 0
  %617 = vmatpush1.bf16.msra.mxu0 %v443
  %618 = vmatprep.subr.bf16.mxu0 0
  %619 = vmatpush1.bf16.msra.mxu0 %v444
  %620 = vmatprep.subr.bf16.mxu0 0
  %621 = vmatpush1.bf16.msra.mxu0 %v445
  %622 = vmatprep.subr.bf16.mxu0 0
  %623 = vmatpush1.bf16.msra.mxu0 %v446
  %624 = vmatprep.subr.bf16.mxu0 0
  %625 = vmatpush1.bf16.msra.mxu0 %v447
  %626 = vmatprep.mubr.bf16.mxu0 %v167
  %627 = vmatmul.mubr.bf16.gmra.mrb[0].mxu0 %v166
  %v628 = vpop.f32.mrb[0].mxu0
  %v629 = vadd.f32 %v588, %v628
  %v630 = vpop.f32.mrb[0].mxu0
  %v631 = vpop.f32.mrb[0].mxu0
  %v632 = vadd.f32 %v591, %v631
  %v633 = vpop.f32.mrb[0].mxu0
  %634 = vdwg.mxu0
  %635 = vmatprep.subr.bf16.mxu0 0
  %636 = vmatpush1.bf16.msra.mxu0 %v448
  %637 = vmatprep.subr.bf16.mxu0 0
  %638 = vmatpush1.bf16.msra.mxu0 %v449
  %639 = vmatprep.subr.bf16.mxu0 0
  %640 = vmatpush1.bf16.msra.mxu0 %v450
  %641 = vmatprep.subr.bf16.mxu0 0
  %642 = vmatpush1.bf16.msra.mxu0 %v451
  %643 = vmatprep.subr.bf16.mxu0 0
  %644 = vmatpush1.bf16.msra.mxu0 %v452
  %645 = vmatprep.subr.bf16.mxu0 0
  %646 = vmatpush1.bf16.msra.mxu0 %v453
  %647 = vmatprep.subr.bf16.mxu0 0
  %648 = vmatpush1.bf16.msra.mxu0 %v454
  %649 = vmatprep.subr.bf16.mxu0 0
  %650 = vmatpush1.bf16.msra.mxu0 %v455
  %651 = vmatprep.subr.bf16.mxu0 0
  %652 = vmatpush1.bf16.msra.mxu0 0
  %653 = vmatprep.subr.bf16.mxu0 0
  %654 = vmatpush1.bf16.msra.mxu0 0
  %655 = vmatprep.subr.bf16.mxu0 0
  %656 = vmatpush1.bf16.msra.mxu0 0
  %657 = vmatprep.subr.bf16.mxu0 0
  %658 = vmatpush1.bf16.msra.mxu0 0
  %659 = vmatprep.subr.bf16.mxu0 0
  %660 = vmatpush1.bf16.msra.mxu0 0
  %661 = vmatprep.subr.bf16.mxu0 0
  %662 = vmatpush1.bf16.msra.mxu0 0
  %663 = vmatprep.subr.bf16.mxu0 0
  %664 = vmatpush1.bf16.msra.mxu0 0
  %665 = vmatprep.subr.bf16.mxu0 0
  %666 = vmatpush1.bf16.msra.mxu0 0
  %667 = vmatprep.mubr.bf16.mxu0 0
  %668 = vmatmul.mubr.bf16.gmra.mrb[0].mxu0 %v168
  %v669 = vpop.f32.mrb[0].mxu0
  %v670 = vadd.f32 %v629, %v669
  %v671 = vpop.f32.mrb[0].mxu0
  %v672 = vpop.f32.mrb[0].mxu0
  %v673 = vadd.f32 %v632, %v672
  %v674 = vpop.f32.mrb[0].mxu0
  %675 = vdwg.mxu0
  %v676 = vmul.f32 %v670, 0.2
  %v677 = vmul.f32 %v673, 0.2
  %v678 = vmax.f32 %v670, %v676
  %v679 = vmax.f32 %v673, %v677
  %v680 = vld [vmem:[%s2 + $0x1] sm:$0x1]
  %v681 = vlaneseq
  %v682 = vshrl.u32 %v681, 7
  %v683 = vsub.s32 0, %v682
  %v684 = vrot.slane %v680, %v683
  %v685 = vmul.f32 %v678, %v684
  %v686 = vmul.f32 %v679, %v684
  %v687 = vld [vmem:[%s2 + $0x2] sm:$0x1]
  %v688 = vlaneseq
  %v689 = vshrl.u32 %v688, 7
  %v690 = vsub.s32 0, %v689
  %v691 = vrot.slane %v687, %v690
  %v692 = vadd.f32 %v685, %v691
  %v693 = vadd.f32 %v686, %v691
  %v694 = vpack.c.bf16 %v693, %v692
  %v696 = vunpack.c.l.b16 %v694
  %v697 = vunpack.c.h.b16 %v694
  %v698 = vpack.c.b16 %v696, %v696
  %v699 = vpack.c.b16 %v697, %v697
  %702 = vst [vmem:[%s3] sm:$0xf] %v698
  %703 = vst [vmem:[%s3 + $0x4] sm:$0xf] %v699
  // Predicated region
  $region14: #{discriminator_forward.7} parent=0 // pred_check
    _
  $region15: #{discriminator_forward.7} parent=0 // pred_check_branch
    %705 = sbr.rel (0) target = $region17
  $region16: #{discriminator_forward.7} parent=0 // pred_region
    _
  $region17: #{discriminator_forward.7} parent=0 // pred_fallthru
    _
  // Predicated region
  $region18: #{discriminator_forward.7} parent=0 // pred_check
    _
  $region19: #{discriminator_forward.7} parent=0 // pred_check_branch
    %707 = sbr.rel (0) target = $region21
  $region20: #{discriminator_forward.7} parent=0 // pred_region
    _
  $region21: #{discriminator_forward.7} parent=0 // pred_fallthru
    _

// kernel: discriminator_forward.9
$region0: #{discriminator_forward.9}
  #allocation0 [shape = 'u32[]', space=smem, size = 0x4, offset = 0x4, fixed_abs, tag = 'smem constant byte address 0x4 - core index']
  #allocation1 [shape = 'u32[144,128]{1,0:T(1,128)}', space=vmem, size = 0x12000, scoped, tag = 'internal scratch']
  %s0 = inlined_call_operand.vmem [shape: bf16[8,128], index: 0, kind: input, shape index: {}]
  %s1 = inlined_call_operand.vmem [shape: bf16[128,128], index: 1, kind: input, shape index: {}]
  %s2 = inlined_call_operand.vmem [shape: f32[1,128], index: 2, kind: input, shape index: {}]
  %s3 = inlined_call_operand.vmem [shape: f32[8,128], index: 3, kind: output, shape index: {}]
  %s4 = sld [smem:[#allocation0]]
  $region22: #{discriminator_forward.9} parent=0
    _
  %s6 = ssub.s32 1, %s4
  %s7 = scalar_select 0, %s6, %s4
  // Predicated region
  $region2: #{discriminator_forward.9} parent=0 // pred_check
    _
  $region3: #{discriminator_forward.9} parent=0 // pred_check_branch
    %9 = sbr.rel (0) target = $region5
  $region4: #{discriminator_forward.9} parent=0 // pred_region
    _
  $region5: #{discriminator_forward.9} parent=0 // pred_fallthru
    _
  // Predicated region
  $region6: #{discriminator_forward.9} parent=0 // pred_check
    _
  $region7: #{discriminator_forward.9} parent=0 // pred_check_branch
    %11 = sbr.rel (0) target = $region9
  $region8: #{discriminator_forward.9} parent=0 // pred_region
    _
  $region9: #{discriminator_forward.9} parent=0 // pred_fallthru
    _
  // Predicated region
  $region10: #{discriminator_forward.9} parent=0 // pred_check
    _
  $region11: #{discriminator_forward.9} parent=0 // pred_check_branch
    %13 = sbr.rel (0) target = $region13
  $region12: #{discriminator_forward.9} parent=0 // pred_region
    _
  $region13: #{discriminator_forward.9} parent=0 // pred_fallthru
    _
  %v15 = vld [vmem:[%s0] sm:$0xf]
  %v16 = vld [vmem:[%s1] sm:$0xf]
  %v17 = vld [vmem:[%s1 + $0x4] sm:$0xf]
  %v18 = vld [vmem:[%s1 + $0x8] sm:$0xf]
  %v19 = vld [vmem:[%s1 + $0xc] sm:$0xf]
  %v20 = vld [vmem:[%s1 + $0x10] sm:$0xf]
  %v21 = vld [vmem:[%s1 + $0x14] sm:$0xf]
  %v22 = vld [vmem:[%s1 + $0x18] sm:$0xf]
  %v23 = vld [vmem:[%s1 + $0x1c] sm:$0xf]
  %v24 = vld [vmem:[%s1 + $0x20] sm:$0xf]
  %v25 = vld [vmem:[%s1 + $0x24] sm:$0xf]
  %v26 = vld [vmem:[%s1 + $0x28] sm:$0xf]
  %v27 = vld [vmem:[%s1 + $0x2c] sm:$0xf]
  %v28 = vld [vmem:[%s1 + $0x30] sm:$0xf]
  %v29 = vld [vmem:[%s1 + $0x34] sm:$0xf]
  %v30 = vld [vmem:[%s1 + $0x38] sm:$0xf]
  %v31 = vld [vmem:[%s1 + $0x3c] sm:$0xf]
  %v32 = vld [vmem:[%s2] sm:$0x1]
  %v34 = vlaneseq
  %v35 = vshrl.u32 %v34, 7
  %v36 = vsub.s32 0, %v35
  %v37 = vrot.slane %v32, %v36
  %v55 = vunpack.c.l.b16 %v16
  %v56 = vunpack.c.l.b16 %v17
  %v57 = vunpack.c.l.b16 %v18
  %v58 = vunpack.c.l.b16 %v19
  %v59 = vunpack.c.l.b16 %v20
  %v60 = vunpack.c.l.b16 %v21
  %v61 = vunpack.c.l.b16 %v22
  %v62 = vunpack.c.l.b16 %v23
  %v63 = vunpack.c.l.b16 %v24
  %v64 = vunpack.c.l.b16 %v25
  %v65 = vunpack.c.l.b16 %v26
  %v66 = vunpack.c.l.b16 %v27
  %v67 = vunpack.c.l.b16 %v28
  %v68 = vunpack.c.l.b16 %v29
  %v69 = vunpack.c.l.b16 %v30
  %v70 = vunpack.c.l.b16 %v31
  %v71 = vpack.c.b16 %v56, %v55
  %v72 = vpack.c.b16 %v58, %v57
  %v73 = vpack.c.b16 %v60, %v59
  %v74 = vpack.c.b16 %v62, %v61
  %v75 = vpack.c.b16 %v64, %v63
  %v76 = vpack.c.b16 %v66, %v65
  %v77 = vpack.c.b16 %v68, %v67
  %v78 = vpack.c.b16 %v70, %v69
  %87 = vmatprep.subr.bf16.mxu0 0
  %88 = vmatpush1.bf16.msra.mxu0 %v71
  %89 = vmatprep.subr.bf16.mxu0 0
  %90 = vmatpush1.bf16.msra.mxu0 %v72
  %91 = vmatprep.subr.bf16.mxu0 0
  %92 = vmatpush1.bf16.msra.mxu0 %v73
  %93 = vmatprep.subr.bf16.mxu0 0
  %94 = vmatpush1.bf16.msra.mxu0 %v74
  %95 = vmatprep.subr.bf16.mxu0 0
  %96 = vmatpush1.bf16.msra.mxu0 %v75
  %97 = vmatprep.subr.bf16.mxu0 0
  %98 = vmatpush1.bf16.msra.mxu0 %v76
  %99 = vmatprep.subr.bf16.mxu0 0
  %100 = vmatpush1.bf16.msra.mxu0 %v77
  %101 = vmatprep.subr.bf16.mxu0 0
  %102 = vmatpush1.bf16.msra.mxu0 %v78
  %103 = vmatprep.subr.bf16.mxu0 0
  %104 = vmatpush1.bf16.msra.mxu0 0
  %105 = vmatprep.subr.bf16.mxu0 0
  %106 = vmatpush1.bf16.msra.mxu0 0
  %107 = vmatprep.subr.bf16.mxu0 0
  %108 = vmatpush1.bf16.msra.mxu0 0
  %109 = vmatprep.subr.bf16.mxu0 0
  %110 = vmatpush1.bf16.msra.mxu0 0
  %111 = vmatprep.subr.bf16.mxu0 0
  %112 = vmatpush1.bf16.msra.mxu0 0
  %113 = vmatprep.subr.bf16.mxu0 0
  %114 = vmatpush1.bf16.msra.mxu0 0
  %115 = vmatprep.subr.bf16.mxu0 0
  %116 = vmatpush1.bf16.msra.mxu0 0
  %117 = vmatprep.subr.bf16.mxu0 0
  %118 = vmatpush1.bf16.msra.mxu0 0
  %119 = vmatprep.mubr.bf16.mxu0 0
  %120 = vmatmul.mubr.bf16.gmra.mrb[0].mxu0 %v15
  %v121 = vpop.f32.mrb[0].mxu0
  %v122 = vadd.f32 %v37, %v121
  %v123 = vpop.f32.mrb[0].mxu0
  %v124 = vpop.f32.mrb[0].mxu0
  %v125 = vpop.f32.mrb[0].mxu0
  %126 = vdwg.mxu0
  %v127 = vmul.f32 %v122, 0.5
  %v128 = vtanh.pop %v127
  %v129 = vadd.f32 %v128, 1.0
  %v130 = vmul.f32 %v129, 0.5
  %131 = vst [vmem:[%s3] sm:$0xff] %v130
  // Predicated region
  $region14: #{discriminator_forward.9} parent=0 // pred_check
    _
  $region15: #{discriminator_forward.9} parent=0 // pred_check_branch
    %133 = sbr.rel (0) target = $region17
  $region16: #{discriminator_forward.9} parent=0 // pred_region
    _
  $region17: #{discriminator_forward.9} parent=0 // pred_fallthru
    _
  // Predicated region
  $region18: #{discriminator_forward.9} parent=0 // pred_check
    _
  $region19: #{discriminator_forward.9} parent=0 // pred_check_branch
    %135 = sbr.rel (0) target = $region21
  $region20: #{discriminator_forward.9} parent=0 // pred_region
    _
  $region21: #{discriminator_forward.9} parent=0 // pred_fallthru
    _

// kernel: discriminator_forward.8
$region0: #{discriminator_forward.8}
  #allocation0 [shape = 'u32[]', space=smem, size = 0x4, offset = 0x4, fixed_abs, tag = 'smem constant byte address 0x4 - core index']
  #allocation1 [shape = 'u32[144,128]{1,0:T(1,128)}', space=vmem, size = 0x12000, scoped, tag = 'internal scratch']
  %s0 = inlined_call_operand.vmem [shape: bf16[8,1792], index: 0, kind: input, shape index: {}]
  %s1 = inlined_call_operand.vmem [shape: bf16[1792,128], index: 1, kind: input, shape index: {}]
  %s2 = inlined_call_operand.vmem [shape: f32[8,128], index: 2, kind: input, shape index: {}]
  %s3 = inlined_call_operand.vmem [shape: bf16[8,128], index: 3, kind: output, shape index: {}]
  %s4 = sld [smem:[#allocation0]]
  $region22: #{discriminator_forward.8} parent=0
    _
  %s6 = ssub.s32 1, %s4
  %s7 = scalar_select 0, %s6, %s4
  // Predicated region
  $region2: #{discriminator_forward.8} parent=0 // pred_check
    _
  $region3: #{discriminator_forward.8} parent=0 // pred_check_branch
    %9 = sbr.rel (0) target = $region5
  $region4: #{discriminator_forward.8} parent=0 // pred_region
    _
  $region5: #{discriminator_forward.8} parent=0 // pred_fallthru
    _
  // Predicated region
  $region6: #{discriminator_forward.8} parent=0 // pred_check
    _
  $region7: #{discriminator_forward.8} parent=0 // pred_check_branch
    %11 = sbr.rel (0) target = $region9
  $region8: #{discriminator_forward.8} parent=0 // pred_region
    _
  $region9: #{discriminator_forward.8} parent=0 // pred_fallthru
    _
  // Predicated region
  $region10: #{discriminator_forward.8} parent=0 // pred_check
    _
  $region11: #{discriminator_forward.8} parent=0 // pred_check_branch
    %13 = sbr.rel (0) target = $region13
  $region12: #{discriminator_forward.8} parent=0 // pred_region
    _
  $region13: #{discriminator_forward.8} parent=0 // pred_fallthru
    _
  %v15 = vld [vmem:[%s0] sm:$0xff]
  %v16 = vld [vmem:[%s0 + $0x8] sm:$0xff]
  %v17 = vld [vmem:[%s0 + $0x10] sm:$0xff]
  %v18 = vld [vmem:[%s0 + $0x18] sm:$0xff]
  %v19 = vld [vmem:[%s0 + $0x20] sm:$0xff]
  %v20 = vld [vmem:[%s0 + $0x28] sm:$0xff]
  %v21 = vld [vmem:[%s0 + $0x30] sm:$0xff]
  %v22 = vld [vmem:[%s1] sm:$0xf]
  %v23 = vld [vmem:[%s1 + $0x4] sm:$0xf]
  %v24 = vld [vmem:[%s1 + $0x8] sm:$0xf]
  %v25 = vld [vmem:[%s1 + $0xc] sm:$0xf]
  %v26 = vld [vmem:[%s1 + $0x10] sm:$0xf]
  %v27 = vld [vmem:[%s1 + $0x14] sm:$0xf]
  %v28 = vld [vmem:[%s1 + $0x18] sm:$0xf]
  %v29 = vld [vmem:[%s1 + $0x1c] sm:$0xf]
  %v30 = vld [vmem:[%s1 + $0x20] sm:$0xf]
  %v31 = vld [vmem:[%s1 + $0x24] sm:$0xf]
  %v32 = vld [vmem:[%s1 + $0x28] sm:$0xf]
  %v33 = vld [vmem:[%s1 + $0x2c] sm:$0xf]
  %v34 = vld [vmem:[%s1 + $0x30] sm:$0xf]
  %v35 = vld [vmem:[%s1 + $0x34] sm:$0xf]
  %v36 = vld [vmem:[%s1 + $0x38] sm:$0xf]
  %v37 = vld [vmem:[%s1 + $0x3c] sm:$0xf]
  %v38 = vld [vmem:[%s1 + $0x40] sm:$0xf]
  %v39 = vld [vmem:[%s1 + $0x44] sm:$0xf]
  %v40 = vld [vmem:[%s1 + $0x48] sm:$0xf]
  %v41 = vld [vmem:[%s1 + $0x4c] sm:$0xf]
  %v42 = vld [vmem:[%s1 + $0x50] sm:$0xf]
  %v43 = vld [vmem:[%s1 + $0x54] sm:$0xf]
  %v44 = vld [vmem:[%s1 + $0x58] sm:$0xf]
  %v45 = vld [vmem:[%s1 + $0x5c] sm:$0xf]
  %v46 = vld [vmem:[%s1 + $0x60] sm:$0xf]
  %v47 = vld [vmem:[%s1 + $0x64] sm:$0xf]
  %v48 = vld [vmem:[%s1 + $0x68] sm:$0xf]
  %v49 = vld [vmem:[%s1 + $0x6c] sm:$0xf]
  %v50 = vld [vmem:[%s1 + $0x70] sm:$0xf]
  %v51 = vld [vmem:[%s1 + $0x74] sm:$0xf]
  %v52 = vld [vmem:[%s1 + $0x78] sm:$0xf]
  %v53 = vld [vmem:[%s1 + $0x7c] sm:$0xf]
  %v54 = vld [vmem:[%s1 + $0x80] sm:$0xf]
  %v55 = vld [vmem:[%s1 + $0x84] sm:$0xf]
  %v56 = vld [vmem:[%s1 + $0x88] sm:$0xf]
  %v57 = vld [vmem:[%s1 + $0x8c] sm:$0xf]
  %v58 = vld [vmem:[%s1 + $0x90] sm:$0xf]
  %v59 = vld [vmem:[%s1 + $0x94] sm:$0xf]
  %v60 = vld [vmem:[%s1 + $0x98] sm:$0xf]
  %v61 = vld [vmem:[%s1 + $0x9c] sm:$0xf]
  %v62 = vld [vmem:[%s1 + $0xa0] sm:$0xf]
  %v63 = vld [vmem:[%s1 + $0xa4] sm:$0xf]
  %v64 = vld [vmem:[%s1 + $0xa8] sm:$0xf]
  %v65 = vld [vmem:[%s1 + $0xac] sm:$0xf]
  %v66 = vld [vmem:[%s1 + $0xb0] sm:$0xf]
  %v67 = vld [vmem:[%s1 + $0xb4] sm:$0xf]
  %v68 = vld [vmem:[%s1 + $0xb8] sm:$0xf]
  %v69 = vld [vmem:[%s1 + $0xbc] sm:$0xf]
  %v70 = vld [vmem:[%s1 + $0xc0] sm:$0xf]
  %v71 = vld [vmem:[%s1 + $0xc4] sm:$0xf]
  %v72 = vld [vmem:[%s1 + $0xc8] sm:$0xf]
  %v73 = vld [vmem:[%s1 + $0xcc] sm:$0xf]
  %v74 = vld [vmem:[%s1 + $0xd0] sm:$0xf]
  %v75 = vld [vmem:[%s1 + $0xd4] sm:$0xf]
  %v76 = vld [vmem:[%s1 + $0xd8] sm:$0xf]
  %v77 = vld [vmem:[%s1 + $0xdc] sm:$0xf]
  %v78 = vld [vmem:[%s1 + $0xe0] sm:$0xf]
  %v79 = vld [vmem:[%s1 + $0xe4] sm:$0xf]
  %v80 = vld [vmem:[%s1 + $0xe8] sm:$0xf]
  %v81 = vld [vmem:[%s1 + $0xec] sm:$0xf]
  %v82 = vld [vmem:[%s1 + $0xf0] sm:$0xf]
  %v83 = vld [vmem:[%s1 + $0xf4] sm:$0xf]
  %v84 = vld [vmem:[%s1 + $0xf8] sm:$0xf]
  %v85 = vld [vmem:[%s1 + $0xfc] sm:$0xf]
  %v86 = vld [vmem:[%s1 + $0x100] sm:$0xf]
  %v87 = vld [vmem:[%s1 + $0x104] sm:$0xf]
  %v88 = vld [vmem:[%s1 + $0x108] sm:$0xf]
  %v89 = vld [vmem:[%s1 + $0x10c] sm:$0xf]
  %v90 = vld [vmem:[%s1 + $0x110] sm:$0xf]
  %v91 = vld [vmem:[%s1 + $0x114] sm:$0xf]
  %v92 = vld [vmem:[%s1 + $0x118] sm:$0xf]
  %v93 = vld [vmem:[%s1 + $0x11c] sm:$0xf]
  %v94 = vld [vmem:[%s1 + $0x120] sm:$0xf]
  %v95 = vld [vmem:[%s1 + $0x124] sm:$0xf]
  %v96 = vld [vmem:[%s1 + $0x128] sm:$0xf]
  %v97 = vld [vmem:[%s1 + $0x12c] sm:$0xf]
  %v98 = vld [vmem:[%s1 + $0x130] sm:$0xf]
  %v99 = vld [vmem:[%s1 + $0x134] sm:$0xf]
  %v100 = vld [vmem:[%s1 + $0x138] sm:$0xf]
  %v101 = vld [vmem:[%s1 + $0x13c] sm:$0xf]
  %v102 = vld [vmem:[%s1 + $0x140] sm:$0xf]
  %v103 = vld [vmem:[%s1 + $0x144] sm:$0xf]
  %v104 = vld [vmem:[%s1 + $0x148] sm:$0xf]
  %v105 = vld [vmem:[%s1 + $0x14c] sm:$0xf]
  %v106 = vld [vmem:[%s1 + $0x150] sm:$0xf]
  %v107 = vld [vmem:[%s1 + $0x154] sm:$0xf]
  %v108 = vld [vmem:[%s1 + $0x158] sm:$0xf]
  %v109 = vld [vmem:[%s1 + $0x15c] sm:$0xf]
  %v110 = vld [vmem:[%s1 + $0x160] sm:$0xf]
  %v111 = vld [vmem:[%s1 + $0x164] sm:$0xf]
  %v112 = vld [vmem:[%s1 + $0x168] sm:$0xf]
  %v113 = vld [vmem:[%s1 + $0x16c] sm:$0xf]
  %v114 = vld [vmem:[%s1 + $0x170] sm:$0xf]
  %v115 = vld [vmem:[%s1 + $0x174] sm:$0xf]
  %v116 = vld [vmem:[%s1 + $0x178] sm:$0xf]
  %v117 = vld [vmem:[%s1 + $0x17c] sm:$0xf]
  %v118 = vld [vmem:[%s1 + $0x180] sm:$0xf]
  %v119 = vld [vmem:[%s1 + $0x184] sm:$0xf]
  %v120 = vld [vmem:[%s1 + $0x188] sm:$0xf]
  %v121 = vld [vmem:[%s1 + $0x18c] sm:$0xf]
  %v122 = vld [vmem:[%s1 + $0x190] sm:$0xf]
  %v123 = vld [vmem:[%s1 + $0x194] sm:$0xf]
  %v124 = vld [vmem:[%s1 + $0x198] sm:$0xf]
  %v125 = vld [vmem:[%s1 + $0x19c] sm:$0xf]
  %v126 = vld [vmem:[%s1 + $0x1a0] sm:$0xf]
  %v127 = vld [vmem:[%s1 + $0x1a4] sm:$0xf]
  %v128 = vld [vmem:[%s1 + $0x1a8] sm:$0xf]
  %v129 = vld [vmem:[%s1 + $0x1ac] sm:$0xf]
  %v130 = vld [vmem:[%s1 + $0x1b0] sm:$0xf]
  %v131 = vld [vmem:[%s1 + $0x1b4] sm:$0xf]
  %v132 = vld [vmem:[%s1 + $0x1b8] sm:$0xf]
  %v133 = vld [vmem:[%s1 + $0x1bc] sm:$0xf]
  %v134 = vld [vmem:[%s1 + $0x1c0] sm:$0xf]
  %v135 = vld [vmem:[%s1 + $0x1c4] sm:$0xf]
  %v136 = vld [vmem:[%s1 + $0x1c8] sm:$0xf]
  %v137 = vld [vmem:[%s1 + $0x1cc] sm:$0xf]
  %v138 = vld [vmem:[%s1 + $0x1d0] sm:$0xf]
  %v139 = vld [vmem:[%s1 + $0x1d4] sm:$0xf]
  %v140 = vld [vmem:[%s1 + $0x1d8] sm:$0xf]
  %v141 = vld [vmem:[%s1 + $0x1dc] sm:$0xf]
  %v142 = vld [vmem:[%s1 + $0x1e0] sm:$0xf]
  %v143 = vld [vmem:[%s1 + $0x1e4] sm:$0xf]
  %v144 = vld [vmem:[%s1 + $0x1e8] sm:$0xf]
  %v145 = vld [vmem:[%s1 + $0x1ec] sm:$0xf]
  %v146 = vld [vmem:[%s1 + $0x1f0] sm:$0xf]
  %v147 = vld [vmem:[%s1 + $0x1f4] sm:$0xf]
  %v148 = vld [vmem:[%s1 + $0x1f8] sm:$0xf]
  %v149 = vld [vmem:[%s1 + $0x1fc] sm:$0xf]
  %v150 = vld [vmem:[%s1 + $0x200] sm:$0xf]
  %v151 = vld [vmem:[%s1 + $0x204] sm:$0xf]
  %v152 = vld [vmem:[%s1 + $0x208] sm:$0xf]
  %v153 = vld [vmem:[%s1 + $0x20c] sm:$0xf]
  %v154 = vld [vmem:[%s1 + $0x210] sm:$0xf]
  %v155 = vld [vmem:[%s1 + $0x214] sm:$0xf]
  %v156 = vld [vmem:[%s1 + $0x218] sm:$0xf]
  %v157 = vld [vmem:[%s1 + $0x21c] sm:$0xf]
  %v158 = vld [vmem:[%s1 + $0x220] sm:$0xf]
  %v159 = vld [vmem:[%s1 + $0x224] sm:$0xf]
  %v160 = vld [vmem:[%s1 + $0x228] sm:$0xf]
  %v161 = vld [vmem:[%s1 + $0x22c] sm:$0xf]
  %v162 = vld [vmem:[%s1 + $0x230] sm:$0xf]
  %v163 = vld [vmem:[%s1 + $0x234] sm:$0xf]
  %v164 = vld [vmem:[%s1 + $0x238] sm:$0xf]
  %v165 = vld [vmem:[%s1 + $0x23c] sm:$0xf]
  %v166 = vld [vmem:[%s1 + $0x240] sm:$0xf]
  %v167 = vld [vmem:[%s1 + $0x244] sm:$0xf]
  %v168 = vld [vmem:[%s1 + $0x248] sm:$0xf]
  %v169 = vld [vmem:[%s1 + $0x24c] sm:$0xf]
  %v170 = vld [vmem:[%s1 + $0x250] sm:$0xf]
  %v171 = vld [vmem:[%s1 + $0x254] sm:$0xf]
  %v172 = vld [vmem:[%s1 + $0x258] sm:$0xf]
  %v173 = vld [vmem:[%s1 + $0x25c] sm:$0xf]
  %v174 = vld [vmem:[%s1 + $0x260] sm:$0xf]
  %v175 = vld [vmem:[%s1 + $0x264] sm:$0xf]
  %v176 = vld [vmem:[%s1 + $0x268] sm:$0xf]
  %v177 = vld [vmem:[%s1 + $0x26c] sm:$0xf]
  %v178 = vld [vmem:[%s1 + $0x270] sm:$0xf]
  %v179 = vld [vmem:[%s1 + $0x274] sm:$0xf]
  %v180 = vld [vmem:[%s1 + $0x278] sm:$0xf]
  %v181 = vld [vmem:[%s1 + $0x27c] sm:$0xf]
  %v182 = vld [vmem:[%s1 + $0x280] sm:$0xf]
  %v183 = vld [vmem:[%s1 + $0x284] sm:$0xf]
  %v184 = vld [vmem:[%s1 + $0x288] sm:$0xf]
  %v185 = vld [vmem:[%s1 + $0x28c] sm:$0xf]
  %v186 = vld [vmem:[%s1 + $0x290] sm:$0xf]
  %v187 = vld [vmem:[%s1 + $0x294] sm:$0xf]
  %v188 = vld [vmem:[%s1 + $0x298] sm:$0xf]
  %v189 = vld [vmem:[%s1 + $0x29c] sm:$0xf]
  %v190 = vld [vmem:[%s1 + $0x2a0] sm:$0xf]
  %v191 = vld [vmem:[%s1 + $0x2a4] sm:$0xf]
  %v192 = vld [vmem:[%s1 + $0x2a8] sm:$0xf]
  %v193 = vld [vmem:[%s1 + $0x2ac] sm:$0xf]
  %v194 = vld [vmem:[%s1 + $0x2b0] sm:$0xf]
  %v195 = vld [vmem:[%s1 + $0x2b4] sm:$0xf]
  %v196 = vld [vmem:[%s1 + $0x2b8] sm:$0xf]
  %v197 = vld [vmem:[%s1 + $0x2bc] sm:$0xf]
  %v198 = vld [vmem:[%s1 + $0x2c0] sm:$0xf]
  %v199 = vld [vmem:[%s1 + $0x2c4] sm:$0xf]
  %v200 = vld [vmem:[%s1 + $0x2c8] sm:$0xf]
  %v201 = vld [vmem:[%s1 + $0x2cc] sm:$0xf]
  %v202 = vld [vmem:[%s1 + $0x2d0] sm:$0xf]
  %v203 = vld [vmem:[%s1 + $0x2d4] sm:$0xf]
  %v204 = vld [vmem:[%s1 + $0x2d8] sm:$0xf]
  %v205 = vld [vmem:[%s1 + $0x2dc] sm:$0xf]
  %v206 = vld [vmem:[%s1 + $0x2e0] sm:$0xf]
  %v207 = vld [vmem:[%s1 + $0x2e4] sm:$0xf]
  %v208 = vld [vmem:[%s1 + $0x2e8] sm:$0xf]
  %v209 = vld [vmem:[%s1 + $0x2ec] sm:$0xf]
  %v210 = vld [vmem:[%s1 + $0x2f0] sm:$0xf]
  %v211 = vld [vmem:[%s1 + $0x2f4] sm:$0xf]
  %v212 = vld [vmem:[%s1 + $0x2f8] sm:$0xf]
  %v213 = vld [vmem:[%s1 + $0x2fc] sm:$0xf]
  %v214 = vld [vmem:[%s1 + $0x300] sm:$0xf]
  %v215 = vld [vmem:[%s1 + $0x304] sm:$0xf]
  %v216 = vld [vmem:[%s1 + $0x308] sm:$0xf]
  %v217 = vld [vmem:[%s1 + $0x30c] sm:$0xf]
  %v218 = vld [vmem:[%s1 + $0x310] sm:$0xf]
  %v219 = vld [vmem:[%s1 + $0x314] sm:$0xf]
  %v220 = vld [vmem:[%s1 + $0x318] sm:$0xf]
  %v221 = vld [vmem:[%s1 + $0x31c] sm:$0xf]
  %v222 = vld [vmem:[%s1 + $0x320] sm:$0xf]
  %v223 = vld [vmem:[%s1 + $0x324] sm:$0xf]
  %v224 = vld [vmem:[%s1 + $0x328] sm:$0xf]
  %v225 = vld [vmem:[%s1 + $0x32c] sm:$0xf]
  %v226 = vld [vmem:[%s1 + $0x330] sm:$0xf]
  %v227 = vld [vmem:[%s1 + $0x334] sm:$0xf]
  %v228 = vld [vmem:[%s1 + $0x338] sm:$0xf]
  %v229 = vld [vmem:[%s1 + $0x33c] sm:$0xf]
  %v230 = vld [vmem:[%s1 + $0x340] sm:$0xf]
  %v231 = vld [vmem:[%s1 + $0x344] sm:$0xf]
  %v232 = vld [vmem:[%s1 + $0x348] sm:$0xf]
  %v233 = vld [vmem:[%s1 + $0x34c] sm:$0xf]
  %v234 = vld [vmem:[%s1 + $0x350] sm:$0xf]
  %v235 = vld [vmem:[%s1 + $0x354] sm:$0xf]
  %v236 = vld [vmem:[%s1 + $0x358] sm:$0xf]
  %v237 = vld [vmem:[%s1 + $0x35c] sm:$0xf]
  %v238 = vld [vmem:[%s1 + $0x360] sm:$0xf]
  %v239 = vld [vmem:[%s1 + $0x364] sm:$0xf]
  %v240 = vld [vmem:[%s1 + $0x368] sm:$0xf]
  %v241 = vld [vmem:[%s1 + $0x36c] sm:$0xf]
  %v242 = vld [vmem:[%s1 + $0x370] sm:$0xf]
  %v243 = vld [vmem:[%s1 + $0x374] sm:$0xf]
  %v244 = vld [vmem:[%s1 + $0x378] sm:$0xf]
  %v245 = vld [vmem:[%s1 + $0x37c] sm:$0xf]
  %v246 = vld [vmem:[%s2] sm:$0x1]
  %v247 = vlaneseq
  %v248 = vshrl.u32 %v247, 7
  %v249 = vsub.s32 0, %v248
  %v250 = vrot.slane %v246, %v249
  %v258 = vunpack.c.l.b16 %v15
  %v259 = vunpack.c.h.b16 %v15
  %v260 = vunpack.c.l.b16 %v16
  %v261 = vunpack.c.h.b16 %v16
  %v262 = vunpack.c.l.b16 %v17
  %v263 = vunpack.c.h.b16 %v17
  %v264 = vunpack.c.l.b16 %v18
  %v265 = vunpack.c.h.b16 %v18
  %v266 = vunpack.c.l.b16 %v19
  %v267 = vunpack.c.h.b16 %v19
  %v268 = vunpack.c.l.b16 %v20
  %v269 = vunpack.c.h.b16 %v20
  %v270 = vunpack.c.l.b16 %v21
  %v271 = vunpack.c.h.b16 %v21
  %v272 = vpack.c.b16 %v258, %v258
  %v273 = vpack.c.b16 %v259, %v259
  %v274 = vpack.c.b16 %v260, %v260
  %v275 = vpack.c.b16 %v261, %v261
  %v276 = vpack.c.b16 %v262, %v262
  %v277 = vpack.c.b16 %v263, %v263
  %v278 = vpack.c.b16 %v264, %v264
  %v279 = vpack.c.b16 %v265, %v265
  %v280 = vpack.c.b16 %v266, %v266
  %v281 = vpack.c.b16 %v267, %v267
  %v282 = vpack.c.b16 %v268, %v268
  %v283 = vpack.c.b16 %v269, %v269
  %v284 = vpack.c.b16 %v270, %v270
  %v285 = vpack.c.b16 %v271, %v271
  %v524 = vunpack.c.l.b16 %v22
  %v525 = vunpack.c.l.b16 %v23
  %v526 = vunpack.c.l.b16 %v24
  %v527 = vunpack.c.l.b16 %v25
  %v528 = vunpack.c.l.b16 %v26
  %v529 = vunpack.c.l.b16 %v27
  %v530 = vunpack.c.l.b16 %v28
  %v531 = vunpack.c.l.b16 %v29
  %v532 = vunpack.c.l.b16 %v30
  %v533 = vunpack.c.l.b16 %v31
  %v534 = vunpack.c.l.b16 %v32
  %v535 = vunpack.c.l.b16 %v33
  %v536 = vunpack.c.l.b16 %v34
  %v537 = vunpack.c.l.b16 %v35
  %v538 = vunpack.c.l.b16 %v36
  %v539 = vunpack.c.l.b16 %v37
  %v540 = vunpack.c.l.b16 %v38
  %v541 = vunpack.c.l.b16 %v39
  %v542 = vunpack.c.l.b16 %v40
  %v543 = vunpack.c.l.b16 %v41
  %v544 = vunpack.c.l.b16 %v42
  %v545 = vunpack.c.l.b16 %v43
  %v546 = vunpack.c.l.b16 %v44
  %v547 = vunpack.c.l.b16 %v45
  %v548 = vunpack.c.l.b16 %v46
  %v549 = vunpack.c.l.b16 %v47
  %v550 = vunpack.c.l.b16 %v48
  %v551 = vunpack.c.l.b16 %v49
  %v552 = vunpack.c.l.b16 %v50
  %v553 = vunpack.c.l.b16 %v51
  %v554 = vunpack.c.l.b16 %v52
  %v555 = vunpack.c.l.b16 %v53
  %v556 = vunpack.c.l.b16 %v54
  %v557 = vunpack.c.l.b16 %v55
  %v558 = vunpack.c.l.b16 %v56
  %v559 = vunpack.c.l.b16 %v57
  %v560 = vunpack.c.l.b16 %v58
  %v561 = vunpack.c.l.b16 %v59
  %v562 = vunpack.c.l.b16 %v60
  %v563 = vunpack.c.l.b16 %v61
  %v564 = vunpack.c.l.b16 %v62
  %v565 = vunpack.c.l.b16 %v63
  %v566 = vunpack.c.l.b16 %v64
  %v567 = vunpack.c.l.b16 %v65
  %v568 = vunpack.c.l.b16 %v66
  %v569 = vunpack.c.l.b16 %v67
  %v570 = vunpack.c.l.b16 %v68
  %v571 = vunpack.c.l.b16 %v69
  %v572 = vunpack.c.l.b16 %v70
  %v573 = vunpack.c.l.b16 %v71
  %v574 = vunpack.c.l.b16 %v72
  %v575 = vunpack.c.l.b16 %v73
  %v576 = vunpack.c.l.b16 %v74
  %v577 = vunpack.c.l.b16 %v75
  %v578 = vunpack.c.l.b16 %v76
  %v579 = vunpack.c.l.b16 %v77
  %v580 = vunpack.c.l.b16 %v78
  %v581 = vunpack.c.l.b16 %v79
  %v582 = vunpack.c.l.b16 %v80
  %v583 = vunpack.c.l.b16 %v81
  %v584 = vunpack.c.l.b16 %v82
  %v585 = vunpack.c.l.b16 %v83
  %v586 = vunpack.c.l.b16 %v84
  %v587 = vunpack.c.l.b16 %v85
  %v588 = vunpack.c.l.b16 %v86
  %v589 = vunpack.c.l.b16 %v87
  %v590 = vunpack.c.l.b16 %v88
  %v591 = vunpack.c.l.b16 %v89
  %v592 = vunpack.c.l.b16 %v90
  %v593 = vunpack.c.l.b16 %v91
  %v594 = vunpack.c.l.b16 %v92
  %v595 = vunpack.c.l.b16 %v93
  %v596 = vunpack.c.l.b16 %v94
  %v597 = vunpack.c.l.b16 %v95
  %v598 = vunpack.c.l.b16 %v96
  %v599 = vunpack.c.l.b16 %v97
  %v600 = vunpack.c.l.b16 %v98
  %v601 = vunpack.c.l.b16 %v99
  %v602 = vunpack.c.l.b16 %v100
  %v603 = vunpack.c.l.b16 %v101
  %v604 = vunpack.c.l.b16 %v102
  %v605 = vunpack.c.l.b16 %v103
  %v606 = vunpack.c.l.b16 %v104
  %v607 = vunpack.c.l.b16 %v105
  %v608 = vunpack.c.l.b16 %v106
  %v609 = vunpack.c.l.b16 %v107
  %v610 = vunpack.c.l.b16 %v108
  %v611 = vunpack.c.l.b16 %v109
  %v612 = vunpack.c.l.b16 %v110
  %v613 = vunpack.c.l.b16 %v111
  %v614 = vunpack.c.l.b16 %v112
  %v615 = vunpack.c.l.b16 %v113
  %v616 = vunpack.c.l.b16 %v114
  %v617 = vunpack.c.l.b16 %v115
  %v618 = vunpack.c.l.b16 %v116
  %v619 = vunpack.c.l.b16 %v117
  %v620 = vunpack.c.l.b16 %v118
  %v621 = vunpack.c.l.b16 %v119
  %v622 = vunpack.c.l.b16 %v120
  %v623 = vunpack.c.l.b16 %v121
  %v624 = vunpack.c.l.b16 %v122
  %v625 = vunpack.c.l.b16 %v123
  %v626 = vunpack.c.l.b16 %v124
  %v627 = vunpack.c.l.b16 %v125
  %v628 = vunpack.c.l.b16 %v126
  %v629 = vunpack.c.l.b16 %v127
  %v630 = vunpack.c.l.b16 %v128
  %v631 = vunpack.c.l.b16 %v129
  %v632 = vunpack.c.l.b16 %v130
  %v633 = vunpack.c.l.b16 %v131
  %v634 = vunpack.c.l.b16 %v132
  %v635 = vunpack.c.l.b16 %v133
  %v636 = vunpack.c.l.b16 %v134
  %v637 = vunpack.c.l.b16 %v135
  %v638 = vunpack.c.l.b16 %v136
  %v639 = vunpack.c.l.b16 %v137
  %v640 = vunpack.c.l.b16 %v138
  %v641 = vunpack.c.l.b16 %v139
  %v642 = vunpack.c.l.b16 %v140
  %v643 = vunpack.c.l.b16 %v141
  %v644 = vunpack.c.l.b16 %v142
  %v645 = vunpack.c.l.b16 %v143
  %v646 = vunpack.c.l.b16 %v144
  %v647 = vunpack.c.l.b16 %v145
  %v648 = vunpack.c.l.b16 %v146
  %v649 = vunpack.c.l.b16 %v147
  %v650 = vunpack.c.l.b16 %v148
  %v651 = vunpack.c.l.b16 %v149
  %v652 = vunpack.c.l.b16 %v150
  %v653 = vunpack.c.l.b16 %v151
  %v654 = vunpack.c.l.b16 %v152
  %v655 = vunpack.c.l.b16 %v153
  %v656 = vunpack.c.l.b16 %v154
  %v657 = vunpack.c.l.b16 %v155
  %v658 = vunpack.c.l.b16 %v156
  %v659 = vunpack.c.l.b16 %v157
  %v660 = vunpack.c.l.b16 %v158
  %v661 = vunpack.c.l.b16 %v159
  %v662 = vunpack.c.l.b16 %v160
  %v663 = vunpack.c.l.b16 %v161
  %v664 = vunpack.c.l.b16 %v162
  %v665 = vunpack.c.l.b16 %v163
  %v666 = vunpack.c.l.b16 %v164
  %v667 = vunpack.c.l.b16 %v165
  %v668 = vunpack.c.l.b16 %v166
  %v669 = vunpack.c.l.b16 %v167
  %v670 = vunpack.c.l.b16 %v168
  %v671 = vunpack.c.l.b16 %v169
  %v672 = vunpack.c.l.b16 %v170
  %v673 = vunpack.c.l.b16 %v171
  %v674 = vunpack.c.l.b16 %v172
  %v675 = vunpack.c.l.b16 %v173
  %v676 = vunpack.c.l.b16 %v174
  %v677 = vunpack.c.l.b16 %v175
  %v678 = vunpack.c.l.b16 %v176
  %v679 = vunpack.c.l.b16 %v177
  %v680 = vunpack.c.l.b16 %v178
  %v681 = vunpack.c.l.b16 %v179
  %v682 = vunpack.c.l.b16 %v180
  %v683 = vunpack.c.l.b16 %v181
  %v684 = vunpack.c.l.b16 %v182
  %v685 = vunpack.c.l.b16 %v183
  %v686 = vunpack.c.l.b16 %v184
  %v687 = vunpack.c.l.b16 %v185
  %v688 = vunpack.c.l.b16 %v186
  %v689 = vunpack.c.l.b16 %v187
  %v690 = vunpack.c.l.b16 %v188
  %v691 = vunpack.c.l.b16 %v189
  %v692 = vunpack.c.l.b16 %v190
  %v693 = vunpack.c.l.b16 %v191
  %v694 = vunpack.c.l.b16 %v192
  %v695 = vunpack.c.l.b16 %v193
  %v696 = vunpack.c.l.b16 %v194
  %v697 = vunpack.c.l.b16 %v195
  %v698 = vunpack.c.l.b16 %v196
  %v699 = vunpack.c.l.b16 %v197
  %v700 = vunpack.c.l.b16 %v198
  %v701 = vunpack.c.l.b16 %v199
  %v702 = vunpack.c.l.b16 %v200
  %v703 = vunpack.c.l.b16 %v201
  %v704 = vunpack.c.l.b16 %v202
  %v705 = vunpack.c.l.b16 %v203
  %v706 = vunpack.c.l.b16 %v204
  %v707 = vunpack.c.l.b16 %v205
  %v708 = vunpack.c.l.b16 %v206
  %v709 = vunpack.c.l.b16 %v207
  %v710 = vunpack.c.l.b16 %v208
  %v711 = vunpack.c.l.b16 %v209
  %v712 = vunpack.c.l.b16 %v210
  %v713 = vunpack.c.l.b16 %v211
  %v714 = vunpack.c.l.b16 %v212
  %v715 = vunpack.c.l.b16 %v213
  %v716 = vunpack.c.l.b16 %v214
  %v717 = vunpack.c.l.b16 %v215
  %v718 = vunpack.c.l.b16 %v216
  %v719 = vunpack.c.l.b16 %v217
  %v720 = vunpack.c.l.b16 %v218
  %v721 = vunpack.c.l.b16 %v219
  %v722 = vunpack.c.l.b16 %v220
  %v723 = vunpack.c.l.b16 %v221
  %v724 = vunpack.c.l.b16 %v222
  %v725 = vunpack.c.l.b16 %v223
  %v726 = vunpack.c.l.b16 %v224
  %v727 = vunpack.c.l.b16 %v225
  %v728 = vunpack.c.l.b16 %v226
  %v729 = vunpack.c.l.b16 %v227
  %v730 = vunpack.c.l.b16 %v228
  %v731 = vunpack.c.l.b16 %v229
  %v732 = vunpack.c.l.b16 %v230
  %v733 = vunpack.c.l.b16 %v231
  %v734 = vunpack.c.l.b16 %v232
  %v735 = vunpack.c.l.b16 %v233
  %v736 = vunpack.c.l.b16 %v234
  %v737 = vunpack.c.l.b16 %v235
  %v738 = vunpack.c.l.b16 %v236
  %v739 = vunpack.c.l.b16 %v237
  %v740 = vunpack.c.l.b16 %v238
  %v741 = vunpack.c.l.b16 %v239
  %v742 = vunpack.c.l.b16 %v240
  %v743 = vunpack.c.l.b16 %v241
  %v744 = vunpack.c.l.b16 %v242
  %v745 = vunpack.c.l.b16 %v243
  %v746 = vunpack.c.l.b16 %v244
  %v747 = vunpack.c.l.b16 %v245
  %v748 = vpack.c.b16 %v525, %v524
  %v749 = vpack.c.b16 %v527, %v526
  %v750 = vpack.c.b16 %v529, %v528
  %v751 = vpack.c.b16 %v531, %v530
  %v752 = vpack.c.b16 %v533, %v532
  %v753 = vpack.c.b16 %v535, %v534
  %v754 = vpack.c.b16 %v537, %v536
  %v755 = vpack.c.b16 %v539, %v538
  %v756 = vpack.c.b16 %v541, %v540
  %v757 = vpack.c.b16 %v543, %v542
  %v758 = vpack.c.b16 %v545, %v544
  %v759 = vpack.c.b16 %v547, %v546
  %v760 = vpack.c.b16 %v549, %v548
  %v761 = vpack.c.b16 %v551, %v550
  %v762 = vpack.c.b16 %v553, %v552
  %v763 = vpack.c.b16 %v555, %v554
  %v764 = vpack.c.b16 %v557, %v556
  %v765 = vpack.c.b16 %v559, %v558
  %v766 = vpack.c.b16 %v561, %v560
  %v767 = vpack.c.b16 %v563, %v562
  %v768 = vpack.c.b16 %v565, %v564
  %v769 = vpack.c.b16 %v567, %v566
  %v770 = vpack.c.b16 %v569, %v568
  %v771 = vpack.c.b16 %v571, %v570
  %v772 = vpack.c.b16 %v573, %v572
  %v773 = vpack.c.b16 %v575, %v574
  %v774 = vpack.c.b16 %v577, %v576
  %v775 = vpack.c.b16 %v579, %v578
  %v776 = vpack.c.b16 %v581, %v580
  %v777 = vpack.c.b16 %v583, %v582
  %v778 = vpack.c.b16 %v585, %v584
  %v779 = vpack.c.b16 %v587, %v586
  %v780 = vpack.c.b16 %v589, %v588
  %v781 = vpack.c.b16 %v591, %v590
  %v782 = vpack.c.b16 %v593, %v592
  %v783 = vpack.c.b16 %v595, %v594
  %v784 = vpack.c.b16 %v597, %v596
  %v785 = vpack.c.b16 %v599, %v598
  %v786 = vpack.c.b16 %v601, %v600
  %v787 = vpack.c.b16 %v603, %v602
  %v788 = vpack.c.b16 %v605, %v604
  %v789 = vpack.c.b16 %v607, %v606
  %v790 = vpack.c.b16 %v609, %v608
  %v791 = vpack.c.b16 %v611, %v610
  %v792 = vpack.c.b16 %v613, %v612
  %v793 = vpack.c.b16 %v615, %v614
  %v794 = vpack.c.b16 %v617, %v616
  %v795 = vpack.c.b16 %v619, %v618
  %v796 = vpack.c.b16 %v621, %v620
  %v797 = vpack.c.b16 %v623, %v622
  %v798 = vpack.c.b16 %v625, %v624
  %v799 = vpack.c.b16 %v627, %v626
  %v800 = vpack.c.b16 %v629, %v628
  %v801 = vpack.c.b16 %v631, %v630
  %v802 = vpack.c.b16 %v633, %v632
  %v803 = vpack.c.b16 %v635, %v634
  %v804 = vpack.c.b16 %v637, %v636
  %v805 = vpack.c.b16 %v639, %v638
  %v806 = vpack.c.b16 %v641, %v640
  %v807 = vpack.c.b16 %v643, %v642
  %v808 = vpack.c.b16 %v645, %v644
  %v809 = vpack.c.b16 %v647, %v646
  %v810 = vpack.c.b16 %v649, %v648
  %v811 = vpack.c.b16 %v651, %v650
  %v812 = vpack.c.b16 %v653, %v652
  %v813 = vpack.c.b16 %v655, %v654
  %v814 = vpack.c.b16 %v657, %v656
  %v815 = vpack.c.b16 %v659, %v658
  %v816 = vpack.c.b16 %v661, %v660
  %v817 = vpack.c.b16 %v663, %v662
  %v818 = vpack.c.b16 %v665, %v664
  %v819 = vpack.c.b16 %v667, %v666
  %v820 = vpack.c.b16 %v669, %v668
  %v821 = vpack.c.b16 %v671, %v670
  %v822 = vpack.c.b16 %v673, %v672
  %v823 = vpack.c.b16 %v675, %v674
  %v824 = vpack.c.b16 %v677, %v676
  %v825 = vpack.c.b16 %v679, %v678
  %v826 = vpack.c.b16 %v681, %v680
  %v827 = vpack.c.b16 %v683, %v682
  %v828 = vpack.c.b16 %v685, %v684
  %v829 = vpack.c.b16 %v687, %v686
  %v830 = vpack.c.b16 %v689, %v688
  %v831 = vpack.c.b16 %v691, %v690
  %v832 = vpack.c.b16 %v693, %v692
  %v833 = vpack.c.b16 %v695, %v694
  %v834 = vpack.c.b16 %v697, %v696
  %v835 = vpack.c.b16 %v699, %v698
  %v836 = vpack.c.b16 %v701, %v700
  %v837 = vpack.c.b16 %v703, %v702
  %v838 = vpack.c.b16 %v705, %v704
  %v839 = vpack.c.b16 %v707, %v706
  %v840 = vpack.c.b16 %v709, %v708
  %v841 = vpack.c.b16 %v711, %v710
  %v842 = vpack.c.b16 %v713, %v712
  %v843 = vpack.c.b16 %v715, %v714
  %v844 = vpack.c.b16 %v717, %v716
  %v845 = vpack.c.b16 %v719, %v718
  %v846 = vpack.c.b16 %v721, %v720
  %v847 = vpack.c.b16 %v723, %v722
  %v848 = vpack.c.b16 %v725, %v724
  %v849 = vpack.c.b16 %v727, %v726
  %v850 = vpack.c.b16 %v729, %v728
  %v851 = vpack.c.b16 %v731, %v730
  %v852 = vpack.c.b16 %v733, %v732
  %v853 = vpack.c.b16 %v735, %v734
  %v854 = vpack.c.b16 %v737, %v736
  %v855 = vpack.c.b16 %v739, %v738
  %v856 = vpack.c.b16 %v741, %v740
  %v857 = vpack.c.b16 %v743, %v742
  %v858 = vpack.c.b16 %v745, %v744
  %v859 = vpack.c.b16 %v747, %v746
  %972 = vmatprep.subr.bf16.mxu0 0
  %973 = vmatpush1.bf16.msra.mxu0 %v748
  %974 = vmatprep.subr.bf16.mxu0 0
  %975 = vmatpush1.bf16.msra.mxu0 %v749
  %976 = vmatprep.subr.bf16.mxu0 0
  %977 = vmatpush1.bf16.msra.mxu0 %v750
  %978 = vmatprep.subr.bf16.mxu0 0
  %979 = vmatpush1.bf16.msra.mxu0 %v751
  %980 = vmatprep.subr.bf16.mxu0 0
  %981 = vmatpush1.bf16.msra.mxu0 %v752
  %982 = vmatprep.subr.bf16.mxu0 0
  %983 = vmatpush1.bf16.msra.mxu0 %v753
  %984 = vmatprep.subr.bf16.mxu0 0
  %985 = vmatpush1.bf16.msra.mxu0 %v754
  %986 = vmatprep.subr.bf16.mxu0 0
  %987 = vmatpush1.bf16.msra.mxu0 %v755
  %988 = vmatprep.subr.bf16.mxu0 0
  %989 = vmatpush1.bf16.msra.mxu0 %v756
  %990 = vmatprep.subr.bf16.mxu0 0
  %991 = vmatpush1.bf16.msra.mxu0 %v757
  %992 = vmatprep.subr.bf16.mxu0 0
  %993 = vmatpush1.bf16.msra.mxu0 %v758
  %994 = vmatprep.subr.bf16.mxu0 0
  %995 = vmatpush1.bf16.msra.mxu0 %v759
  %996 = vmatprep.subr.bf16.mxu0 0
  %997 = vmatpush1.bf16.msra.mxu0 %v760
  %998 = vmatprep.subr.bf16.mxu0 0
  %999 = vmatpush1.bf16.msra.mxu0 %v761
  %1000 = vmatprep.subr.bf16.mxu0 0
  %1001 = vmatpush1.bf16.msra.mxu0 %v762
  %1002 = vmatprep.subr.bf16.mxu0 0
  %1003 = vmatpush1.bf16.msra.mxu0 %v763
  %1004 = vmatprep.mubr.bf16.mxu0 %v273
  %1005 = vmatmul.mubr.bf16.gmra.mrb[0].mxu0 %v272
  %v1006 = vpop.f32.mrb[0].mxu0
  %v1007 = vadd.f32 %v250, %v1006
  %v1008 = vpop.f32.mrb[0].mxu0
  %v1009 = vpop.f32.mrb[0].mxu0
  %v1010 = vpop.f32.mrb[0].mxu0
  %1011 = vdwg.mxu0
  %1012 = vmatprep.subr.bf16.mxu0 0
  %1013 = vmatpush1.bf16.msra.mxu0 %v764
  %1014 = vmatprep.subr.bf16.mxu0 0
  %1015 = vmatpush1.bf16.msra.mxu0 %v765
  %1016 = vmatprep.subr.bf16.mxu0 0
  %1017 = vmatpush1.bf16.msra.mxu0 %v766
  %1018 = vmatprep.subr.bf16.mxu0 0
  %1019 = vmatpush1.bf16.msra.mxu0 %v767
  %1020 = vmatprep.subr.bf16.mxu0 0
  %1021 = vmatpush1.bf16.msra.mxu0 %v768
  %1022 = vmatprep.subr.bf16.mxu0 0
  %1023 = vmatpush1.bf16.msra.mxu0 %v769
  %1024 = vmatprep.subr.bf16.mxu0 0
  %1025 = vmatpush1.bf16.msra.mxu0 %v770
  %1026 = vmatprep.subr.bf16.mxu0 0
  %1027 = vmatpush1.bf16.msra.mxu0 %v771
  %1028 = vmatprep.subr.bf16.mxu0 0
  %1029 = vmatpush1.bf16.msra.mxu0 %v772
  %1030 = vmatprep.subr.bf16.mxu0 0
  %1031 = vmatpush1.bf16.msra.mxu0 %v773
  %1032 = vmatprep.subr.bf16.mxu0 0
  %1033 = vmatpush1.bf16.msra.mxu0 %v774
  %1034 = vmatprep.subr.bf16.mxu0 0
  %1035 = vmatpush1.bf16.msra.mxu0 %v775
  %1036 = vmatprep.subr.bf16.mxu0 0
  %1037 = vmatpush1.bf16.msra.mxu0 %v776
  %1038 = vmatprep.subr.bf16.mxu0 0
  %1039 = vmatpush1.bf16.msra.mxu0 %v777
  %1040 = vmatprep.subr.bf16.mxu0 0
  %1041 = vmatpush1.bf16.msra.mxu0 %v778
  %1042 = vmatprep.subr.bf16.mxu0 0
  %1043 = vmatpush1.bf16.msra.mxu0 %v779
  %1044 = vmatprep.mubr.bf16.mxu0 %v275
  %1045 = vmatmul.mubr.bf16.gmra.mrb[0].mxu0 %v274
  %v1046 = vpop.f32.mrb[0].mxu0
  %v1047 = vadd.f32 %v1007, %v1046
  %v1048 = vpop.f32.mrb[0].mxu0
  %v1049 = vpop.f32.mrb[0].mxu0
  %v1050 = vpop.f32.mrb[0].mxu0
  %1051 = vdwg.mxu0
  %1052 = vmatprep.subr.bf16.mxu0 0
  %1053 = vmatpush1.bf16.msra.mxu0 %v780
  %1054 = vmatprep.subr.bf16.mxu0 0
  %1055 = vmatpush1.bf16.msra.mxu0 %v781
  %1056 = vmatprep.subr.bf16.mxu0 0
  %1057 = vmatpush1.bf16.msra.mxu0 %v782
  %1058 = vmatprep.subr.bf16.mxu0 0
  %1059 = vmatpush1.bf16.msra.mxu0 %v783
  %1060 = vmatprep.subr.bf16.mxu0 0
  %1061 = vmatpush1.bf16.msra.mxu0 %v784
  %1062 = vmatprep.subr.bf16.mxu0 0
  %1063 = vmatpush1.bf16.msra.mxu0 %v785
  %1064 = vmatprep.subr.bf16.mxu0 0
  %1065 = vmatpush1.bf16.msra.mxu0 %v786
  %1066 = vmatprep.subr.bf16.mxu0 0
  %1067 = vmatpush1.bf16.msra.mxu0 %v787
  %1068 = vmatprep.subr.bf16.mxu0 0
  %1069 = vmatpush1.bf16.msra.mxu0 %v788
  %1070 = vmatprep.subr.bf16.mxu0 0
  %1071 = vmatpush1.bf16.msra.mxu0 %v789
  %1072 = vmatprep.subr.bf16.mxu0 0
  %1073 = vmatpush1.bf16.msra.mxu0 %v790
  %1074 = vmatprep.subr.bf16.mxu0 0
  %1075 = vmatpush1.bf16.msra.mxu0 %v791
  %1076 = vmatprep.subr.bf16.mxu0 0
  %1077 = vmatpush1.bf16.msra.mxu0 %v792
  %1078 = vmatprep.subr.bf16.mxu0 0
  %1079 = vmatpush1.bf16.msra.mxu0 %v793
  %1080 = vmatprep.subr.bf16.mxu0 0
  %1081 = vmatpush1.bf16.msra.mxu0 %v794
  %1082 = vmatprep.subr.bf16.mxu0 0
  %1083 = vmatpush1.bf16.msra.mxu0 %v795
  %1084 = vmatprep.mubr.bf16.mxu0 %v277
  %1085 = vmatmul.mubr.bf16.gmra.mrb[0].mxu0 %v276
  %v1086 = vpop.f32.mrb[0].mxu0
  %v1087 = vadd.f32 %v1047, %v1086
  %v1088 = vpop.f32.mrb[0].mxu0
  %v1089 = vpop.f32.mrb[0].mxu0
  %v1090 = vpop.f32.mrb[0].mxu0
  %1091 = vdwg.mxu0
  %1092 = vmatprep.subr.bf16.mxu0 0
  %1093 = vmatpush1.bf16.msra.mxu0 %v796
  %1094 = vmatprep.subr.bf16.mxu0 0
  %1095 = vmatpush1.bf16.msra.mxu0 %v797
  %1096 = vmatprep.subr.bf16.mxu0 0
  %1097 = vmatpush1.bf16.msra.mxu0 %v798
  %1098 = vmatprep.subr.bf16.mxu0 0
  %1099 = vmatpush1.bf16.msra.mxu0 %v799
  %1100 = vmatprep.subr.bf16.mxu0 0
  %1101 = vmatpush1.bf16.msra.mxu0 %v800
  %1102 = vmatprep.subr.bf16.mxu0 0
  %1103 = vmatpush1.bf16.msra.mxu0 %v801
  %1104 = vmatprep.subr.bf16.mxu0 0
  %1105 = vmatpush1.bf16.msra.mxu0 %v802
  %1106 = vmatprep.subr.bf16.mxu0 0
  %1107 = vmatpush1.bf16.msra.mxu0 %v803
  %1108 = vmatprep.subr.bf16.mxu0 0
  %1109 = vmatpush1.bf16.msra.mxu0 %v804
  %1110 = vmatprep.subr.bf16.mxu0 0
  %1111 = vmatpush1.bf16.msra.mxu0 %v805
  %1112 = vmatprep.subr.bf16.mxu0 0
  %1113 = vmatpush1.bf16.msra.mxu0 %v806
  %1114 = vmatprep.subr.bf16.mxu0 0
  %1115 = vmatpush1.bf16.msra.mxu0 %v807
  %1116 = vmatprep.subr.bf16.mxu0 0
  %1117 = vmatpush1.bf16.msra.mxu0 %v808
  %1118 = vmatprep.subr.bf16.mxu0 0
  %1119 = vmatpush1.bf16.msra.mxu0 %v809
  %1120 = vmatprep.subr.bf16.mxu0 0
  %1121 = vmatpush1.bf16.msra.mxu0 %v810
  %1122 = vmatprep.subr.bf16.mxu0 0
  %1123 = vmatpush1.bf16.msra.mxu0 %v811
  %1124 = vmatprep.mubr.bf16.mxu0 %v279
  %1125 = vmatmul.mubr.bf16.gmra.mrb[0].mxu0 %v278
  %v1126 = vpop.f32.mrb[0].mxu0
  %v1127 = vadd.f32 %v1087, %v1126
  %v1128 = vpop.f32.mrb[0].mxu0
  %v1129 = vpop.f32.mrb[0].mxu0
  %v1130 = vpop.f32.mrb[0].mxu0
  %1131 = vdwg.mxu0
  %1132 = vmatprep.subr.bf16.mxu0 0
  %1133 = vmatpush1.bf16.msra.mxu0 %v812
  %1134 = vmatprep.subr.bf16.mxu0 0
  %1135 = vmatpush1.bf16.msra.mxu0 %v813
  %1136 = vmatprep.subr.bf16.mxu0 0
  %1137 = vmatpush1.bf16.msra.mxu0 %v814
  %1138 = vmatprep.subr.bf16.mxu0 0
  %1139 = vmatpush1.bf16.msra.mxu0 %v815
  %1140 = vmatprep.subr.bf16.mxu0 0
  %1141 = vmatpush1.bf16.msra.mxu0 %v816
  %1142 = vmatprep.subr.bf16.mxu0 0
  %1143 = vmatpush1.bf16.msra.mxu0 %v817
  %1144 = vmatprep.subr.bf16.mxu0 0
  %1145 = vmatpush1.bf16.msra.mxu0 %v818
  %1146 = vmatprep.subr.bf16.mxu0 0
  %1147 = vmatpush1.bf16.msra.mxu0 %v819
  %1148 = vmatprep.subr.bf16.mxu0 0
  %1149 = vmatpush1.bf16.msra.mxu0 %v820
  %1150 = vmatprep.subr.bf16.mxu0 0
  %1151 = vmatpush1.bf16.msra.mxu0 %v821
  %1152 = vmatprep.subr.bf16.mxu0 0
  %1153 = vmatpush1.bf16.msra.mxu0 %v822
  %1154 = vmatprep.subr.bf16.mxu0 0
  %1155 = vmatpush1.bf16.msra.mxu0 %v823
  %1156 = vmatprep.subr.bf16.mxu0 0
  %1157 = vmatpush1.bf16.msra.mxu0 %v824
  %1158 = vmatprep.subr.bf16.mxu0 0
  %1159 = vmatpush1.bf16.msra.mxu0 %v825
  %1160 = vmatprep.subr.bf16.mxu0 0
  %1161 = vmatpush1.bf16.msra.mxu0 %v826
  %1162 = vmatprep.subr.bf16.mxu0 0
  %1163 = vmatpush1.bf16.msra.mxu0 %v827
  %1164 = vmatprep.mubr.bf16.mxu0 %v281
  %1165 = vmatmul.mubr.bf16.gmra.mrb[0].mxu0 %v280
  %v1166 = vpop.f32.mrb[0].mxu0
  %v1167 = vadd.f32 %v1127, %v1166
  %v1168 = vpop.f32.mrb[0].mxu0
  %v1169 = vpop.f32.mrb[0].mxu0
  %v1170 = vpop.f32.mrb[0].mxu0
  %1171 = vdwg.mxu0
  %1172 = vmatprep.subr.bf16.mxu0 0
  %1173 = vmatpush1.bf16.msra.mxu0 %v828
  %1174 = vmatprep.subr.bf16.mxu0 0
  %1175 = vmatpush1.bf16.msra.mxu0 %v829
  %1176 = vmatprep.subr.bf16.mxu0 0
  %1177 = vmatpush1.bf16.msra.mxu0 %v830
  %1178 = vmatprep.subr.bf16.mxu0 0
  %1179 = vmatpush1.bf16.msra.mxu0 %v831
  %1180 = vmatprep.subr.bf16.mxu0 0
  %1181 = vmatpush1.bf16.msra.mxu0 %v832
  %1182 = vmatprep.subr.bf16.mxu0 0
  %1183 = vmatpush1.bf16.msra.mxu0 %v833
  %1184 = vmatprep.subr.bf16.mxu0 0
  %1185 = vmatpush1.bf16.msra.mxu0 %v834
  %1186 = vmatprep.subr.bf16.mxu0 0
  %1187 = vmatpush1.bf16.msra.mxu0 %v835
  %1188 = vmatprep.subr.bf16.mxu0 0
  %1189 = vmatpush1.bf16.msra.mxu0 %v836
  %1190 = vmatprep.subr.bf16.mxu0 0
  %1191 = vmatpush1.bf16.msra.mxu0 %v837
  %1192 = vmatprep.subr.bf16.mxu0 0
  %1193 = vmatpush1.bf16.msra.mxu0 %v838
  %1194 = vmatprep.subr.bf16.mxu0 0
  %1195 = vmatpush1.bf16.msra.mxu0 %v839
  %1196 = vmatprep.subr.bf16.mxu0 0
  %1197 = vmatpush1.bf16.msra.mxu0 %v840
  %1198 = vmatprep.subr.bf16.mxu0 0
  %1199 = vmatpush1.bf16.msra.mxu0 %v841
  %1200 = vmatprep.subr.bf16.mxu0 0
  %1201 = vmatpush1.bf16.msra.mxu0 %v842
  %1202 = vmatprep.subr.bf16.mxu0 0
  %1203 = vmatpush1.bf16.msra.mxu0 %v843
  %1204 = vmatprep.mubr.bf16.mxu0 %v283
  %1205 = vmatmul.mubr.bf16.gmra.mrb[0].mxu0 %v282
  %v1206 = vpop.f32.mrb[0].mxu0
  %v1207 = vadd.f32 %v1167, %v1206
  %v1208 = vpop.f32.mrb[0].mxu0
  %v1209 = vpop.f32.mrb[0].mxu0
  %v1210 = vpop.f32.mrb[0].mxu0
  %1211 = vdwg.mxu0
  %1212 = vmatprep.subr.bf16.mxu0 0
  %1213 = vmatpush1.bf16.msra.mxu0 %v844
  %1214 = vmatprep.subr.bf16.mxu0 0
  %1215 = vmatpush1.bf16.msra.mxu0 %v845
  %1216 = vmatprep.subr.bf16.mxu0 0
  %1217 = vmatpush1.bf16.msra.mxu0 %v846
  %1218 = vmatprep.subr.bf16.mxu0 0
  %1219 = vmatpush1.bf16.msra.mxu0 %v847
  %1220 = vmatprep.subr.bf16.mxu0 0
  %1221 = vmatpush1.bf16.msra.mxu0 %v848
  %1222 = vmatprep.subr.bf16.mxu0 0
  %1223 = vmatpush1.bf16.msra.mxu0 %v849
  %1224 = vmatprep.subr.bf16.mxu0 0
  %1225 = vmatpush1.bf16.msra.mxu0 %v850
  %1226 = vmatprep.subr.bf16.mxu0 0
  %1227 = vmatpush1.bf16.msra.mxu0 %v851
  %1228 = vmatprep.subr.bf16.mxu0 0
  %1229 = vmatpush1.bf16.msra.mxu0 %v852
  %1230 = vmatprep.subr.bf16.mxu0 0
  %1231 = vmatpush1.bf16.msra.mxu0 %v853
  %1232 = vmatprep.subr.bf16.mxu0 0
  %1233 = vmatpush1.bf16.msra.mxu0 %v854
  %1234 = vmatprep.subr.bf16.mxu0 0
  %1235 = vmatpush1.bf16.msra.mxu0 %v855
  %1236 = vmatprep.subr.bf16.mxu0 0
  %1237 = vmatpush1.bf16.msra.mxu0 %v856
  %1238 = vmatprep.subr.bf16.mxu0 0
  %1239 = vmatpush1.bf16.msra.mxu0 %v857
  %1240 = vmatprep.subr.bf16.mxu0 0
  %1241 = vmatpush1.bf16.msra.mxu0 %v858
  %1242 = vmatprep.subr.bf16.mxu0 0
  %1243 = vmatpush1.bf16.msra.mxu0 %v859
  %1244 = vmatprep.mubr.bf16.mxu0 %v285
  %1245 = vmatmul.mubr.bf16.gmra.mrb[0].mxu0 %v284
  %v1246 = vpop.f32.mrb[0].mxu0
  %v1247 = vadd.f32 %v1207, %v1246
  %v1248 = vpop.f32.mrb[0].mxu0
  %v1249 = vpop.f32.mrb[0].mxu0
  %v1250 = vpop.f32.mrb[0].mxu0
  %1251 = vdwg.mxu0
  %v1252 = vmul.f32 %v1247, 0.2
  %v1253 = vmax.f32 %v1247, %v1252
  %v1254 = vld [vmem:[%s2 + $0x1] sm:$0x1]
  %v1255 = vlaneseq
  %v1256 = vshrl.u32 %v1255, 7
  %v1257 = vsub.s32 0, %v1256
  %v1258 = vrot.slane %v1254, %v1257
  %v1259 = vmul.f32 %v1253, %v1258
  %v1260 = vld [vmem:[%s2 + $0x2] sm:$0x1]
  %v1261 = vlaneseq
  %v1262 = vshrl.u32 %v1261, 7
  %v1263 = vsub.s32 0, %v1262
  %v1264 = vrot.slane %v1260, %v1263
  %v1265 = vadd.f32 %v1259, %v1264
  %v1266 = vpack.c.bf16 %v1265, %v1265
  %1267 = vst [vmem:[%s3] sm:$0xf] %v1266
  // Predicated region
  $region14: #{discriminator_forward.8} parent=0 // pred_check
    _
  $region15: #{discriminator_forward.8} parent=0 // pred_check_branch
    %1269 = sbr.rel (0) target = $region17
  $region16: #{discriminator_forward.8} parent=0 // pred_region
    _
  $region17: #{discriminator_forward.8} parent=0 // pred_fallthru
    _
  // Predicated region
  $region18: #{discriminator_forward.8} parent=0 // pred_check
    _
  $region19: #{discriminator_forward.8} parent=0 // pred_check_branch
    %1271 = sbr.rel (0) target = $region21
  $region20: #{discriminator_forward.8} parent=0 // pred_region
    _
  $region21: #{discriminator_forward.8} parent=0 // pred_fallthru
    _

</llo_original>
